<compile_context>
chip_gen: v7x
topology: tpu7x:2x2x1
jax: 0.10.0
libtpu: 0.0.40
codegen_flags: <defaults>
</compile_context>

<pallas_src>
import functools
from math import ceil

import jax
import jax.numpy as jnp
from jax.experimental import pallas as pl
from jax.experimental.pallas import tpu as pltpu

# ------------------------- small synthetic config --------------------------
CODEBOOK_SIZE = 16           # autoencoder.codebook_size
NUM_QUANTIZERS = 2           # autoencoder.num_quantizers
DIM = 32                     # transformer width
DEPTH = 2                    # attn_depth
HEADS = 4                    # attn_heads
DIM_HEAD = 8                 # attn_dim_head
NUM_MEM_KV = 4               # attn_kwargs num_mem_kv
FF_INNER = DIM * 4           # = 128 -> GLU split lands on a lane boundary
MAX_SEQ_LEN = 24             # divisible by NUM_QUANTIZERS
PAD_ID = -1
EOS_ID = CODEBOOK_SIZE
VOCAB = CODEBOOK_SIZE + 1
VOCAB_PAD = 128              # lane-dense padded vocab for the logits matmul
QKV_PAD = 128                # lane-dense packed [q|k|v|pad] projection width
LN_EPS = 1e-5
NEG_INF = -1e30


# ------------------------------ kernel utils --------------------------------
def _layernorm(x, g, b):
    mean = jnp.mean(x, axis=-1, keepdims=True)
    var = jnp.mean((x - mean) ** 2, axis=-1, keepdims=True)
    return (x - mean) * jax.lax.rsqrt(var + LN_EPS) * g + b


def _full(shape):
    zeros = (0,) * len(shape)
    return pl.BlockSpec(shape, lambda g, _z=zeros: _z)


# ------------------ fused decoder + logits + cross-entropy -------------------
def _decoder_ce_kernel(x_ref, lab_ref, bias_ref,
                       ag_ref, ab_ref, wqkv_ref, wo_ref, mkT_ref, mv_ref,
                       fg_ref, fb_ref, w1_ref, b1_ref, w2_ref, b2_ref,
                       lng_ref, lnb_ref, wl_ref, bl_ref,
                       nll_ref,
                       *, depth, heads, dim_head, inner):
    bf16 = jnp.bfloat16
    x = x_ref[0]                                   # (R, D) f32, R = Bb * N flattened rows
    bias = bias_ref[...]                           # (R, R) block-diag causal additive bias
    hd = heads * dim_head

    for l in range(depth):                         # DEPTH static & small -> unrolled
        # ---------------- attention (pre-LN, causal, + memory kv) ----------------
        xn = _layernorm(x, ag_ref[l], ab_ref[l]).astype(bf16)
        # fused lane-dense QKV projection; q columns are pre-scaled by 1/sqrt(dh)
        qkv = jnp.dot(xn, wqkv_ref[l], preferred_element_type=jnp.float32)   # (R, 128)
        outs = []
        for h in range(heads):
            o0 = h * dim_head
            q_h = qkv[:, o0:o0 + dim_head].astype(bf16)                      # (R, dh)
            k_h = qkv[:, hd + o0:hd + o0 + dim_head].astype(bf16)
            v_h = qkv[:, 2 * hd + o0:2 * hd + o0 + dim_head].astype(bf16)
            s_seq = jax.lax.dot_general(
                q_h, k_h, (((1,), (1,)), ((), ())),
                preferred_element_type=jnp.float32) + bias                   # (R, R)
            s_mem = jnp.dot(q_h, mkT_ref[l, h],
                            preferred_element_type=jnp.float32)             # (R, M)
            m = jnp.maximum(jnp.max(s_seq, axis=-1, keepdims=True),
                            jnp.max(s_mem, axis=-1, keepdims=True))
            p_seq = jnp.exp(s_seq - m)                                       # f32 softmax
            p_mem = jnp.exp(s_mem - m)
            inv = pl.reciprocal(jnp.sum(p_seq, axis=-1, keepdims=True)
                                + jnp.sum(p_mem, axis=-1, keepdims=True), approx=True)
            o_h = (jnp.dot(p_seq.astype(bf16), v_h, preferred_element_type=jnp.float32)
                   + jnp.dot(p_mem.astype(bf16), mv_ref[l, h],
                             preferred_element_type=jnp.float32)) * inv      # (R, dh)
            outs.append(o_h)
        o_all = jnp.concatenate(outs, axis=-1).astype(bf16)                  # (R, H*dh)
        x = x + jnp.dot(o_all, wo_ref[l], preferred_element_type=jnp.float32)

        # ---------------- GLU feed-forward (pre-LN) ----------------
        xn = _layernorm(x, fg_ref[l], fb_ref[l]).astype(bf16)
        hf = jnp.dot(xn, w1_ref[l], preferred_element_type=jnp.float32) + b1_ref[l]
        val, gate = hf[:, :inner], hf[:, inner:]                             # lane-aligned split
        # TODO(synk): PyTorch nn.GELU defaults to exact erf; tanh approximation used here.
        act = 0.5 * gate * (1.0 + jnp.tanh(0.7978845608028654 *
                                           (gate + 0.044715 * gate * gate * gate)))
        x = x + (jnp.dot((val * act).astype(bf16), w2_ref[l],
                         preferred_element_type=jnp.float32) + b2_ref[l])

    # -------- final norm + logits + masked cross-entropy (logits stay in VMEM) --------
    xn = _layernorm(x, lng_ref[...], lnb_ref[...]).astype(bf16)
    # padded vocab columns carry a -1e30 bias -> excluded from log-sum-exp automatically
    logits = jnp.dot(xn, wl_ref[...], preferred_element_type=jnp.float32) + bl_ref[...]
    lmax = jnp.max(logits, axis=-1, keepdims=True)
    lse = lmax + jnp.log(jnp.sum(jnp.exp(logits - lmax), axis=-1, keepdims=True))   # (R, 1)
    lab = lab_ref[0]                                                         # (R, 1) int32
    vcol = jax.lax.broadcasted_iota(jnp.int32, logits.shape, 1)
    picked = jnp.sum(jnp.where(vcol == lab, logits, 0.0), axis=-1, keepdims=True)   # (R, 1)
    valid = (lab >= 0).astype(jnp.float32)                                   # ignore_index = -1
    tot = jnp.sum((lse - picked) * valid, axis=0, keepdims=True)             # (1, 1)
    nll_ref[0] = jnp.broadcast_to(tot, (1, nll_ref.shape[-1]))               # lane-dense store


def fused_decoder_ce(x_emb, labels, attn_bias, p, groups):
    B, N, D = x_emb.shape
    G = groups
    Bb = B // G
    R = Bb * N
    L, H, dh, M, I = DEPTH, HEADS, DIM_HEAD, NUM_MEM_KV, FF_INNER
    HD = H * dh
    Vp = p["to_logits_w"].shape[1]
    Wq = p["wqkv"].shape[-1]

    x_flat = x_emb.reshape(G, R, D)                    # Bb batch rows fused per grid step
    lab_flat = labels.reshape(G, R, 1).astype(jnp.int32)

    kern = functools.partial(_decoder_ce_kernel, depth=L, heads=H, dim_head=dh, inner=I)
    nll = pl.pallas_call(
        kern,
        out_shape=jax.ShapeDtypeStruct((G, 1, Vp), jnp.float32),
        grid=(G,),
        in_specs=[
            pl.BlockSpec((1, R, D), lambda g: (g, 0, 0)),
            pl.BlockSpec((1, R, 1), lambda g: (g, 0, 0)),
            _full((R, R)),
            _full((L, 1, D)), _full((L, 1, D)),
            _full((L, D, Wq)), _full((L, HD, D)),
            _full((L, H, dh, M)), _full((L, H, M, dh)),
            _full((L, 1, D)), _full((L, 1, D)),
            _full((L, D, 2 * I)), _full((L, 1, 2 * I)),
            _full((L, I, D)), _full((L, 1, D)),
            _full((1, D)), _full((1, D)),
            _full((D, Vp)), _full((1, Vp)),
        ],
        out_specs=pl.BlockSpec((1, 1, Vp), lambda g: (g, 0, 0)),
        compiler_params=pltpu.CompilerParams(
            dimension_semantics=("parallel",)),          # both TCs on v7x when G >= 2
    )(x_flat, lab_flat, attn_bias,
      p["attn_ln_g"], p["attn_ln_b"], p["wqkv"], p["wo"], p["mem_kT"], p["mem_v"],
      p["ff_ln_g"], p["ff_ln_b"], p["w1"], p["b1"], p["w2"], p["b2"],
      p["final_ln_g"], p["final_ln_b"], p["to_logits_w"], p["to_logits_b"])
    return nll[:, 0, 0]                                  # (G,) per-step NLL sums


# ------------------------------ parameters -----------------------------------
def init_params(key):
    keys = iter(jax.random.split(key, 32))

    def nrm(shape, scale=1.0, dtype=jnp.float32):
        return (jax.random.normal(next(keys), shape, jnp.float32) * scale).astype(dtype)

    L, H, dh, D, I, M = DEPTH, HEADS, DIM_HEAD, DIM, FF_INNER, NUM_MEM_KV
    HD = H * dh

    # per-head projections packed into one lane-dense (D, 128) bf16 operand; the 1/sqrt(dh)
    # attention scale is folded into the q columns (free at init time).
    wq = nrm((L, H, dh, D), 0.02) * (dh ** -0.5)
    wk = nrm((L, H, dh, D), 0.02)
    wv = nrm((L, H, dh, D), 0.02)

    def to_cols(w):                                     # (L,H,dh,D) -> (L, D, H*dh)
        return jnp.transpose(w, (0, 3, 1, 2)).reshape(L, D, HD)

    wqkv = jnp.concatenate([to_cols(wq), to_cols(wk), to_cols(wv)], axis=-1)   # (L, D, 96)
    wqkv = jnp.pad(wqkv, ((0, 0), (0, 0), (0, QKV_PAD - 3 * HD)))              # -> (L, D, 128)

    logits_w = jnp.zeros((D, VOCAB_PAD), jnp.float32)
    logits_w = logits_w.at[:, :VOCAB].set(
        jax.random.normal(next(keys), (D, VOCAB), jnp.float32) * 0.02)
    logits_b = jnp.full((1, VOCAB_PAD), NEG_INF, jnp.float32).at[:, :VOCAB].set(0.0)

    return dict(
        # embedding tables / tokens (plain JAX glue)
        sos_token=nrm((D,)),
        token_embed=nrm((VOCAB, D)),
        quantize_level_embed=nrm((NUM_QUANTIZERS, D)),
        vertex_embed=nrm((3, D)),
        abs_pos_emb=nrm((MAX_SEQ_LEN, D)),
        # decoder weights, stacked over layers; MXU operands stored in bf16
        attn_ln_g=jnp.ones((L, 1, D), jnp.float32),
        attn_ln_b=jnp.zeros((L, 1, D), jnp.float32),
        wqkv=wqkv.astype(jnp.bfloat16),
        wo=nrm((L, HD, D), 0.02, jnp.bfloat16),
        mem_kT=nrm((L, H, dh, M), 0.02, jnp.bfloat16),   # pre-transposed: q_h @ mem_kT
        mem_v=nrm((L, H, M, dh), 0.02, jnp.bfloat16),
        ff_ln_g=jnp.ones((L, 1, D), jnp.float32),
        ff_ln_b=jnp.zeros((L, 1, D), jnp.float32),
        w1=nrm((L, D, 2 * I), 0.02, jnp.bfloat16),
        b1=jnp.zeros((L, 1, 2 * I), jnp.float32),
        w2=nrm((L, I, D), 0.02, jnp.bfloat16),
        b2=jnp.zeros((L, 1, D), jnp.float32),
        final_ln_g=jnp.ones((1, D), jnp.float32),
        final_ln_b=jnp.zeros((1, D), jnp.float32),
        to_logits_w=logits_w.astype(jnp.bfloat16),
        to_logits_b=logits_b,
    )


# ------------------------------- forward -------------------------------------
def forward_on_codes(params, codes):
    """codes: (B, S) int32 token ids (pad_id = -1). Returns scalar CE loss (as PyTorch)."""
    B, S = codes.shape
    N = S + 1

    # ---- append_eos (matches PyTorch: F.pad with value=0, then write EOS at code_lens;
    #      the appended column keeps label 0 for short sequences, exactly as the reference,
    #      and is counted as valid by ignore_index=-1) ----
    is_pad = codes == PAD_ID
    code_lens = jnp.sum(jnp.cumsum(is_pad, axis=-1) == 0, axis=-1)       # (B,)
    codes_p = jnp.pad(codes, ((0, 0), (0, 1)), constant_values=0)        # (B, S+1)
    codes_p = codes_p.at[jnp.arange(B), code_lens].set(EOS_ID)

    # ---- return_loss split ----
    codes_in, labels = codes_p[:, :-1], codes_p
    codes_in = jnp.where(codes_in == PAD_ID, 0, codes_in)

    # ---- embeddings (gathers stay in plain JAX glue) ----
    x = jnp.take(params["token_embed"], codes_in, axis=0)                # (B, S, D)
    x = x + params["abs_pos_emb"][:S][None]
    r = ceil(S / NUM_QUANTIZERS)
    level = jnp.tile(params["quantize_level_embed"], (r, 1))[:S]         # 'q d -> (r q) d'
    x = x + level[None]
    rv = ceil(S / (3 * NUM_QUANTIZERS))                                  # 'nv d -> (r nv q) d'
    vert = jnp.tile(jnp.repeat(params["vertex_embed"], NUM_QUANTIZERS, axis=0),
                    (rv, 1))[:S]
    x = x + vert[None]
    sos = jnp.broadcast_to(params["sos_token"][None, None, :], (B, 1, DIM))
    x = jnp.concatenate([sos, x], axis=1)                                # (B, N=S+1, D)

    # ---- grid layout: Bb batch rows fused per grid step (block-diagonal causal attention).
    #      Keep >= 2 parallel steps when B allows it so both v7x TensorCores get work;
    #      otherwise fold the whole batch into one step (best for single-TC v5e/v6e). ----
    G = 2 if (B % 2 == 0 and B >= 4) else 1
    Bb = B // G
    R = Bb * N
    idx = jnp.arange(R)
    same = (idx[:, None] // N) == (idx[None, :] // N)
    causal = (idx[None, :] % N) <= (idx[:, None] % N)
    attn_bias = jnp.where(same & causal, 0.0, NEG_INF).astype(jnp.float32)   # (R, R)

    # ---- fused decoder + logits + CE (single pallas_call) ----
    nll = fused_decoder_ce(x, labels, attn_bias, params, G)             # (G,) per-step sums
    n_valid = jnp.maximum(jnp.sum(labels != PAD_ID), 1).astype(jnp.float32)
    return jnp.sum(nll) / n_valid


# --------------------------------- main ---------------------------------------
if __name__ == "__main__":
    key = jax.random.PRNGKey(0)
    pkey, ckey = jax.random.split(key)
    params = init_params(pkey)

    B, S = 4, 12
    codes = jax.random.randint(ckey, (B, S), 0, CODEBOOK_SIZE, dtype=jnp.int32)
    codes = codes.at[1, 9:].set(PAD_ID)     # exercise pad / eos-insertion path
    codes = codes.at[3, 6:].set(PAD_ID)

    loss = jax.jit(forward_on_codes)(params, codes)
    jax.block_until_ready(loss)
    assert loss.shape == ()
    assert bool(jnp.isfinite(loss))
    print("KERNEL_OK")
</pallas_src>

<mosaic_0001>
module attributes {stable_mosaic.version = 11 : i64} {
  func.func @_decoder_ce_kernel(%arg0: i32, %arg1: memref<1x26x32xf32, #tpu.memory_space<vmem>>, %arg2: memref<1x26x1xi32, #tpu.memory_space<vmem>>, %arg3: memref<26x26xf32, #tpu.memory_space<vmem>>, %arg4: memref<2x1x32xf32, #tpu.memory_space<vmem>>, %arg5: memref<2x1x32xf32, #tpu.memory_space<vmem>>, %arg6: memref<2x32x128xbf16, #tpu.memory_space<vmem>>, %arg7: memref<2x32x32xbf16, #tpu.memory_space<vmem>>, %arg8: memref<2x4x8x4xbf16, #tpu.memory_space<vmem>>, %arg9: memref<2x4x4x8xbf16, #tpu.memory_space<vmem>>, %arg10: memref<2x1x32xf32, #tpu.memory_space<vmem>>, %arg11: memref<2x1x32xf32, #tpu.memory_space<vmem>>, %arg12: memref<2x32x256xbf16, #tpu.memory_space<vmem>>, %arg13: memref<2x1x256xf32, #tpu.memory_space<vmem>>, %arg14: memref<2x128x32xbf16, #tpu.memory_space<vmem>>, %arg15: memref<2x1x32xf32, #tpu.memory_space<vmem>>, %arg16: memref<1x32xf32, #tpu.memory_space<vmem>>, %arg17: memref<1x32xf32, #tpu.memory_space<vmem>>, %arg18: memref<32x128xbf16, #tpu.memory_space<vmem>>, %arg19: memref<1x128xf32, #tpu.memory_space<vmem>>, %arg20: memref<1x1x128xf32, #tpu.memory_space<vmem>>) attributes {dimension_semantics = [#tpu.dimension_semantics<parallel>], iteration_bounds = array<i64: 2>, scalar_prefetch = 0 : i64, scratch_operands = 0 : i64, tpu.core_type = #tpu.core_type<tc>, window_params = [{transform_indices = @transform_0, window_bounds = array<i64: 1, 26, 32>}, {transform_indices = @transform_1, window_bounds = array<i64: 1, 26, 1>}, {pipeline_mode = #tpu.pipeline_mode<synchronous>, transform_indices = @transform_2, window_bounds = array<i64: 26, 26>}, {pipeline_mode = #tpu.pipeline_mode<synchronous>, transform_indices = @transform_3, window_bounds = array<i64: 2, 1, 32>}, {pipeline_mode = #tpu.pipeline_mode<synchronous>, transform_indices = @transform_4, window_bounds = array<i64: 2, 1, 32>}, {pipeline_mode = #tpu.pipeline_mode<synchronous>, transform_indices = @transform_5, window_bounds = array<i64: 2, 32, 128>}, {pipeline_mode = #tpu.pipeline_mode<synchronous>, transform_indices = @transform_6, window_bounds = array<i64: 2, 32, 32>}, {pipeline_mode = #tpu.pipeline_mode<synchronous>, transform_indices = @transform_7, window_bounds = array<i64: 2, 4, 8, 4>}, {pipeline_mode = #tpu.pipeline_mode<synchronous>, transform_indices = @transform_8, window_bounds = array<i64: 2, 4, 4, 8>}, {pipeline_mode = #tpu.pipeline_mode<synchronous>, transform_indices = @transform_9, window_bounds = array<i64: 2, 1, 32>}, {pipeline_mode = #tpu.pipeline_mode<synchronous>, transform_indices = @transform_10, window_bounds = array<i64: 2, 1, 32>}, {pipeline_mode = #tpu.pipeline_mode<synchronous>, transform_indices = @transform_11, window_bounds = array<i64: 2, 32, 256>}, {pipeline_mode = #tpu.pipeline_mode<synchronous>, transform_indices = @transform_12, window_bounds = array<i64: 2, 1, 256>}, {pipeline_mode = #tpu.pipeline_mode<synchronous>, transform_indices = @transform_13, window_bounds = array<i64: 2, 128, 32>}, {pipeline_mode = #tpu.pipeline_mode<synchronous>, transform_indices = @transform_14, window_bounds = array<i64: 2, 1, 32>}, {pipeline_mode = #tpu.pipeline_mode<synchronous>, transform_indices = @transform_15, window_bounds = array<i64: 1, 32>}, {pipeline_mode = #tpu.pipeline_mode<synchronous>, transform_indices = @transform_16, window_bounds = array<i64: 1, 32>}, {pipeline_mode = #tpu.pipeline_mode<synchronous>, transform_indices = @transform_17, window_bounds = array<i64: 32, 128>}, {pipeline_mode = #tpu.pipeline_mode<synchronous>, transform_indices = @transform_18, window_bounds = array<i64: 1, 128>}, {transform_indices = @transform_19, window_bounds = array<i64: 1, 1, 128>}]} {
    %c0 = arith.constant 0 : index
    %c0_0 = arith.constant 0 : index
    %c0_1 = arith.constant 0 : index
    %0 = vector.load %arg1[%c0, %c0_0, %c0_1] : memref<1x26x32xf32, #tpu.memory_space<vmem>>, vector<1x26x32xf32>
    %1 = vector.shape_cast %0 : vector<1x26x32xf32> to vector<26x32xf32>
    %c0_2 = arith.constant 0 : index
    %c0_3 = arith.constant 0 : index
    %2 = vector.load %arg3[%c0_2, %c0_3] : memref<26x26xf32, #tpu.memory_space<vmem>>, vector<26x26xf32>
    %c0_4 = arith.constant 0 : index
    %c0_5 = arith.constant 0 : index
    %c0_6 = arith.constant 0 : index
    %3 = vector.load %arg4[%c0_4, %c0_5, %c0_6] : memref<2x1x32xf32, #tpu.memory_space<vmem>>, vector<1x1x32xf32>
    %4 = vector.shape_cast %3 : vector<1x1x32xf32> to vector<1x32xf32>
    %c0_7 = arith.constant 0 : index
    %c0_8 = arith.constant 0 : index
    %c0_9 = arith.constant 0 : index
    %5 = vector.load %arg5[%c0_7, %c0_8, %c0_9] : memref<2x1x32xf32, #tpu.memory_space<vmem>>, vector<1x1x32xf32>
    %6 = vector.shape_cast %5 : vector<1x1x32xf32> to vector<1x32xf32>
    %cst = arith.constant dense<0.000000e+00> : vector<26xf32>
    %7 = vector.multi_reduction <add>, %1, %cst [1] : vector<26x32xf32> to vector<26xf32>
    %8 = vector.shape_cast %7 : vector<26xf32> to vector<26x1xf32>
    %cst_10 = arith.constant 3.200000e+01 : f32
    %9 = vector.broadcast %cst_10 : f32 to vector<26x1xf32>
    %10 = arith.divf %8, %9 : vector<26x1xf32>
    %11 = vector.broadcast %10 : vector<26x1xf32> to vector<26x32xf32>
    %12 = arith.subf %1, %11 : vector<26x32xf32>
    %13 = arith.mulf %12, %12 : vector<26x32xf32>
    %cst_11 = arith.constant dense<0.000000e+00> : vector<26xf32>
    %14 = vector.multi_reduction <add>, %13, %cst_11 [1] : vector<26x32xf32> to vector<26xf32>
    %15 = vector.shape_cast %14 : vector<26xf32> to vector<26x1xf32>
    %cst_12 = arith.constant 3.200000e+01 : f32
    %16 = vector.broadcast %cst_12 : f32 to vector<26x1xf32>
    %17 = arith.divf %15, %16 : vector<26x1xf32>
    %18 = vector.broadcast %10 : vector<26x1xf32> to vector<26x32xf32>
    %19 = arith.subf %1, %18 : vector<26x32xf32>
    %cst_13 = arith.constant 9.99999974E-6 : f32
    %20 = vector.broadcast %cst_13 : f32 to vector<26x1xf32>
    %21 = arith.addf %17, %20 : vector<26x1xf32>
    %22 = math.rsqrt %21 : vector<26x1xf32>
    %23 = vector.broadcast %22 : vector<26x1xf32> to vector<26x32xf32>
    %24 = arith.mulf %19, %23 : vector<26x32xf32>
    %25 = vector.broadcast %4 : vector<1x32xf32> to vector<26x32xf32>
    %26 = arith.mulf %24, %25 : vector<26x32xf32>
    %27 = vector.broadcast %6 : vector<1x32xf32> to vector<26x32xf32>
    %28 = arith.addf %26, %27 : vector<26x32xf32>
    %29 = arith.truncf %28 : vector<26x32xf32> to vector<26x32xbf16>
    %c0_14 = arith.constant 0 : index
    %c0_15 = arith.constant 0 : index
    %c0_16 = arith.constant 0 : index
    %30 = vector.load %arg6[%c0_14, %c0_15, %c0_16] : memref<2x32x128xbf16, #tpu.memory_space<vmem>>, vector<1x32x128xbf16>
    %31 = vector.shape_cast %30 : vector<1x32x128xbf16> to vector<32x128xbf16>
    %cst_17 = arith.constant dense<0.000000e+00> : vector<26x128xf32>
    %32 = tpu.matmul %29, %31, %cst_17 {dimension_numbers = #tpu.dot_dimension_numbers<[1], [0], [0], [1], [0, 0, 1, 1], [], []>} : vector<26x32xbf16>, vector<32x128xbf16>, vector<26x128xf32> -> vector<26x128xf32>
    %33 = vector.extract_strided_slice %32 {offsets = [0, 0], sizes = [26, 8], strides = [1, 1]} : vector<26x128xf32> to vector<26x8xf32>
    %34 = arith.truncf %33 : vector<26x8xf32> to vector<26x8xbf16>
    %35 = vector.extract_strided_slice %32 {offsets = [0, 32], sizes = [26, 8], strides = [1, 1]} : vector<26x128xf32> to vector<26x8xf32>
    %36 = arith.truncf %35 : vector<26x8xf32> to vector<26x8xbf16>
    %37 = vector.extract_strided_slice %32 {offsets = [0, 64], sizes = [26, 8], strides = [1, 1]} : vector<26x128xf32> to vector<26x8xf32>
    %38 = arith.truncf %37 : vector<26x8xf32> to vector<26x8xbf16>
    %cst_18 = arith.constant dense<0.000000e+00> : vector<26x26xf32>
    %39 = tpu.matmul %34, %36, %cst_18 {dimension_numbers = #tpu.dot_dimension_numbers<[1], [1], [0], [0], [0, 0, 1, 0], [], []>} : vector<26x8xbf16>, vector<26x8xbf16>, vector<26x26xf32> -> vector<26x26xf32>
    %40 = arith.addf %39, %2 : vector<26x26xf32>
    %c0_19 = arith.constant 0 : index
    %c0_20 = arith.constant 0 : index
    %c0_21 = arith.constant 0 : index
    %c0_22 = arith.constant 0 : index
    %41 = vector.load %arg8[%c0_19, %c0_20, %c0_21, %c0_22] : memref<2x4x8x4xbf16, #tpu.memory_space<vmem>>, vector<1x1x8x4xbf16>
    %42 = vector.shape_cast %41 : vector<1x1x8x4xbf16> to vector<8x4xbf16>
    %cst_23 = arith.constant dense<0.000000e+00> : vector<26x4xf32>
    %43 = tpu.matmul %34, %42, %cst_23 {dimension_numbers = #tpu.dot_dimension_numbers<[1], [0], [0], [1], [0, 0, 1, 1], [], []>} : vector<26x8xbf16>, vector<8x4xbf16>, vector<26x4xf32> -> vector<26x4xf32>
    %cst_24 = arith.constant dense<0xFF800000> : vector<26xf32>
    %44 = vector.multi_reduction <maximumf>, %40, %cst_24 [1] : vector<26x26xf32> to vector<26xf32>
    %45 = vector.shape_cast %44 : vector<26xf32> to vector<26x1xf32>
    %cst_25 = arith.constant dense<0xFF800000> : vector<26xf32>
    %46 = vector.multi_reduction <maximumf>, %43, %cst_25 [1] : vector<26x4xf32> to vector<26xf32>
    %47 = vector.shape_cast %46 : vector<26xf32> to vector<26x1xf32>
    %48 = arith.maximumf %45, %47 : vector<26x1xf32>
    %49 = vector.broadcast %48 : vector<26x1xf32> to vector<26x26xf32>
    %50 = arith.subf %40, %49 : vector<26x26xf32>
    %51 = math.exp %50 : vector<26x26xf32>
    %52 = vector.broadcast %48 : vector<26x1xf32> to vector<26x4xf32>
    %53 = arith.subf %43, %52 : vector<26x4xf32>
    %54 = math.exp %53 : vector<26x4xf32>
    %cst_26 = arith.constant dense<0.000000e+00> : vector<26xf32>
    %55 = vector.multi_reduction <add>, %51, %cst_26 [1] : vector<26x26xf32> to vector<26xf32>
    %56 = vector.shape_cast %55 : vector<26xf32> to vector<26x1xf32>
    %cst_27 = arith.constant dense<0.000000e+00> : vector<26xf32>
    %57 = vector.multi_reduction <add>, %54, %cst_27 [1] : vector<26x4xf32> to vector<26xf32>
    %58 = vector.shape_cast %57 : vector<26xf32> to vector<26x1xf32>
    %59 = arith.addf %56, %58 : vector<26x1xf32>
    %60 = tpu.reciprocal %59 {approx = true} : vector<26x1xf32> -> vector<26x1xf32>
    %61 = arith.truncf %51 : vector<26x26xf32> to vector<26x26xbf16>
    %cst_28 = arith.constant dense<0.000000e+00> : vector<26x8xf32>
    %62 = tpu.matmul %61, %38, %cst_28 {dimension_numbers = #tpu.dot_dimension_numbers<[1], [0], [0], [1], [0, 0, 1, 1], [], []>} : vector<26x26xbf16>, vector<26x8xbf16>, vector<26x8xf32> -> vector<26x8xf32>
    %63 = arith.truncf %54 : vector<26x4xf32> to vector<26x4xbf16>
    %c0_29 = arith.constant 0 : index
    %c0_30 = arith.constant 0 : index
    %c0_31 = arith.constant 0 : index
    %c0_32 = arith.constant 0 : index
    %64 = vector.load %arg9[%c0_29, %c0_30, %c0_31, %c0_32] : memref<2x4x4x8xbf16, #tpu.memory_space<vmem>>, vector<1x1x4x8xbf16>
    %65 = vector.shape_cast %64 : vector<1x1x4x8xbf16> to vector<4x8xbf16>
    %cst_33 = arith.constant dense<0.000000e+00> : vector<26x8xf32>
    %66 = tpu.matmul %63, %65, %cst_33 {dimension_numbers = #tpu.dot_dimension_numbers<[1], [0], [0], [1], [0, 0, 1, 1], [], []>} : vector<26x4xbf16>, vector<4x8xbf16>, vector<26x8xf32> -> vector<26x8xf32>
    %67 = arith.addf %62, %66 : vector<26x8xf32>
    %68 = vector.broadcast %60 : vector<26x1xf32> to vector<26x8xf32>
    %69 = arith.mulf %67, %68 : vector<26x8xf32>
    %70 = vector.extract_strided_slice %32 {offsets = [0, 8], sizes = [26, 8], strides = [1, 1]} : vector<26x128xf32> to vector<26x8xf32>
    %71 = arith.truncf %70 : vector<26x8xf32> to vector<26x8xbf16>
    %72 = vector.extract_strided_slice %32 {offsets = [0, 40], sizes = [26, 8], strides = [1, 1]} : vector<26x128xf32> to vector<26x8xf32>
    %73 = arith.truncf %72 : vector<26x8xf32> to vector<26x8xbf16>
    %74 = vector.extract_strided_slice %32 {offsets = [0, 72], sizes = [26, 8], strides = [1, 1]} : vector<26x128xf32> to vector<26x8xf32>
    %75 = arith.truncf %74 : vector<26x8xf32> to vector<26x8xbf16>
    %cst_34 = arith.constant dense<0.000000e+00> : vector<26x26xf32>
    %76 = tpu.matmul %71, %73, %cst_34 {dimension_numbers = #tpu.dot_dimension_numbers<[1], [1], [0], [0], [0, 0, 1, 0], [], []>} : vector<26x8xbf16>, vector<26x8xbf16>, vector<26x26xf32> -> vector<26x26xf32>
    %77 = arith.addf %76, %2 : vector<26x26xf32>
    %c0_35 = arith.constant 0 : index
    %c1 = arith.constant 1 : index
    %c0_36 = arith.constant 0 : index
    %c0_37 = arith.constant 0 : index
    %78 = vector.load %arg8[%c0_35, %c1, %c0_36, %c0_37] : memref<2x4x8x4xbf16, #tpu.memory_space<vmem>>, vector<1x1x8x4xbf16>
    %79 = vector.shape_cast %78 : vector<1x1x8x4xbf16> to vector<8x4xbf16>
    %cst_38 = arith.constant dense<0.000000e+00> : vector<26x4xf32>
    %80 = tpu.matmul %71, %79, %cst_38 {dimension_numbers = #tpu.dot_dimension_numbers<[1], [0], [0], [1], [0, 0, 1, 1], [], []>} : vector<26x8xbf16>, vector<8x4xbf16>, vector<26x4xf32> -> vector<26x4xf32>
    %cst_39 = arith.constant dense<0xFF800000> : vector<26xf32>
    %81 = vector.multi_reduction <maximumf>, %77, %cst_39 [1] : vector<26x26xf32> to vector<26xf32>
    %82 = vector.shape_cast %81 : vector<26xf32> to vector<26x1xf32>
    %cst_40 = arith.constant dense<0xFF800000> : vector<26xf32>
    %83 = vector.multi_reduction <maximumf>, %80, %cst_40 [1] : vector<26x4xf32> to vector<26xf32>
    %84 = vector.shape_cast %83 : vector<26xf32> to vector<26x1xf32>
    %85 = arith.maximumf %82, %84 : vector<26x1xf32>
    %86 = vector.broadcast %85 : vector<26x1xf32> to vector<26x26xf32>
    %87 = arith.subf %77, %86 : vector<26x26xf32>
    %88 = math.exp %87 : vector<26x26xf32>
    %89 = vector.broadcast %85 : vector<26x1xf32> to vector<26x4xf32>
    %90 = arith.subf %80, %89 : vector<26x4xf32>
    %91 = math.exp %90 : vector<26x4xf32>
    %cst_41 = arith.constant dense<0.000000e+00> : vector<26xf32>
    %92 = vector.multi_reduction <add>, %88, %cst_41 [1] : vector<26x26xf32> to vector<26xf32>
    %93 = vector.shape_cast %92 : vector<26xf32> to vector<26x1xf32>
    %cst_42 = arith.constant dense<0.000000e+00> : vector<26xf32>
    %94 = vector.multi_reduction <add>, %91, %cst_42 [1] : vector<26x4xf32> to vector<26xf32>
    %95 = vector.shape_cast %94 : vector<26xf32> to vector<26x1xf32>
    %96 = arith.addf %93, %95 : vector<26x1xf32>
    %97 = tpu.reciprocal %96 {approx = true} : vector<26x1xf32> -> vector<26x1xf32>
    %98 = arith.truncf %88 : vector<26x26xf32> to vector<26x26xbf16>
    %cst_43 = arith.constant dense<0.000000e+00> : vector<26x8xf32>
    %99 = tpu.matmul %98, %75, %cst_43 {dimension_numbers = #tpu.dot_dimension_numbers<[1], [0], [0], [1], [0, 0, 1, 1], [], []>} : vector<26x26xbf16>, vector<26x8xbf16>, vector<26x8xf32> -> vector<26x8xf32>
    %100 = arith.truncf %91 : vector<26x4xf32> to vector<26x4xbf16>
    %c0_44 = arith.constant 0 : index
    %c1_45 = arith.constant 1 : index
    %c0_46 = arith.constant 0 : index
    %c0_47 = arith.constant 0 : index
    %101 = vector.load %arg9[%c0_44, %c1_45, %c0_46, %c0_47] : memref<2x4x4x8xbf16, #tpu.memory_space<vmem>>, vector<1x1x4x8xbf16>
    %102 = vector.shape_cast %101 : vector<1x1x4x8xbf16> to vector<4x8xbf16>
    %cst_48 = arith.constant dense<0.000000e+00> : vector<26x8xf32>
    %103 = tpu.matmul %100, %102, %cst_48 {dimension_numbers = #tpu.dot_dimension_numbers<[1], [0], [0], [1], [0, 0, 1, 1], [], []>} : vector<26x4xbf16>, vector<4x8xbf16>, vector<26x8xf32> -> vector<26x8xf32>
    %104 = arith.addf %99, %103 : vector<26x8xf32>
    %105 = vector.broadcast %97 : vector<26x1xf32> to vector<26x8xf32>
    %106 = arith.mulf %104, %105 : vector<26x8xf32>
    %107 = vector.extract_strided_slice %32 {offsets = [0, 16], sizes = [26, 8], strides = [1, 1]} : vector<26x128xf32> to vector<26x8xf32>
    %108 = arith.truncf %107 : vector<26x8xf32> to vector<26x8xbf16>
    %109 = vector.extract_strided_slice %32 {offsets = [0, 48], sizes = [26, 8], strides = [1, 1]} : vector<26x128xf32> to vector<26x8xf32>
    %110 = arith.truncf %109 : vector<26x8xf32> to vector<26x8xbf16>
    %111 = vector.extract_strided_slice %32 {offsets = [0, 80], sizes = [26, 8], strides = [1, 1]} : vector<26x128xf32> to vector<26x8xf32>
    %112 = arith.truncf %111 : vector<26x8xf32> to vector<26x8xbf16>
    %cst_49 = arith.constant dense<0.000000e+00> : vector<26x26xf32>
    %113 = tpu.matmul %108, %110, %cst_49 {dimension_numbers = #tpu.dot_dimension_numbers<[1], [1], [0], [0], [0, 0, 1, 0], [], []>} : vector<26x8xbf16>, vector<26x8xbf16>, vector<26x26xf32> -> vector<26x26xf32>
    %114 = arith.addf %113, %2 : vector<26x26xf32>
    %c0_50 = arith.constant 0 : index
    %c2 = arith.constant 2 : index
    %c0_51 = arith.constant 0 : index
    %c0_52 = arith.constant 0 : index
    %115 = vector.load %arg8[%c0_50, %c2, %c0_51, %c0_52] : memref<2x4x8x4xbf16, #tpu.memory_space<vmem>>, vector<1x1x8x4xbf16>
    %116 = vector.shape_cast %115 : vector<1x1x8x4xbf16> to vector<8x4xbf16>
    %cst_53 = arith.constant dense<0.000000e+00> : vector<26x4xf32>
    %117 = tpu.matmul %108, %116, %cst_53 {dimension_numbers = #tpu.dot_dimension_numbers<[1], [0], [0], [1], [0, 0, 1, 1], [], []>} : vector<26x8xbf16>, vector<8x4xbf16>, vector<26x4xf32> -> vector<26x4xf32>
    %cst_54 = arith.constant dense<0xFF800000> : vector<26xf32>
    %118 = vector.multi_reduction <maximumf>, %114, %cst_54 [1] : vector<26x26xf32> to vector<26xf32>
    %119 = vector.shape_cast %118 : vector<26xf32> to vector<26x1xf32>
    %cst_55 = arith.constant dense<0xFF800000> : vector<26xf32>
    %120 = vector.multi_reduction <maximumf>, %117, %cst_55 [1] : vector<26x4xf32> to vector<26xf32>
    %121 = vector.shape_cast %120 : vector<26xf32> to vector<26x1xf32>
    %122 = arith.maximumf %119, %121 : vector<26x1xf32>
    %123 = vector.broadcast %122 : vector<26x1xf32> to vector<26x26xf32>
    %124 = arith.subf %114, %123 : vector<26x26xf32>
    %125 = math.exp %124 : vector<26x26xf32>
    %126 = vector.broadcast %122 : vector<26x1xf32> to vector<26x4xf32>
    %127 = arith.subf %117, %126 : vector<26x4xf32>
    %128 = math.exp %127 : vector<26x4xf32>
    %cst_56 = arith.constant dense<0.000000e+00> : vector<26xf32>
    %129 = vector.multi_reduction <add>, %125, %cst_56 [1] : vector<26x26xf32> to vector<26xf32>
    %130 = vector.shape_cast %129 : vector<26xf32> to vector<26x1xf32>
    %cst_57 = arith.constant dense<0.000000e+00> : vector<26xf32>
    %131 = vector.multi_reduction <add>, %128, %cst_57 [1] : vector<26x4xf32> to vector<26xf32>
    %132 = vector.shape_cast %131 : vector<26xf32> to vector<26x1xf32>
    %133 = arith.addf %130, %132 : vector<26x1xf32>
    %134 = tpu.reciprocal %133 {approx = true} : vector<26x1xf32> -> vector<26x1xf32>
    %135 = arith.truncf %125 : vector<26x26xf32> to vector<26x26xbf16>
    %cst_58 = arith.constant dense<0.000000e+00> : vector<26x8xf32>
    %136 = tpu.matmul %135, %112, %cst_58 {dimension_numbers = #tpu.dot_dimension_numbers<[1], [0], [0], [1], [0, 0, 1, 1], [], []>} : vector<26x26xbf16>, vector<26x8xbf16>, vector<26x8xf32> -> vector<26x8xf32>
    %137 = arith.truncf %128 : vector<26x4xf32> to vector<26x4xbf16>
    %c0_59 = arith.constant 0 : index
    %c2_60 = arith.constant 2 : index
    %c0_61 = arith.constant 0 : index
    %c0_62 = arith.constant 0 : index
    %138 = vector.load %arg9[%c0_59, %c2_60, %c0_61, %c0_62] : memref<2x4x4x8xbf16, #tpu.memory_space<vmem>>, vector<1x1x4x8xbf16>
    %139 = vector.shape_cast %138 : vector<1x1x4x8xbf16> to vector<4x8xbf16>
    %cst_63 = arith.constant dense<0.000000e+00> : vector<26x8xf32>
    %140 = tpu.matmul %137, %139, %cst_63 {dimension_numbers = #tpu.dot_dimension_numbers<[1], [0], [0], [1], [0, 0, 1, 1], [], []>} : vector<26x4xbf16>, vector<4x8xbf16>, vector<26x8xf32> -> vector<26x8xf32>
    %141 = arith.addf %136, %140 : vector<26x8xf32>
    %142 = vector.broadcast %134 : vector<26x1xf32> to vector<26x8xf32>
    %143 = arith.mulf %141, %142 : vector<26x8xf32>
    %144 = vector.extract_strided_slice %32 {offsets = [0, 24], sizes = [26, 8], strides = [1, 1]} : vector<26x128xf32> to vector<26x8xf32>
    %145 = arith.truncf %144 : vector<26x8xf32> to vector<26x8xbf16>
    %146 = vector.extract_strided_slice %32 {offsets = [0, 56], sizes = [26, 8], strides = [1, 1]} : vector<26x128xf32> to vector<26x8xf32>
    %147 = arith.truncf %146 : vector<26x8xf32> to vector<26x8xbf16>
    %148 = vector.extract_strided_slice %32 {offsets = [0, 88], sizes = [26, 8], strides = [1, 1]} : vector<26x128xf32> to vector<26x8xf32>
    %149 = arith.truncf %148 : vector<26x8xf32> to vector<26x8xbf16>
    %cst_64 = arith.constant dense<0.000000e+00> : vector<26x26xf32>
    %150 = tpu.matmul %145, %147, %cst_64 {dimension_numbers = #tpu.dot_dimension_numbers<[1], [1], [0], [0], [0, 0, 1, 0], [], []>} : vector<26x8xbf16>, vector<26x8xbf16>, vector<26x26xf32> -> vector<26x26xf32>
    %151 = arith.addf %150, %2 : vector<26x26xf32>
    %c0_65 = arith.constant 0 : index
    %c3 = arith.constant 3 : index
    %c0_66 = arith.constant 0 : index
    %c0_67 = arith.constant 0 : index
    %152 = vector.load %arg8[%c0_65, %c3, %c0_66, %c0_67] : memref<2x4x8x4xbf16, #tpu.memory_space<vmem>>, vector<1x1x8x4xbf16>
    %153 = vector.shape_cast %152 : vector<1x1x8x4xbf16> to vector<8x4xbf16>
    %cst_68 = arith.constant dense<0.000000e+00> : vector<26x4xf32>
    %154 = tpu.matmul %145, %153, %cst_68 {dimension_numbers = #tpu.dot_dimension_numbers<[1], [0], [0], [1], [0, 0, 1, 1], [], []>} : vector<26x8xbf16>, vector<8x4xbf16>, vector<26x4xf32> -> vector<26x4xf32>
    %cst_69 = arith.constant dense<0xFF800000> : vector<26xf32>
    %155 = vector.multi_reduction <maximumf>, %151, %cst_69 [1] : vector<26x26xf32> to vector<26xf32>
    %156 = vector.shape_cast %155 : vector<26xf32> to vector<26x1xf32>
    %cst_70 = arith.constant dense<0xFF800000> : vector<26xf32>
    %157 = vector.multi_reduction <maximumf>, %154, %cst_70 [1] : vector<26x4xf32> to vector<26xf32>
    %158 = vector.shape_cast %157 : vector<26xf32> to vector<26x1xf32>
    %159 = arith.maximumf %156, %158 : vector<26x1xf32>
    %160 = vector.broadcast %159 : vector<26x1xf32> to vector<26x26xf32>
    %161 = arith.subf %151, %160 : vector<26x26xf32>
    %162 = math.exp %161 : vector<26x26xf32>
    %163 = vector.broadcast %159 : vector<26x1xf32> to vector<26x4xf32>
    %164 = arith.subf %154, %163 : vector<26x4xf32>
    %165 = math.exp %164 : vector<26x4xf32>
    %cst_71 = arith.constant dense<0.000000e+00> : vector<26xf32>
    %166 = vector.multi_reduction <add>, %162, %cst_71 [1] : vector<26x26xf32> to vector<26xf32>
    %167 = vector.shape_cast %166 : vector<26xf32> to vector<26x1xf32>
    %cst_72 = arith.constant dense<0.000000e+00> : vector<26xf32>
    %168 = vector.multi_reduction <add>, %165, %cst_72 [1] : vector<26x4xf32> to vector<26xf32>
    %169 = vector.shape_cast %168 : vector<26xf32> to vector<26x1xf32>
    %170 = arith.addf %167, %169 : vector<26x1xf32>
    %171 = tpu.reciprocal %170 {approx = true} : vector<26x1xf32> -> vector<26x1xf32>
    %172 = arith.truncf %162 : vector<26x26xf32> to vector<26x26xbf16>
    %cst_73 = arith.constant dense<0.000000e+00> : vector<26x8xf32>
    %173 = tpu.matmul %172, %149, %cst_73 {dimension_numbers = #tpu.dot_dimension_numbers<[1], [0], [0], [1], [0, 0, 1, 1], [], []>} : vector<26x26xbf16>, vector<26x8xbf16>, vector<26x8xf32> -> vector<26x8xf32>
    %174 = arith.truncf %165 : vector<26x4xf32> to vector<26x4xbf16>
    %c0_74 = arith.constant 0 : index
    %c3_75 = arith.constant 3 : index
    %c0_76 = arith.constant 0 : index
    %c0_77 = arith.constant 0 : index
    %175 = vector.load %arg9[%c0_74, %c3_75, %c0_76, %c0_77] : memref<2x4x4x8xbf16, #tpu.memory_space<vmem>>, vector<1x1x4x8xbf16>
    %176 = vector.shape_cast %175 : vector<1x1x4x8xbf16> to vector<4x8xbf16>
    %cst_78 = arith.constant dense<0.000000e+00> : vector<26x8xf32>
    %177 = tpu.matmul %174, %176, %cst_78 {dimension_numbers = #tpu.dot_dimension_numbers<[1], [0], [0], [1], [0, 0, 1, 1], [], []>} : vector<26x4xbf16>, vector<4x8xbf16>, vector<26x8xf32> -> vector<26x8xf32>
    %178 = arith.addf %173, %177 : vector<26x8xf32>
    %179 = vector.broadcast %171 : vector<26x1xf32> to vector<26x8xf32>
    %180 = arith.mulf %178, %179 : vector<26x8xf32>
    %181 = tpu.concatenate %69, %106, %143, %180 in 1 : vector<26x8xf32>, vector<26x8xf32>, vector<26x8xf32>, vector<26x8xf32> -> vector<26x32xf32>
    %182 = arith.truncf %181 : vector<26x32xf32> to vector<26x32xbf16>
    %c0_79 = arith.constant 0 : index
    %c0_80 = arith.constant 0 : index
    %c0_81 = arith.constant 0 : index
    %183 = vector.load %arg7[%c0_79, %c0_80, %c0_81] : memref<2x32x32xbf16, #tpu.memory_space<vmem>>, vector<1x32x32xbf16>
    %184 = vector.shape_cast %183 : vector<1x32x32xbf16> to vector<32x32xbf16>
    %cst_82 = arith.constant dense<0.000000e+00> : vector<26x32xf32>
    %185 = tpu.matmul %182, %184, %cst_82 {dimension_numbers = #tpu.dot_dimension_numbers<[1], [0], [0], [1], [0, 0, 1, 1], [], []>} : vector<26x32xbf16>, vector<32x32xbf16>, vector<26x32xf32> -> vector<26x32xf32>
    %186 = arith.addf %1, %185 : vector<26x32xf32>
    %c0_83 = arith.constant 0 : index
    %c0_84 = arith.constant 0 : index
    %c0_85 = arith.constant 0 : index
    %187 = vector.load %arg10[%c0_83, %c0_84, %c0_85] : memref<2x1x32xf32, #tpu.memory_space<vmem>>, vector<1x1x32xf32>
    %188 = vector.shape_cast %187 : vector<1x1x32xf32> to vector<1x32xf32>
    %c0_86 = arith.constant 0 : index
    %c0_87 = arith.constant 0 : index
    %c0_88 = arith.constant 0 : index
    %189 = vector.load %arg11[%c0_86, %c0_87, %c0_88] : memref<2x1x32xf32, #tpu.memory_space<vmem>>, vector<1x1x32xf32>
    %190 = vector.shape_cast %189 : vector<1x1x32xf32> to vector<1x32xf32>
    %cst_89 = arith.constant dense<0.000000e+00> : vector<26xf32>
    %191 = vector.multi_reduction <add>, %186, %cst_89 [1] : vector<26x32xf32> to vector<26xf32>
    %192 = vector.shape_cast %191 : vector<26xf32> to vector<26x1xf32>
    %cst_90 = arith.constant 3.200000e+01 : f32
    %193 = vector.broadcast %cst_90 : f32 to vector<26x1xf32>
    %194 = arith.divf %192, %193 : vector<26x1xf32>
    %195 = vector.broadcast %194 : vector<26x1xf32> to vector<26x32xf32>
    %196 = arith.subf %186, %195 : vector<26x32xf32>
    %197 = arith.mulf %196, %196 : vector<26x32xf32>
    %cst_91 = arith.constant dense<0.000000e+00> : vector<26xf32>
    %198 = vector.multi_reduction <add>, %197, %cst_91 [1] : vector<26x32xf32> to vector<26xf32>
    %199 = vector.shape_cast %198 : vector<26xf32> to vector<26x1xf32>
    %cst_92 = arith.constant 3.200000e+01 : f32
    %200 = vector.broadcast %cst_92 : f32 to vector<26x1xf32>
    %201 = arith.divf %199, %200 : vector<26x1xf32>
    %202 = vector.broadcast %194 : vector<26x1xf32> to vector<26x32xf32>
    %203 = arith.subf %186, %202 : vector<26x32xf32>
    %cst_93 = arith.constant 9.99999974E-6 : f32
    %204 = vector.broadcast %cst_93 : f32 to vector<26x1xf32>
    %205 = arith.addf %201, %204 : vector<26x1xf32>
    %206 = math.rsqrt %205 : vector<26x1xf32>
    %207 = vector.broadcast %206 : vector<26x1xf32> to vector<26x32xf32>
    %208 = arith.mulf %203, %207 : vector<26x32xf32>
    %209 = vector.broadcast %188 : vector<1x32xf32> to vector<26x32xf32>
    %210 = arith.mulf %208, %209 : vector<26x32xf32>
    %211 = vector.broadcast %190 : vector<1x32xf32> to vector<26x32xf32>
    %212 = arith.addf %210, %211 : vector<26x32xf32>
    %213 = arith.truncf %212 : vector<26x32xf32> to vector<26x32xbf16>
    %c0_94 = arith.constant 0 : index
    %c0_95 = arith.constant 0 : index
    %c0_96 = arith.constant 0 : index
    %214 = vector.load %arg12[%c0_94, %c0_95, %c0_96] : memref<2x32x256xbf16, #tpu.memory_space<vmem>>, vector<1x32x256xbf16>
    %215 = vector.shape_cast %214 : vector<1x32x256xbf16> to vector<32x256xbf16>
    %cst_97 = arith.constant dense<0.000000e+00> : vector<26x256xf32>
    %216 = tpu.matmul %213, %215, %cst_97 {dimension_numbers = #tpu.dot_dimension_numbers<[1], [0], [0], [1], [0, 0, 1, 1], [], []>} : vector<26x32xbf16>, vector<32x256xbf16>, vector<26x256xf32> -> vector<26x256xf32>
    %c0_98 = arith.constant 0 : index
    %c0_99 = arith.constant 0 : index
    %c0_100 = arith.constant 0 : index
    %217 = vector.load %arg13[%c0_98, %c0_99, %c0_100] : memref<2x1x256xf32, #tpu.memory_space<vmem>>, vector<1x1x256xf32>
    %218 = vector.shape_cast %217 : vector<1x1x256xf32> to vector<1x256xf32>
    %219 = vector.broadcast %218 : vector<1x256xf32> to vector<26x256xf32>
    %220 = arith.addf %216, %219 : vector<26x256xf32>
    %221 = vector.extract_strided_slice %220 {offsets = [0, 0], sizes = [26, 128], strides = [1, 1]} : vector<26x256xf32> to vector<26x128xf32>
    %222 = vector.extract_strided_slice %220 {offsets = [0, 128], sizes = [26, 128], strides = [1, 1]} : vector<26x256xf32> to vector<26x128xf32>
    %cst_101 = arith.constant 5.000000e-01 : f32
    %223 = vector.broadcast %cst_101 : f32 to vector<26x128xf32>
    %224 = arith.mulf %223, %222 : vector<26x128xf32>
    %cst_102 = arith.constant 4.471500e-02 : f32
    %225 = vector.broadcast %cst_102 : f32 to vector<26x128xf32>
    %226 = arith.mulf %225, %222 : vector<26x128xf32>
    %227 = arith.mulf %226, %222 : vector<26x128xf32>
    %228 = arith.mulf %227, %222 : vector<26x128xf32>
    %229 = arith.addf %222, %228 : vector<26x128xf32>
    %cst_103 = arith.constant 0.797884583 : f32
    %230 = vector.broadcast %cst_103 : f32 to vector<26x128xf32>
    %231 = arith.mulf %230, %229 : vector<26x128xf32>
    %232 = math.tanh %231 : vector<26x128xf32>
    %cst_104 = arith.constant 1.000000e+00 : f32
    %233 = vector.broadcast %cst_104 : f32 to vector<26x128xf32>
    %234 = arith.addf %233, %232 : vector<26x128xf32>
    %235 = arith.mulf %224, %234 : vector<26x128xf32>
    %236 = arith.mulf %221, %235 : vector<26x128xf32>
    %237 = arith.truncf %236 : vector<26x128xf32> to vector<26x128xbf16>
    %c0_105 = arith.constant 0 : index
    %c0_106 = arith.constant 0 : index
    %c0_107 = arith.constant 0 : index
    %238 = vector.load %arg14[%c0_105, %c0_106, %c0_107] : memref<2x128x32xbf16, #tpu.memory_space<vmem>>, vector<1x128x32xbf16>
    %239 = vector.shape_cast %238 : vector<1x128x32xbf16> to vector<128x32xbf16>
    %cst_108 = arith.constant dense<0.000000e+00> : vector<26x32xf32>
    %240 = tpu.matmul %237, %239, %cst_108 {dimension_numbers = #tpu.dot_dimension_numbers<[1], [0], [0], [1], [0, 0, 1, 1], [], []>} : vector<26x128xbf16>, vector<128x32xbf16>, vector<26x32xf32> -> vector<26x32xf32>
    %c0_109 = arith.constant 0 : index
    %c0_110 = arith.constant 0 : index
    %c0_111 = arith.constant 0 : index
    %241 = vector.load %arg15[%c0_109, %c0_110, %c0_111] : memref<2x1x32xf32, #tpu.memory_space<vmem>>, vector<1x1x32xf32>
    %242 = vector.shape_cast %241 : vector<1x1x32xf32> to vector<1x32xf32>
    %243 = vector.broadcast %242 : vector<1x32xf32> to vector<26x32xf32>
    %244 = arith.addf %240, %243 : vector<26x32xf32>
    %245 = arith.addf %186, %244 : vector<26x32xf32>
    %c1_112 = arith.constant 1 : index
    %c0_113 = arith.constant 0 : index
    %c0_114 = arith.constant 0 : index
    %246 = vector.load %arg4[%c1_112, %c0_113, %c0_114] : memref<2x1x32xf32, #tpu.memory_space<vmem>>, vector<1x1x32xf32>
    %247 = vector.shape_cast %246 : vector<1x1x32xf32> to vector<1x32xf32>
    %c1_115 = arith.constant 1 : index
    %c0_116 = arith.constant 0 : index
    %c0_117 = arith.constant 0 : index
    %248 = vector.load %arg5[%c1_115, %c0_116, %c0_117] : memref<2x1x32xf32, #tpu.memory_space<vmem>>, vector<1x1x32xf32>
    %249 = vector.shape_cast %248 : vector<1x1x32xf32> to vector<1x32xf32>
    %cst_118 = arith.constant dense<0.000000e+00> : vector<26xf32>
    %250 = vector.multi_reduction <add>, %245, %cst_118 [1] : vector<26x32xf32> to vector<26xf32>
    %251 = vector.shape_cast %250 : vector<26xf32> to vector<26x1xf32>
    %cst_119 = arith.constant 3.200000e+01 : f32
    %252 = vector.broadcast %cst_119 : f32 to vector<26x1xf32>
    %253 = arith.divf %251, %252 : vector<26x1xf32>
    %254 = vector.broadcast %253 : vector<26x1xf32> to vector<26x32xf32>
    %255 = arith.subf %245, %254 : vector<26x32xf32>
    %256 = arith.mulf %255, %255 : vector<26x32xf32>
    %cst_120 = arith.constant dense<0.000000e+00> : vector<26xf32>
    %257 = vector.multi_reduction <add>, %256, %cst_120 [1] : vector<26x32xf32> to vector<26xf32>
    %258 = vector.shape_cast %257 : vector<26xf32> to vector<26x1xf32>
    %cst_121 = arith.constant 3.200000e+01 : f32
    %259 = vector.broadcast %cst_121 : f32 to vector<26x1xf32>
    %260 = arith.divf %258, %259 : vector<26x1xf32>
    %261 = vector.broadcast %253 : vector<26x1xf32> to vector<26x32xf32>
    %262 = arith.subf %245, %261 : vector<26x32xf32>
    %cst_122 = arith.constant 9.99999974E-6 : f32
    %263 = vector.broadcast %cst_122 : f32 to vector<26x1xf32>
    %264 = arith.addf %260, %263 : vector<26x1xf32>
    %265 = math.rsqrt %264 : vector<26x1xf32>
    %266 = vector.broadcast %265 : vector<26x1xf32> to vector<26x32xf32>
    %267 = arith.mulf %262, %266 : vector<26x32xf32>
    %268 = vector.broadcast %247 : vector<1x32xf32> to vector<26x32xf32>
    %269 = arith.mulf %267, %268 : vector<26x32xf32>
    %270 = vector.broadcast %249 : vector<1x32xf32> to vector<26x32xf32>
    %271 = arith.addf %269, %270 : vector<26x32xf32>
    %272 = arith.truncf %271 : vector<26x32xf32> to vector<26x32xbf16>
    %c1_123 = arith.constant 1 : index
    %c0_124 = arith.constant 0 : index
    %c0_125 = arith.constant 0 : index
    %273 = vector.load %arg6[%c1_123, %c0_124, %c0_125] : memref<2x32x128xbf16, #tpu.memory_space<vmem>>, vector<1x32x128xbf16>
    %274 = vector.shape_cast %273 : vector<1x32x128xbf16> to vector<32x128xbf16>
    %cst_126 = arith.constant dense<0.000000e+00> : vector<26x128xf32>
    %275 = tpu.matmul %272, %274, %cst_126 {dimension_numbers = #tpu.dot_dimension_numbers<[1], [0], [0], [1], [0, 0, 1, 1], [], []>} : vector<26x32xbf16>, vector<32x128xbf16>, vector<26x128xf32> -> vector<26x128xf32>
    %276 = vector.extract_strided_slice %275 {offsets = [0, 0], sizes = [26, 8], strides = [1, 1]} : vector<26x128xf32> to vector<26x8xf32>
    %277 = arith.truncf %276 : vector<26x8xf32> to vector<26x8xbf16>
    %278 = vector.extract_strided_slice %275 {offsets = [0, 32], sizes = [26, 8], strides = [1, 1]} : vector<26x128xf32> to vector<26x8xf32>
    %279 = arith.truncf %278 : vector<26x8xf32> to vector<26x8xbf16>
    %280 = vector.extract_strided_slice %275 {offsets = [0, 64], sizes = [26, 8], strides = [1, 1]} : vector<26x128xf32> to vector<26x8xf32>
    %281 = arith.truncf %280 : vector<26x8xf32> to vector<26x8xbf16>
    %cst_127 = arith.constant dense<0.000000e+00> : vector<26x26xf32>
    %282 = tpu.matmul %277, %279, %cst_127 {dimension_numbers = #tpu.dot_dimension_numbers<[1], [1], [0], [0], [0, 0, 1, 0], [], []>} : vector<26x8xbf16>, vector<26x8xbf16>, vector<26x26xf32> -> vector<26x26xf32>
    %283 = arith.addf %282, %2 : vector<26x26xf32>
    %c1_128 = arith.constant 1 : index
    %c0_129 = arith.constant 0 : index
    %c0_130 = arith.constant 0 : index
    %c0_131 = arith.constant 0 : index
    %284 = vector.load %arg8[%c1_128, %c0_129, %c0_130, %c0_131] : memref<2x4x8x4xbf16, #tpu.memory_space<vmem>>, vector<1x1x8x4xbf16>
    %285 = vector.shape_cast %284 : vector<1x1x8x4xbf16> to vector<8x4xbf16>
    %cst_132 = arith.constant dense<0.000000e+00> : vector<26x4xf32>
    %286 = tpu.matmul %277, %285, %cst_132 {dimension_numbers = #tpu.dot_dimension_numbers<[1], [0], [0], [1], [0, 0, 1, 1], [], []>} : vector<26x8xbf16>, vector<8x4xbf16>, vector<26x4xf32> -> vector<26x4xf32>
    %cst_133 = arith.constant dense<0xFF800000> : vector<26xf32>
    %287 = vector.multi_reduction <maximumf>, %283, %cst_133 [1] : vector<26x26xf32> to vector<26xf32>
    %288 = vector.shape_cast %287 : vector<26xf32> to vector<26x1xf32>
    %cst_134 = arith.constant dense<0xFF800000> : vector<26xf32>
    %289 = vector.multi_reduction <maximumf>, %286, %cst_134 [1] : vector<26x4xf32> to vector<26xf32>
    %290 = vector.shape_cast %289 : vector<26xf32> to vector<26x1xf32>
    %291 = arith.maximumf %288, %290 : vector<26x1xf32>
    %292 = vector.broadcast %291 : vector<26x1xf32> to vector<26x26xf32>
    %293 = arith.subf %283, %292 : vector<26x26xf32>
    %294 = math.exp %293 : vector<26x26xf32>
    %295 = vector.broadcast %291 : vector<26x1xf32> to vector<26x4xf32>
    %296 = arith.subf %286, %295 : vector<26x4xf32>
    %297 = math.exp %296 : vector<26x4xf32>
    %cst_135 = arith.constant dense<0.000000e+00> : vector<26xf32>
    %298 = vector.multi_reduction <add>, %294, %cst_135 [1] : vector<26x26xf32> to vector<26xf32>
    %299 = vector.shape_cast %298 : vector<26xf32> to vector<26x1xf32>
    %cst_136 = arith.constant dense<0.000000e+00> : vector<26xf32>
    %300 = vector.multi_reduction <add>, %297, %cst_136 [1] : vector<26x4xf32> to vector<26xf32>
    %301 = vector.shape_cast %300 : vector<26xf32> to vector<26x1xf32>
    %302 = arith.addf %299, %301 : vector<26x1xf32>
    %303 = tpu.reciprocal %302 {approx = true} : vector<26x1xf32> -> vector<26x1xf32>
    %304 = arith.truncf %294 : vector<26x26xf32> to vector<26x26xbf16>
    %cst_137 = arith.constant dense<0.000000e+00> : vector<26x8xf32>
    %305 = tpu.matmul %304, %281, %cst_137 {dimension_numbers = #tpu.dot_dimension_numbers<[1], [0], [0], [1], [0, 0, 1, 1], [], []>} : vector<26x26xbf16>, vector<26x8xbf16>, vector<26x8xf32> -> vector<26x8xf32>
    %306 = arith.truncf %297 : vector<26x4xf32> to vector<26x4xbf16>
    %c1_138 = arith.constant 1 : index
    %c0_139 = arith.constant 0 : index
    %c0_140 = arith.constant 0 : index
    %c0_141 = arith.constant 0 : index
    %307 = vector.load %arg9[%c1_138, %c0_139, %c0_140, %c0_141] : memref<2x4x4x8xbf16, #tpu.memory_space<vmem>>, vector<1x1x4x8xbf16>
    %308 = vector.shape_cast %307 : vector<1x1x4x8xbf16> to vector<4x8xbf16>
    %cst_142 = arith.constant dense<0.000000e+00> : vector<26x8xf32>
    %309 = tpu.matmul %306, %308, %cst_142 {dimension_numbers = #tpu.dot_dimension_numbers<[1], [0], [0], [1], [0, 0, 1, 1], [], []>} : vector<26x4xbf16>, vector<4x8xbf16>, vector<26x8xf32> -> vector<26x8xf32>
    %310 = arith.addf %305, %309 : vector<26x8xf32>
    %311 = vector.broadcast %303 : vector<26x1xf32> to vector<26x8xf32>
    %312 = arith.mulf %310, %311 : vector<26x8xf32>
    %313 = vector.extract_strided_slice %275 {offsets = [0, 8], sizes = [26, 8], strides = [1, 1]} : vector<26x128xf32> to vector<26x8xf32>
    %314 = arith.truncf %313 : vector<26x8xf32> to vector<26x8xbf16>
    %315 = vector.extract_strided_slice %275 {offsets = [0, 40], sizes = [26, 8], strides = [1, 1]} : vector<26x128xf32> to vector<26x8xf32>
    %316 = arith.truncf %315 : vector<26x8xf32> to vector<26x8xbf16>
    %317 = vector.extract_strided_slice %275 {offsets = [0, 72], sizes = [26, 8], strides = [1, 1]} : vector<26x128xf32> to vector<26x8xf32>
    %318 = arith.truncf %317 : vector<26x8xf32> to vector<26x8xbf16>
    %cst_143 = arith.constant dense<0.000000e+00> : vector<26x26xf32>
    %319 = tpu.matmul %314, %316, %cst_143 {dimension_numbers = #tpu.dot_dimension_numbers<[1], [1], [0], [0], [0, 0, 1, 0], [], []>} : vector<26x8xbf16>, vector<26x8xbf16>, vector<26x26xf32> -> vector<26x26xf32>
    %320 = arith.addf %319, %2 : vector<26x26xf32>
    %c1_144 = arith.constant 1 : index
    %c1_145 = arith.constant 1 : index
    %c0_146 = arith.constant 0 : index
    %c0_147 = arith.constant 0 : index
    %321 = vector.load %arg8[%c1_144, %c1_145, %c0_146, %c0_147] : memref<2x4x8x4xbf16, #tpu.memory_space<vmem>>, vector<1x1x8x4xbf16>
    %322 = vector.shape_cast %321 : vector<1x1x8x4xbf16> to vector<8x4xbf16>
    %cst_148 = arith.constant dense<0.000000e+00> : vector<26x4xf32>
    %323 = tpu.matmul %314, %322, %cst_148 {dimension_numbers = #tpu.dot_dimension_numbers<[1], [0], [0], [1], [0, 0, 1, 1], [], []>} : vector<26x8xbf16>, vector<8x4xbf16>, vector<26x4xf32> -> vector<26x4xf32>
    %cst_149 = arith.constant dense<0xFF800000> : vector<26xf32>
    %324 = vector.multi_reduction <maximumf>, %320, %cst_149 [1] : vector<26x26xf32> to vector<26xf32>
    %325 = vector.shape_cast %324 : vector<26xf32> to vector<26x1xf32>
    %cst_150 = arith.constant dense<0xFF800000> : vector<26xf32>
    %326 = vector.multi_reduction <maximumf>, %323, %cst_150 [1] : vector<26x4xf32> to vector<26xf32>
    %327 = vector.shape_cast %326 : vector<26xf32> to vector<26x1xf32>
    %328 = arith.maximumf %325, %327 : vector<26x1xf32>
    %329 = vector.broadcast %328 : vector<26x1xf32> to vector<26x26xf32>
    %330 = arith.subf %320, %329 : vector<26x26xf32>
    %331 = math.exp %330 : vector<26x26xf32>
    %332 = vector.broadcast %328 : vector<26x1xf32> to vector<26x4xf32>
    %333 = arith.subf %323, %332 : vector<26x4xf32>
    %334 = math.exp %333 : vector<26x4xf32>
    %cst_151 = arith.constant dense<0.000000e+00> : vector<26xf32>
    %335 = vector.multi_reduction <add>, %331, %cst_151 [1] : vector<26x26xf32> to vector<26xf32>
    %336 = vector.shape_cast %335 : vector<26xf32> to vector<26x1xf32>
    %cst_152 = arith.constant dense<0.000000e+00> : vector<26xf32>
    %337 = vector.multi_reduction <add>, %334, %cst_152 [1] : vector<26x4xf32> to vector<26xf32>
    %338 = vector.shape_cast %337 : vector<26xf32> to vector<26x1xf32>
    %339 = arith.addf %336, %338 : vector<26x1xf32>
    %340 = tpu.reciprocal %339 {approx = true} : vector<26x1xf32> -> vector<26x1xf32>
    %341 = arith.truncf %331 : vector<26x26xf32> to vector<26x26xbf16>
    %cst_153 = arith.constant dense<0.000000e+00> : vector<26x8xf32>
    %342 = tpu.matmul %341, %318, %cst_153 {dimension_numbers = #tpu.dot_dimension_numbers<[1], [0], [0], [1], [0, 0, 1, 1], [], []>} : vector<26x26xbf16>, vector<26x8xbf16>, vector<26x8xf32> -> vector<26x8xf32>
    %343 = arith.truncf %334 : vector<26x4xf32> to vector<26x4xbf16>
    %c1_154 = arith.constant 1 : index
    %c1_155 = arith.constant 1 : index
    %c0_156 = arith.constant 0 : index
    %c0_157 = arith.constant 0 : index
    %344 = vector.load %arg9[%c1_154, %c1_155, %c0_156, %c0_157] : memref<2x4x4x8xbf16, #tpu.memory_space<vmem>>, vector<1x1x4x8xbf16>
    %345 = vector.shape_cast %344 : vector<1x1x4x8xbf16> to vector<4x8xbf16>
    %cst_158 = arith.constant dense<0.000000e+00> : vector<26x8xf32>
    %346 = tpu.matmul %343, %345, %cst_158 {dimension_numbers = #tpu.dot_dimension_numbers<[1], [0], [0], [1], [0, 0, 1, 1], [], []>} : vector<26x4xbf16>, vector<4x8xbf16>, vector<26x8xf32> -> vector<26x8xf32>
    %347 = arith.addf %342, %346 : vector<26x8xf32>
    %348 = vector.broadcast %340 : vector<26x1xf32> to vector<26x8xf32>
    %349 = arith.mulf %347, %348 : vector<26x8xf32>
    %350 = vector.extract_strided_slice %275 {offsets = [0, 16], sizes = [26, 8], strides = [1, 1]} : vector<26x128xf32> to vector<26x8xf32>
    %351 = arith.truncf %350 : vector<26x8xf32> to vector<26x8xbf16>
    %352 = vector.extract_strided_slice %275 {offsets = [0, 48], sizes = [26, 8], strides = [1, 1]} : vector<26x128xf32> to vector<26x8xf32>
    %353 = arith.truncf %352 : vector<26x8xf32> to vector<26x8xbf16>
    %354 = vector.extract_strided_slice %275 {offsets = [0, 80], sizes = [26, 8], strides = [1, 1]} : vector<26x128xf32> to vector<26x8xf32>
    %355 = arith.truncf %354 : vector<26x8xf32> to vector<26x8xbf16>
    %cst_159 = arith.constant dense<0.000000e+00> : vector<26x26xf32>
    %356 = tpu.matmul %351, %353, %cst_159 {dimension_numbers = #tpu.dot_dimension_numbers<[1], [1], [0], [0], [0, 0, 1, 0], [], []>} : vector<26x8xbf16>, vector<26x8xbf16>, vector<26x26xf32> -> vector<26x26xf32>
    %357 = arith.addf %356, %2 : vector<26x26xf32>
    %c1_160 = arith.constant 1 : index
    %c2_161 = arith.constant 2 : index
    %c0_162 = arith.constant 0 : index
    %c0_163 = arith.constant 0 : index
    %358 = vector.load %arg8[%c1_160, %c2_161, %c0_162, %c0_163] : memref<2x4x8x4xbf16, #tpu.memory_space<vmem>>, vector<1x1x8x4xbf16>
    %359 = vector.shape_cast %358 : vector<1x1x8x4xbf16> to vector<8x4xbf16>
    %cst_164 = arith.constant dense<0.000000e+00> : vector<26x4xf32>
    %360 = tpu.matmul %351, %359, %cst_164 {dimension_numbers = #tpu.dot_dimension_numbers<[1], [0], [0], [1], [0, 0, 1, 1], [], []>} : vector<26x8xbf16>, vector<8x4xbf16>, vector<26x4xf32> -> vector<26x4xf32>
    %cst_165 = arith.constant dense<0xFF800000> : vector<26xf32>
    %361 = vector.multi_reduction <maximumf>, %357, %cst_165 [1] : vector<26x26xf32> to vector<26xf32>
    %362 = vector.shape_cast %361 : vector<26xf32> to vector<26x1xf32>
    %cst_166 = arith.constant dense<0xFF800000> : vector<26xf32>
    %363 = vector.multi_reduction <maximumf>, %360, %cst_166 [1] : vector<26x4xf32> to vector<26xf32>
    %364 = vector.shape_cast %363 : vector<26xf32> to vector<26x1xf32>
    %365 = arith.maximumf %362, %364 : vector<26x1xf32>
    %366 = vector.broadcast %365 : vector<26x1xf32> to vector<26x26xf32>
    %367 = arith.subf %357, %366 : vector<26x26xf32>
    %368 = math.exp %367 : vector<26x26xf32>
    %369 = vector.broadcast %365 : vector<26x1xf32> to vector<26x4xf32>
    %370 = arith.subf %360, %369 : vector<26x4xf32>
    %371 = math.exp %370 : vector<26x4xf32>
    %cst_167 = arith.constant dense<0.000000e+00> : vector<26xf32>
    %372 = vector.multi_reduction <add>, %368, %cst_167 [1] : vector<26x26xf32> to vector<26xf32>
    %373 = vector.shape_cast %372 : vector<26xf32> to vector<26x1xf32>
    %cst_168 = arith.constant dense<0.000000e+00> : vector<26xf32>
    %374 = vector.multi_reduction <add>, %371, %cst_168 [1] : vector<26x4xf32> to vector<26xf32>
    %375 = vector.shape_cast %374 : vector<26xf32> to vector<26x1xf32>
    %376 = arith.addf %373, %375 : vector<26x1xf32>
    %377 = tpu.reciprocal %376 {approx = true} : vector<26x1xf32> -> vector<26x1xf32>
    %378 = arith.truncf %368 : vector<26x26xf32> to vector<26x26xbf16>
    %cst_169 = arith.constant dense<0.000000e+00> : vector<26x8xf32>
    %379 = tpu.matmul %378, %355, %cst_169 {dimension_numbers = #tpu.dot_dimension_numbers<[1], [0], [0], [1], [0, 0, 1, 1], [], []>} : vector<26x26xbf16>, vector<26x8xbf16>, vector<26x8xf32> -> vector<26x8xf32>
    %380 = arith.truncf %371 : vector<26x4xf32> to vector<26x4xbf16>
    %c1_170 = arith.constant 1 : index
    %c2_171 = arith.constant 2 : index
    %c0_172 = arith.constant 0 : index
    %c0_173 = arith.constant 0 : index
    %381 = vector.load %arg9[%c1_170, %c2_171, %c0_172, %c0_173] : memref<2x4x4x8xbf16, #tpu.memory_space<vmem>>, vector<1x1x4x8xbf16>
    %382 = vector.shape_cast %381 : vector<1x1x4x8xbf16> to vector<4x8xbf16>
    %cst_174 = arith.constant dense<0.000000e+00> : vector<26x8xf32>
    %383 = tpu.matmul %380, %382, %cst_174 {dimension_numbers = #tpu.dot_dimension_numbers<[1], [0], [0], [1], [0, 0, 1, 1], [], []>} : vector<26x4xbf16>, vector<4x8xbf16>, vector<26x8xf32> -> vector<26x8xf32>
    %384 = arith.addf %379, %383 : vector<26x8xf32>
    %385 = vector.broadcast %377 : vector<26x1xf32> to vector<26x8xf32>
    %386 = arith.mulf %384, %385 : vector<26x8xf32>
    %387 = vector.extract_strided_slice %275 {offsets = [0, 24], sizes = [26, 8], strides = [1, 1]} : vector<26x128xf32> to vector<26x8xf32>
    %388 = arith.truncf %387 : vector<26x8xf32> to vector<26x8xbf16>
    %389 = vector.extract_strided_slice %275 {offsets = [0, 56], sizes = [26, 8], strides = [1, 1]} : vector<26x128xf32> to vector<26x8xf32>
    %390 = arith.truncf %389 : vector<26x8xf32> to vector<26x8xbf16>
    %391 = vector.extract_strided_slice %275 {offsets = [0, 88], sizes = [26, 8], strides = [1, 1]} : vector<26x128xf32> to vector<26x8xf32>
    %392 = arith.truncf %391 : vector<26x8xf32> to vector<26x8xbf16>
    %cst_175 = arith.constant dense<0.000000e+00> : vector<26x26xf32>
    %393 = tpu.matmul %388, %390, %cst_175 {dimension_numbers = #tpu.dot_dimension_numbers<[1], [1], [0], [0], [0, 0, 1, 0], [], []>} : vector<26x8xbf16>, vector<26x8xbf16>, vector<26x26xf32> -> vector<26x26xf32>
    %394 = arith.addf %393, %2 : vector<26x26xf32>
    %c1_176 = arith.constant 1 : index
    %c3_177 = arith.constant 3 : index
    %c0_178 = arith.constant 0 : index
    %c0_179 = arith.constant 0 : index
    %395 = vector.load %arg8[%c1_176, %c3_177, %c0_178, %c0_179] : memref<2x4x8x4xbf16, #tpu.memory_space<vmem>>, vector<1x1x8x4xbf16>
    %396 = vector.shape_cast %395 : vector<1x1x8x4xbf16> to vector<8x4xbf16>
    %cst_180 = arith.constant dense<0.000000e+00> : vector<26x4xf32>
    %397 = tpu.matmul %388, %396, %cst_180 {dimension_numbers = #tpu.dot_dimension_numbers<[1], [0], [0], [1], [0, 0, 1, 1], [], []>} : vector<26x8xbf16>, vector<8x4xbf16>, vector<26x4xf32> -> vector<26x4xf32>
    %cst_181 = arith.constant dense<0xFF800000> : vector<26xf32>
    %398 = vector.multi_reduction <maximumf>, %394, %cst_181 [1] : vector<26x26xf32> to vector<26xf32>
    %399 = vector.shape_cast %398 : vector<26xf32> to vector<26x1xf32>
    %cst_182 = arith.constant dense<0xFF800000> : vector<26xf32>
    %400 = vector.multi_reduction <maximumf>, %397, %cst_182 [1] : vector<26x4xf32> to vector<26xf32>
    %401 = vector.shape_cast %400 : vector<26xf32> to vector<26x1xf32>
    %402 = arith.maximumf %399, %401 : vector<26x1xf32>
    %403 = vector.broadcast %402 : vector<26x1xf32> to vector<26x26xf32>
    %404 = arith.subf %394, %403 : vector<26x26xf32>
    %405 = math.exp %404 : vector<26x26xf32>
    %406 = vector.broadcast %402 : vector<26x1xf32> to vector<26x4xf32>
    %407 = arith.subf %397, %406 : vector<26x4xf32>
    %408 = math.exp %407 : vector<26x4xf32>
    %cst_183 = arith.constant dense<0.000000e+00> : vector<26xf32>
    %409 = vector.multi_reduction <add>, %405, %cst_183 [1] : vector<26x26xf32> to vector<26xf32>
    %410 = vector.shape_cast %409 : vector<26xf32> to vector<26x1xf32>
    %cst_184 = arith.constant dense<0.000000e+00> : vector<26xf32>
    %411 = vector.multi_reduction <add>, %408, %cst_184 [1] : vector<26x4xf32> to vector<26xf32>
    %412 = vector.shape_cast %411 : vector<26xf32> to vector<26x1xf32>
    %413 = arith.addf %410, %412 : vector<26x1xf32>
    %414 = tpu.reciprocal %413 {approx = true} : vector<26x1xf32> -> vector<26x1xf32>
    %415 = arith.truncf %405 : vector<26x26xf32> to vector<26x26xbf16>
    %cst_185 = arith.constant dense<0.000000e+00> : vector<26x8xf32>
    %416 = tpu.matmul %415, %392, %cst_185 {dimension_numbers = #tpu.dot_dimension_numbers<[1], [0], [0], [1], [0, 0, 1, 1], [], []>} : vector<26x26xbf16>, vector<26x8xbf16>, vector<26x8xf32> -> vector<26x8xf32>
    %417 = arith.truncf %408 : vector<26x4xf32> to vector<26x4xbf16>
    %c1_186 = arith.constant 1 : index
    %c3_187 = arith.constant 3 : index
    %c0_188 = arith.constant 0 : index
    %c0_189 = arith.constant 0 : index
    %418 = vector.load %arg9[%c1_186, %c3_187, %c0_188, %c0_189] : memref<2x4x4x8xbf16, #tpu.memory_space<vmem>>, vector<1x1x4x8xbf16>
    %419 = vector.shape_cast %418 : vector<1x1x4x8xbf16> to vector<4x8xbf16>
    %cst_190 = arith.constant dense<0.000000e+00> : vector<26x8xf32>
    %420 = tpu.matmul %417, %419, %cst_190 {dimension_numbers = #tpu.dot_dimension_numbers<[1], [0], [0], [1], [0, 0, 1, 1], [], []>} : vector<26x4xbf16>, vector<4x8xbf16>, vector<26x8xf32> -> vector<26x8xf32>
    %421 = arith.addf %416, %420 : vector<26x8xf32>
    %422 = vector.broadcast %414 : vector<26x1xf32> to vector<26x8xf32>
    %423 = arith.mulf %421, %422 : vector<26x8xf32>
    %424 = tpu.concatenate %312, %349, %386, %423 in 1 : vector<26x8xf32>, vector<26x8xf32>, vector<26x8xf32>, vector<26x8xf32> -> vector<26x32xf32>
    %425 = arith.truncf %424 : vector<26x32xf32> to vector<26x32xbf16>
    %c1_191 = arith.constant 1 : index
    %c0_192 = arith.constant 0 : index
    %c0_193 = arith.constant 0 : index
    %426 = vector.load %arg7[%c1_191, %c0_192, %c0_193] : memref<2x32x32xbf16, #tpu.memory_space<vmem>>, vector<1x32x32xbf16>
    %427 = vector.shape_cast %426 : vector<1x32x32xbf16> to vector<32x32xbf16>
    %cst_194 = arith.constant dense<0.000000e+00> : vector<26x32xf32>
    %428 = tpu.matmul %425, %427, %cst_194 {dimension_numbers = #tpu.dot_dimension_numbers<[1], [0], [0], [1], [0, 0, 1, 1], [], []>} : vector<26x32xbf16>, vector<32x32xbf16>, vector<26x32xf32> -> vector<26x32xf32>
    %429 = arith.addf %245, %428 : vector<26x32xf32>
    %c1_195 = arith.constant 1 : index
    %c0_196 = arith.constant 0 : index
    %c0_197 = arith.constant 0 : index
    %430 = vector.load %arg10[%c1_195, %c0_196, %c0_197] : memref<2x1x32xf32, #tpu.memory_space<vmem>>, vector<1x1x32xf32>
    %431 = vector.shape_cast %430 : vector<1x1x32xf32> to vector<1x32xf32>
    %c1_198 = arith.constant 1 : index
    %c0_199 = arith.constant 0 : index
    %c0_200 = arith.constant 0 : index
    %432 = vector.load %arg11[%c1_198, %c0_199, %c0_200] : memref<2x1x32xf32, #tpu.memory_space<vmem>>, vector<1x1x32xf32>
    %433 = vector.shape_cast %432 : vector<1x1x32xf32> to vector<1x32xf32>
    %cst_201 = arith.constant dense<0.000000e+00> : vector<26xf32>
    %434 = vector.multi_reduction <add>, %429, %cst_201 [1] : vector<26x32xf32> to vector<26xf32>
    %435 = vector.shape_cast %434 : vector<26xf32> to vector<26x1xf32>
    %cst_202 = arith.constant 3.200000e+01 : f32
    %436 = vector.broadcast %cst_202 : f32 to vector<26x1xf32>
    %437 = arith.divf %435, %436 : vector<26x1xf32>
    %438 = vector.broadcast %437 : vector<26x1xf32> to vector<26x32xf32>
    %439 = arith.subf %429, %438 : vector<26x32xf32>
    %440 = arith.mulf %439, %439 : vector<26x32xf32>
    %cst_203 = arith.constant dense<0.000000e+00> : vector<26xf32>
    %441 = vector.multi_reduction <add>, %440, %cst_203 [1] : vector<26x32xf32> to vector<26xf32>
    %442 = vector.shape_cast %441 : vector<26xf32> to vector<26x1xf32>
    %cst_204 = arith.constant 3.200000e+01 : f32
    %443 = vector.broadcast %cst_204 : f32 to vector<26x1xf32>
    %444 = arith.divf %442, %443 : vector<26x1xf32>
    %445 = vector.broadcast %437 : vector<26x1xf32> to vector<26x32xf32>
    %446 = arith.subf %429, %445 : vector<26x32xf32>
    %cst_205 = arith.constant 9.99999974E-6 : f32
    %447 = vector.broadcast %cst_205 : f32 to vector<26x1xf32>
    %448 = arith.addf %444, %447 : vector<26x1xf32>
    %449 = math.rsqrt %448 : vector<26x1xf32>
    %450 = vector.broadcast %449 : vector<26x1xf32> to vector<26x32xf32>
    %451 = arith.mulf %446, %450 : vector<26x32xf32>
    %452 = vector.broadcast %431 : vector<1x32xf32> to vector<26x32xf32>
    %453 = arith.mulf %451, %452 : vector<26x32xf32>
    %454 = vector.broadcast %433 : vector<1x32xf32> to vector<26x32xf32>
    %455 = arith.addf %453, %454 : vector<26x32xf32>
    %456 = arith.truncf %455 : vector<26x32xf32> to vector<26x32xbf16>
    %c1_206 = arith.constant 1 : index
    %c0_207 = arith.constant 0 : index
    %c0_208 = arith.constant 0 : index
    %457 = vector.load %arg12[%c1_206, %c0_207, %c0_208] : memref<2x32x256xbf16, #tpu.memory_space<vmem>>, vector<1x32x256xbf16>
    %458 = vector.shape_cast %457 : vector<1x32x256xbf16> to vector<32x256xbf16>
    %cst_209 = arith.constant dense<0.000000e+00> : vector<26x256xf32>
    %459 = tpu.matmul %456, %458, %cst_209 {dimension_numbers = #tpu.dot_dimension_numbers<[1], [0], [0], [1], [0, 0, 1, 1], [], []>} : vector<26x32xbf16>, vector<32x256xbf16>, vector<26x256xf32> -> vector<26x256xf32>
    %c1_210 = arith.constant 1 : index
    %c0_211 = arith.constant 0 : index
    %c0_212 = arith.constant 0 : index
    %460 = vector.load %arg13[%c1_210, %c0_211, %c0_212] : memref<2x1x256xf32, #tpu.memory_space<vmem>>, vector<1x1x256xf32>
    %461 = vector.shape_cast %460 : vector<1x1x256xf32> to vector<1x256xf32>
    %462 = vector.broadcast %461 : vector<1x256xf32> to vector<26x256xf32>
    %463 = arith.addf %459, %462 : vector<26x256xf32>
    %464 = vector.extract_strided_slice %463 {offsets = [0, 0], sizes = [26, 128], strides = [1, 1]} : vector<26x256xf32> to vector<26x128xf32>
    %465 = vector.extract_strided_slice %463 {offsets = [0, 128], sizes = [26, 128], strides = [1, 1]} : vector<26x256xf32> to vector<26x128xf32>
    %cst_213 = arith.constant 5.000000e-01 : f32
    %466 = vector.broadcast %cst_213 : f32 to vector<26x128xf32>
    %467 = arith.mulf %466, %465 : vector<26x128xf32>
    %cst_214 = arith.constant 4.471500e-02 : f32
    %468 = vector.broadcast %cst_214 : f32 to vector<26x128xf32>
    %469 = arith.mulf %468, %465 : vector<26x128xf32>
    %470 = arith.mulf %469, %465 : vector<26x128xf32>
    %471 = arith.mulf %470, %465 : vector<26x128xf32>
    %472 = arith.addf %465, %471 : vector<26x128xf32>
    %cst_215 = arith.constant 0.797884583 : f32
    %473 = vector.broadcast %cst_215 : f32 to vector<26x128xf32>
    %474 = arith.mulf %473, %472 : vector<26x128xf32>
    %475 = math.tanh %474 : vector<26x128xf32>
    %cst_216 = arith.constant 1.000000e+00 : f32
    %476 = vector.broadcast %cst_216 : f32 to vector<26x128xf32>
    %477 = arith.addf %476, %475 : vector<26x128xf32>
    %478 = arith.mulf %467, %477 : vector<26x128xf32>
    %479 = arith.mulf %464, %478 : vector<26x128xf32>
    %480 = arith.truncf %479 : vector<26x128xf32> to vector<26x128xbf16>
    %c1_217 = arith.constant 1 : index
    %c0_218 = arith.constant 0 : index
    %c0_219 = arith.constant 0 : index
    %481 = vector.load %arg14[%c1_217, %c0_218, %c0_219] : memref<2x128x32xbf16, #tpu.memory_space<vmem>>, vector<1x128x32xbf16>
    %482 = vector.shape_cast %481 : vector<1x128x32xbf16> to vector<128x32xbf16>
    %cst_220 = arith.constant dense<0.000000e+00> : vector<26x32xf32>
    %483 = tpu.matmul %480, %482, %cst_220 {dimension_numbers = #tpu.dot_dimension_numbers<[1], [0], [0], [1], [0, 0, 1, 1], [], []>} : vector<26x128xbf16>, vector<128x32xbf16>, vector<26x32xf32> -> vector<26x32xf32>
    %c1_221 = arith.constant 1 : index
    %c0_222 = arith.constant 0 : index
    %c0_223 = arith.constant 0 : index
    %484 = vector.load %arg15[%c1_221, %c0_222, %c0_223] : memref<2x1x32xf32, #tpu.memory_space<vmem>>, vector<1x1x32xf32>
    %485 = vector.shape_cast %484 : vector<1x1x32xf32> to vector<1x32xf32>
    %486 = vector.broadcast %485 : vector<1x32xf32> to vector<26x32xf32>
    %487 = arith.addf %483, %486 : vector<26x32xf32>
    %488 = arith.addf %429, %487 : vector<26x32xf32>
    %c0_224 = arith.constant 0 : index
    %c0_225 = arith.constant 0 : index
    %489 = vector.load %arg16[%c0_224, %c0_225] : memref<1x32xf32, #tpu.memory_space<vmem>>, vector<1x32xf32>
    %c0_226 = arith.constant 0 : index
    %c0_227 = arith.constant 0 : index
    %490 = vector.load %arg17[%c0_226, %c0_227] : memref<1x32xf32, #tpu.memory_space<vmem>>, vector<1x32xf32>
    %cst_228 = arith.constant dense<0.000000e+00> : vector<26xf32>
    %491 = vector.multi_reduction <add>, %488, %cst_228 [1] : vector<26x32xf32> to vector<26xf32>
    %492 = vector.shape_cast %491 : vector<26xf32> to vector<26x1xf32>
    %cst_229 = arith.constant 3.200000e+01 : f32
    %493 = vector.broadcast %cst_229 : f32 to vector<26x1xf32>
    %494 = arith.divf %492, %493 : vector<26x1xf32>
    %495 = vector.broadcast %494 : vector<26x1xf32> to vector<26x32xf32>
    %496 = arith.subf %488, %495 : vector<26x32xf32>
    %497 = arith.mulf %496, %496 : vector<26x32xf32>
    %cst_230 = arith.constant dense<0.000000e+00> : vector<26xf32>
    %498 = vector.multi_reduction <add>, %497, %cst_230 [1] : vector<26x32xf32> to vector<26xf32>
    %499 = vector.shape_cast %498 : vector<26xf32> to vector<26x1xf32>
    %cst_231 = arith.constant 3.200000e+01 : f32
    %500 = vector.broadcast %cst_231 : f32 to vector<26x1xf32>
    %501 = arith.divf %499, %500 : vector<26x1xf32>
    %502 = vector.broadcast %494 : vector<26x1xf32> to vector<26x32xf32>
    %503 = arith.subf %488, %502 : vector<26x32xf32>
    %cst_232 = arith.constant 9.99999974E-6 : f32
    %504 = vector.broadcast %cst_232 : f32 to vector<26x1xf32>
    %505 = arith.addf %501, %504 : vector<26x1xf32>
    %506 = math.rsqrt %505 : vector<26x1xf32>
    %507 = vector.broadcast %506 : vector<26x1xf32> to vector<26x32xf32>
    %508 = arith.mulf %503, %507 : vector<26x32xf32>
    %509 = vector.broadcast %489 : vector<1x32xf32> to vector<26x32xf32>
    %510 = arith.mulf %508, %509 : vector<26x32xf32>
    %511 = vector.broadcast %490 : vector<1x32xf32> to vector<26x32xf32>
    %512 = arith.addf %510, %511 : vector<26x32xf32>
    %513 = arith.truncf %512 : vector<26x32xf32> to vector<26x32xbf16>
    %c0_233 = arith.constant 0 : index
    %c0_234 = arith.constant 0 : index
    %514 = vector.load %arg18[%c0_233, %c0_234] : memref<32x128xbf16, #tpu.memory_space<vmem>>, vector<32x128xbf16>
    %cst_235 = arith.constant dense<0.000000e+00> : vector<26x128xf32>
    %515 = tpu.matmul %513, %514, %cst_235 {dimension_numbers = #tpu.dot_dimension_numbers<[1], [0], [0], [1], [0, 0, 1, 1], [], []>} : vector<26x32xbf16>, vector<32x128xbf16>, vector<26x128xf32> -> vector<26x128xf32>
    %c0_236 = arith.constant 0 : index
    %c0_237 = arith.constant 0 : index
    %516 = vector.load %arg19[%c0_236, %c0_237] : memref<1x128xf32, #tpu.memory_space<vmem>>, vector<1x128xf32>
    %517 = vector.broadcast %516 : vector<1x128xf32> to vector<26x128xf32>
    %518 = arith.addf %515, %517 : vector<26x128xf32>
    %cst_238 = arith.constant dense<0xFF800000> : vector<26xf32>
    %519 = vector.multi_reduction <maximumf>, %518, %cst_238 [1] : vector<26x128xf32> to vector<26xf32>
    %520 = vector.shape_cast %519 : vector<26xf32> to vector<26x1xf32>
    %521 = vector.broadcast %520 : vector<26x1xf32> to vector<26x128xf32>
    %522 = arith.subf %518, %521 : vector<26x128xf32>
    %523 = math.exp %522 : vector<26x128xf32>
    %cst_239 = arith.constant dense<0.000000e+00> : vector<26xf32>
    %524 = vector.multi_reduction <add>, %523, %cst_239 [1] : vector<26x128xf32> to vector<26xf32>
    %525 = vector.shape_cast %524 : vector<26xf32> to vector<26x1xf32>
    %526 = math.log %525 : vector<26x1xf32>
    %527 = arith.addf %520, %526 : vector<26x1xf32>
    %c0_240 = arith.constant 0 : index
    %c0_241 = arith.constant 0 : index
    %c0_242 = arith.constant 0 : index
    %528 = vector.load %arg2[%c0_240, %c0_241, %c0_242] : memref<1x26x1xi32, #tpu.memory_space<vmem>>, vector<1x26x1xi32>
    %529 = vector.shape_cast %528 : vector<1x26x1xi32> to vector<26x1xi32>
    %530 = tpu.iota {dimensions = array<i32: 1>} : vector<26x128xi32>
    %531 = vector.broadcast %529 : vector<26x1xi32> to vector<26x128xi32>
    %532 = arith.cmpi eq, %530, %531 : vector<26x128xi32>
    %cst_243 = arith.constant 0.000000e+00 : f32
    %533 = vector.broadcast %cst_243 : f32 to vector<26x128xf32>
    %534 = arith.select %532, %518, %533 : vector<26x128xi1>, vector<26x128xf32>
    %cst_244 = arith.constant dense<0.000000e+00> : vector<26xf32>
    %535 = vector.multi_reduction <add>, %534, %cst_244 [1] : vector<26x128xf32> to vector<26xf32>
    %536 = vector.shape_cast %535 : vector<26xf32> to vector<26x1xf32>
    %c0_i32 = arith.constant 0 : i32
    %537 = vector.broadcast %c0_i32 : i32 to vector<26x1xi32>
    %538 = arith.cmpi sge, %529, %537 : vector<26x1xi32>
    %539 = arith.extui %538 : vector<26x1xi1> to vector<26x1xi32>
    %540 = arith.sitofp %539 : vector<26x1xi32> to vector<26x1xf32>
    %541 = arith.subf %527, %536 : vector<26x1xf32>
    %542 = arith.mulf %541, %540 : vector<26x1xf32>
    %cst_245 = arith.constant dense<0.000000e+00> : vector<1xf32>
    %543 = vector.multi_reduction <add>, %542, %cst_245 [0] : vector<26x1xf32> to vector<1xf32>
    %544 = vector.shape_cast %543 : vector<1xf32> to vector<1x1xf32>
    %545 = vector.shape_cast %544 : vector<1x1xf32> to vector<1x1xf32>
    %546 = vector.broadcast %545 : vector<1x1xf32> to vector<1x128xf32>
    %c0_246 = arith.constant 0 : index
    %c0_247 = arith.constant 0 : index
    %c0_248 = arith.constant 0 : index
    %547 = vector.load %arg20[%c0_246, %c0_247, %c0_248] : memref<1x1x128xf32, #tpu.memory_space<vmem>>, vector<1x1x128xf32>
    %548 = vector.shape_cast %547 : vector<1x1x128xf32> to vector<1x128xf32>
    %549 = vector.shape_cast %546 : vector<1x128xf32> to vector<1x1x128xf32>
    tpu.vector_store %arg20[%c0_246, %c0_247, %c0_248], %549 {strides = array<i32>} : memref<1x1x128xf32, #tpu.memory_space<vmem>>, vector<1x1x128xf32>,
    return
  }
  func.func @transform_0(%arg0: i32) -> (i32, i32, i32) {
    %c0_i32 = arith.constant 0 : i32
    %c0_i32_0 = arith.constant 0 : i32
    %c0_i32_1 = arith.constant 0 : i32
    return %arg0, %c0_i32, %c0_i32_0 : i32, i32, i32
  }
  func.func @transform_1(%arg0: i32) -> (i32, i32, i32) {
    %c0_i32 = arith.constant 0 : i32
    %c0_i32_0 = arith.constant 0 : i32
    %c0_i32_1 = arith.constant 0 : i32
    return %arg0, %c0_i32, %c0_i32_0 : i32, i32, i32
  }
  func.func @transform_2(%arg0: i32) -> (i32, i32) {
    %c0_i32 = arith.constant 0 : i32
    %c0_i32_0 = arith.constant 0 : i32
    %c0_i32_1 = arith.constant 0 : i32
    return %c0_i32, %c0_i32_0 : i32, i32
  }
  func.func @transform_3(%arg0: i32) -> (i32, i32, i32) {
    %c0_i32 = arith.constant 0 : i32
    %c0_i32_0 = arith.constant 0 : i32
    %c0_i32_1 = arith.constant 0 : i32
    %c0_i32_2 = arith.constant 0 : i32
    return %c0_i32, %c0_i32_0, %c0_i32_1 : i32, i32, i32
  }
  func.func @transform_4(%arg0: i32) -> (i32, i32, i32) {
    %c0_i32 = arith.constant 0 : i32
    %c0_i32_0 = arith.constant 0 : i32
    %c0_i32_1 = arith.constant 0 : i32
    %c0_i32_2 = arith.constant 0 : i32
    return %c0_i32, %c0_i32_0, %c0_i32_1 : i32, i32, i32
  }
  func.func @transform_5(%arg0: i32) -> (i32, i32, i32) {
    %c0_i32 = arith.constant 0 : i32
    %c0_i32_0 = arith.constant 0 : i32
    %c0_i32_1 = arith.constant 0 : i32
    %c0_i32_2 = arith.constant 0 : i32
    return %c0_i32, %c0_i32_0, %c0_i32_1 : i32, i32, i32
  }
  func.func @transform_6(%arg0: i32) -> (i32, i32, i32) {
    %c0_i32 = arith.constant 0 : i32
    %c0_i32_0 = arith.constant 0 : i32
    %c0_i32_1 = arith.constant 0 : i32
    %c0_i32_2 = arith.constant 0 : i32
    return %c0_i32, %c0_i32_0, %c0_i32_1 : i32, i32, i32
  }
  func.func @transform_7(%arg0: i32) -> (i32, i32, i32, i32) {
    %c0_i32 = arith.constant 0 : i32
    %c0_i32_0 = arith.constant 0 : i32
    %c0_i32_1 = arith.constant 0 : i32
    %c0_i32_2 = arith.constant 0 : i32
    %c0_i32_3 = arith.constant 0 : i32
    return %c0_i32, %c0_i32_0, %c0_i32_1, %c0_i32_2 : i32, i32, i32, i32
  }
  func.func @transform_8(%arg0: i32) -> (i32, i32, i32, i32) {
    %c0_i32 = arith.constant 0 : i32
    %c0_i32_0 = arith.constant 0 : i32
    %c0_i32_1 = arith.constant 0 : i32
    %c0_i32_2 = arith.constant 0 : i32
    %c0_i32_3 = arith.constant 0 : i32
    return %c0_i32, %c0_i32_0, %c0_i32_1, %c0_i32_2 : i32, i32, i32, i32
  }
  func.func @transform_9(%arg0: i32) -> (i32, i32, i32) {
    %c0_i32 = arith.constant 0 : i32
    %c0_i32_0 = arith.constant 0 : i32
    %c0_i32_1 = arith.constant 0 : i32
    %c0_i32_2 = arith.constant 0 : i32
    return %c0_i32, %c0_i32_0, %c0_i32_1 : i32, i32, i32
  }
  func.func @transform_10(%arg0: i32) -> (i32, i32, i32) {
    %c0_i32 = arith.constant 0 : i32
    %c0_i32_0 = arith.constant 0 : i32
    %c0_i32_1 = arith.constant 0 : i32
    %c0_i32_2 = arith.constant 0 : i32
    return %c0_i32, %c0_i32_0, %c0_i32_1 : i32, i32, i32
  }
  func.func @transform_11(%arg0: i32) -> (i32, i32, i32) {
    %c0_i32 = arith.constant 0 : i32
    %c0_i32_0 = arith.constant 0 : i32
    %c0_i32_1 = arith.constant 0 : i32
    %c0_i32_2 = arith.constant 0 : i32
    return %c0_i32, %c0_i32_0, %c0_i32_1 : i32, i32, i32
  }
  func.func @transform_12(%arg0: i32) -> (i32, i32, i32) {
    %c0_i32 = arith.constant 0 : i32
    %c0_i32_0 = arith.constant 0 : i32
    %c0_i32_1 = arith.constant 0 : i32
    %c0_i32_2 = arith.constant 0 : i32
    return %c0_i32, %c0_i32_0, %c0_i32_1 : i32, i32, i32
  }
  func.func @transform_13(%arg0: i32) -> (i32, i32, i32) {
    %c0_i32 = arith.constant 0 : i32
    %c0_i32_0 = arith.constant 0 : i32
    %c0_i32_1 = arith.constant 0 : i32
    %c0_i32_2 = arith.constant 0 : i32
    return %c0_i32, %c0_i32_0, %c0_i32_1 : i32, i32, i32
  }
  func.func @transform_14(%arg0: i32) -> (i32, i32, i32) {
    %c0_i32 = arith.constant 0 : i32
    %c0_i32_0 = arith.constant 0 : i32
    %c0_i32_1 = arith.constant 0 : i32
    %c0_i32_2 = arith.constant 0 : i32
    return %c0_i32, %c0_i32_0, %c0_i32_1 : i32, i32, i32
  }
  func.func @transform_15(%arg0: i32) -> (i32, i32) {
    %c0_i32 = arith.constant 0 : i32
    %c0_i32_0 = arith.constant 0 : i32
    %c0_i32_1 = arith.constant 0 : i32
    return %c0_i32, %c0_i32_0 : i32, i32
  }
  func.func @transform_16(%arg0: i32) -> (i32, i32) {
    %c0_i32 = arith.constant 0 : i32
    %c0_i32_0 = arith.constant 0 : i32
    %c0_i32_1 = arith.constant 0 : i32
    return %c0_i32, %c0_i32_0 : i32, i32
  }
  func.func @transform_17(%arg0: i32) -> (i32, i32) {
    %c0_i32 = arith.constant 0 : i32
    %c0_i32_0 = arith.constant 0 : i32
    %c0_i32_1 = arith.constant 0 : i32
    return %c0_i32, %c0_i32_0 : i32, i32
  }
  func.func @transform_18(%arg0: i32) -> (i32, i32) {
    %c0_i32 = arith.constant 0 : i32
    %c0_i32_0 = arith.constant 0 : i32
    %c0_i32_1 = arith.constant 0 : i32
    return %c0_i32, %c0_i32_0 : i32, i32
  }
  func.func @transform_19(%arg0: i32) -> (i32, i32, i32) {
    %c0_i32 = arith.constant 0 : i32
    %c0_i32_0 = arith.constant 0 : i32
    %c0_i32_1 = arith.constant 0 : i32
    return %arg0, %c0_i32, %c0_i32_0 : i32, i32, i32
  }
}

</mosaic_0001>

<llo_original>
// kernel: forward_on_codes.1
$region0: #{forward_on_codes.1}
  #allocation0 [shape = 'u32[]', space=smem, size = 0x4, offset = 0x4, fixed_abs, tag = 'smem constant byte address 0x4 - core index']
  #allocation1 [shape = 'u32[144,128]{1,0:T(1,128)}', space=vmem, size = 0x12000, scoped, tag = 'internal scratch']
  %s0 = inlined_call_operand.vmem [shape: f32[2,26,32], index: 0, kind: input, shape index: {}]
  %s1 = inlined_call_operand.vmem [shape: s32[2,26,1], index: 1, kind: input, shape index: {}]
  %s2 = inlined_call_operand.vmem [shape: f32[26,26], index: 2, kind: input, shape index: {}]
  %s3 = inlined_call_operand.vmem [shape: f32[2,1,32], index: 3, kind: input, shape index: {}]
  %s4 = inlined_call_operand.vmem [shape: f32[2,1,32], index: 4, kind: input, shape index: {}]
  %s5 = inlined_call_operand.vmem [shape: bf16[2,32,128], index: 5, kind: input, shape index: {}]
  %s6 = inlined_call_operand.vmem [shape: bf16[2,32,32], index: 6, kind: input, shape index: {}]
  %s7 = inlined_call_operand.vmem [shape: bf16[2,4,8,4], index: 7, kind: input, shape index: {}]
  %s8 = inlined_call_operand.vmem [shape: bf16[2,4,4,8], index: 8, kind: input, shape index: {}]
  %s9 = inlined_call_operand.vmem [shape: f32[2,1,32], index: 9, kind: input, shape index: {}]
  %s10 = inlined_call_operand.vmem [shape: f32[2,1,32], index: 10, kind: input, shape index: {}]
  %s11 = inlined_call_operand.vmem [shape: bf16[2,32,256], index: 11, kind: input, shape index: {}]
  %s12 = inlined_call_operand.vmem [shape: f32[2,1,256], index: 12, kind: input, shape index: {}]
  %s13 = inlined_call_operand.vmem [shape: bf16[2,128,32], index: 13, kind: input, shape index: {}]
  %s14 = inlined_call_operand.vmem [shape: f32[2,1,32], index: 14, kind: input, shape index: {}]
  %s15 = inlined_call_operand.vmem [shape: f32[1,32], index: 15, kind: input, shape index: {}]
  %s16 = inlined_call_operand.vmem [shape: f32[1,32], index: 16, kind: input, shape index: {}]
  %s17 = inlined_call_operand.vmem [shape: bf16[32,128], index: 17, kind: input, shape index: {}]
  %s18 = inlined_call_operand.vmem [shape: f32[1,128], index: 18, kind: input, shape index: {}]
  %s19 = inlined_call_operand.vmem [shape: f32[2,1,128], index: 19, kind: output, shape index: {}]
  %s20 = sld [smem:[#allocation0]]
  $region109: #{forward_on_codes.1} parent=0
    _
  %s22 = ssub.s32 1, %s20
  %s23 = scalar_select 0, %s22, %s20
  loop: start=0, step=1, limit=4
  $region2: #{forward_on_codes.1} parent=0 // loop_pre_header
    _
  $region3: #{forward_on_codes.1} parent=0 // loop_header
    %s25 = sphi 0, %s29
    %p26 = scmp.ge.s32.totalorder %s25, 4
    %s35 = sphi 0, %s37
    %s38 = sphi 0, %s35
    %s39 = sphi 0, %s38
    %s55 = sphi 0, %s39
    %s61 = sphi 0, %s63
    %s64 = sphi 0, %s61
    %s65 = sphi 0, %s64
    %s81 = sphi 0, %s65
    %s85 = sphi 0, %s85
    %s87 = sphi 0, %s85
    %s88 = sphi 0, %s87
    %s102 = sphi 0, %s88
    %s106 = sphi 0, %s106
    %s108 = sphi 0, %s106
    %s109 = sphi 0, %s108
    %s123 = sphi 0, %s109
    %s127 = sphi 0, %s127
    %s129 = sphi 0, %s127
    %s130 = sphi 0, %s129
    %s144 = sphi 0, %s130
    %s148 = sphi 0, %s148
    %s150 = sphi 0, %s148
    %s151 = sphi 0, %s150
    %s165 = sphi 0, %s151
    %s169 = sphi 0, %s169
    %s171 = sphi 0, %s169
    %s172 = sphi 0, %s171
    %s186 = sphi 0, %s172
    %s190 = sphi 0, %s190
    %s192 = sphi 0, %s190
    %s193 = sphi 0, %s192
    %s207 = sphi 0, %s193
    %s211 = sphi 0, %s211
    %s213 = sphi 0, %s211
    %s214 = sphi 0, %s213
    %s228 = sphi 0, %s214
    %s232 = sphi 0, %s232
    %s234 = sphi 0, %s232
    %s235 = sphi 0, %s234
    %s249 = sphi 0, %s235
    %s253 = sphi 0, %s253
    %s255 = sphi 0, %s253
    %s256 = sphi 0, %s255
    %s270 = sphi 0, %s256
    %s274 = sphi 0, %s274
    %s276 = sphi 0, %s274
    %s277 = sphi 0, %s276
    %s291 = sphi 0, %s277
    %s295 = sphi 0, %s295
    %s297 = sphi 0, %s295
    %s298 = sphi 0, %s297
    %s312 = sphi 0, %s298
    %s316 = sphi 0, %s316
    %s318 = sphi 0, %s316
    %s319 = sphi 0, %s318
    %s333 = sphi 0, %s319
    %s337 = sphi 0, %s337
    %s339 = sphi 0, %s337
    %s340 = sphi 0, %s339
    %s354 = sphi 0, %s340
    %s358 = sphi 0, %s358
    %s360 = sphi 0, %s358
    %s361 = sphi 0, %s360
    %s375 = sphi 0, %s361
    %s379 = sphi 0, %s379
    %s381 = sphi 0, %s379
    %s382 = sphi 0, %s381
    %s396 = sphi 0, %s382
    %s400 = sphi 0, %s400
    %s402 = sphi 0, %s400
    %s403 = sphi 0, %s402
    %s417 = sphi 0, %s403
    %s421 = sphi 0, %s421
    %s423 = sphi 0, %s421
    %s424 = sphi 0, %s423
    %s438 = sphi 0, %s424
    %s444 = sphi 0, %s446
    %s447 = sphi 0, %s444
    %s448 = sphi 0, %s447
    %s464 = sphi 0, %s448
  $region4: #{forward_on_codes.1} parent=0 // loop_header_branch
    %28 = sbr.rel (%p26) target = $region8
  $region5: #{forward_on_codes.1} parent=0 // loop_body
    %s30 = ssub.s32 %s25, 1
    %s31 = ssub.s32 %s25, 2
    %s32 = sadd.s32 %s25, 1
    %s33 = ssub.s32 %s25, %s32
    %p34 = scmp.eq.s32.totalorder %s33, 0
    %s36 = sadd.s32 %s35, 1
    %s37 = scalar_select %p34, %s35, %s36
    %p40 = pneg %p34
    %p41 = scmp.eq.s32.totalorder %s25, 1
    %p42 = por %p40, %p41
    %p43 = scmp.ne.s32.totalorder %s35, %s38
    %p44 = scmp.eq.s32.totalorder %s25, 0
    %p45 = por %p43, %p44
    %p46 = scmp.ne.s32.totalorder %s35, %s38
    %p47 = scmp.eq.s32.totalorder %s30, 1
    %p48 = por %p46, %p47
    %p49 = scmp.ne.s32.totalorder %s38, %s39
    %p50 = scmp.eq.s32.totalorder %s30, 0
    %p51 = por %p49, %p50
    %p52 = scmp.ne.s32.totalorder %s38, %s39
    %p53 = scmp.eq.s32.totalorder %s31, 1
    %p54 = por %p52, %p53
    %p56 = scmp.ne.s32.totalorder %s39, %s55
    %p57 = scmp.eq.s32.totalorder %s31, 0
    %p58 = por %p56, %p57
    %s59 = ssub.s32 %s25, %s32
    %p60 = scmp.eq.s32.totalorder %s59, 0
    %s62 = sadd.s32 %s61, 1
    %s63 = scalar_select %p60, %s61, %s62
    %p66 = pneg %p60
    %p67 = scmp.eq.s32.totalorder %s25, 1
    %p68 = por %p66, %p67
    %p69 = scmp.ne.s32.totalorder %s61, %s64
    %p70 = scmp.eq.s32.totalorder %s25, 0
    %p71 = por %p69, %p70
    %p72 = scmp.ne.s32.totalorder %s61, %s64
    %p73 = scmp.eq.s32.totalorder %s30, 1
    %p74 = por %p72, %p73
    %p75 = scmp.ne.s32.totalorder %s64, %s65
    %p76 = scmp.eq.s32.totalorder %s30, 0
    %p77 = por %p75, %p76
    %p78 = scmp.ne.s32.totalorder %s64, %s65
    %p79 = scmp.eq.s32.totalorder %s31, 1
    %p80 = por %p78, %p79
    %p82 = scmp.ne.s32.totalorder %s65, %s81
    %p83 = scmp.eq.s32.totalorder %s31, 0
    %p84 = por %p82, %p83
    %s86 = sadd.s32 %s85, 1
    %p89 = scmp.eq.s32.totalorder %s25, 1
    %p90 = scmp.ne.s32.totalorder %s85, %s87
    %p91 = scmp.eq.s32.totalorder %s25, 0
    %p92 = por %p90, %p91
    %p93 = scmp.ne.s32.totalorder %s85, %s87
    %p94 = scmp.eq.s32.totalorder %s30, 1
    %p95 = por %p93, %p94
    %p96 = scmp.ne.s32.totalorder %s87, %s88
    %p97 = scmp.eq.s32.totalorder %s30, 0
    %p98 = por %p96, %p97
    %p99 = scmp.ne.s32.totalorder %s87, %s88
    %p100 = scmp.eq.s32.totalorder %s31, 1
    %p101 = por %p99, %p100
    %p103 = scmp.ne.s32.totalorder %s88, %s102
    %p104 = scmp.eq.s32.totalorder %s31, 0
    %p105 = por %p103, %p104
    %s107 = sadd.s32 %s106, 1
    %p110 = scmp.eq.s32.totalorder %s25, 1
    %p111 = scmp.ne.s32.totalorder %s106, %s108
    %p112 = scmp.eq.s32.totalorder %s25, 0
    %p113 = por %p111, %p112
    %p114 = scmp.ne.s32.totalorder %s106, %s108
    %p115 = scmp.eq.s32.totalorder %s30, 1
    %p116 = por %p114, %p115
    %p117 = scmp.ne.s32.totalorder %s108, %s109
    %p118 = scmp.eq.s32.totalorder %s30, 0
    %p119 = por %p117, %p118
    %p120 = scmp.ne.s32.totalorder %s108, %s109
    %p121 = scmp.eq.s32.totalorder %s31, 1
    %p122 = por %p120, %p121
    %p124 = scmp.ne.s32.totalorder %s109, %s123
    %p125 = scmp.eq.s32.totalorder %s31, 0
    %p126 = por %p124, %p125
    %s128 = sadd.s32 %s127, 1
    %p131 = scmp.eq.s32.totalorder %s25, 1
    %p132 = scmp.ne.s32.totalorder %s127, %s129
    %p133 = scmp.eq.s32.totalorder %s25, 0
    %p134 = por %p132, %p133
    %p135 = scmp.ne.s32.totalorder %s127, %s129
    %p136 = scmp.eq.s32.totalorder %s30, 1
    %p137 = por %p135, %p136
    %p138 = scmp.ne.s32.totalorder %s129, %s130
    %p139 = scmp.eq.s32.totalorder %s30, 0
    %p140 = por %p138, %p139
    %p141 = scmp.ne.s32.totalorder %s129, %s130
    %p142 = scmp.eq.s32.totalorder %s31, 1
    %p143 = por %p141, %p142
    %p145 = scmp.ne.s32.totalorder %s130, %s144
    %p146 = scmp.eq.s32.totalorder %s31, 0
    %p147 = por %p145, %p146
    %s149 = sadd.s32 %s148, 1
    %p152 = scmp.eq.s32.totalorder %s25, 1
    %p153 = scmp.ne.s32.totalorder %s148, %s150
    %p154 = scmp.eq.s32.totalorder %s25, 0
    %p155 = por %p153, %p154
    %p156 = scmp.ne.s32.totalorder %s148, %s150
    %p157 = scmp.eq.s32.totalorder %s30, 1
    %p158 = por %p156, %p157
    %p159 = scmp.ne.s32.totalorder %s150, %s151
    %p160 = scmp.eq.s32.totalorder %s30, 0
    %p161 = por %p159, %p160
    %p162 = scmp.ne.s32.totalorder %s150, %s151
    %p163 = scmp.eq.s32.totalorder %s31, 1
    %p164 = por %p162, %p163
    %p166 = scmp.ne.s32.totalorder %s151, %s165
    %p167 = scmp.eq.s32.totalorder %s31, 0
    %p168 = por %p166, %p167
    %s170 = sadd.s32 %s169, 1
    %p173 = scmp.eq.s32.totalorder %s25, 1
    %p174 = scmp.ne.s32.totalorder %s169, %s171
    %p175 = scmp.eq.s32.totalorder %s25, 0
    %p176 = por %p174, %p175
    %p177 = scmp.ne.s32.totalorder %s169, %s171
    %p178 = scmp.eq.s32.totalorder %s30, 1
    %p179 = por %p177, %p178
    %p180 = scmp.ne.s32.totalorder %s171, %s172
    %p181 = scmp.eq.s32.totalorder %s30, 0
    %p182 = por %p180, %p181
    %p183 = scmp.ne.s32.totalorder %s171, %s172
    %p184 = scmp.eq.s32.totalorder %s31, 1
    %p185 = por %p183, %p184
    %p187 = scmp.ne.s32.totalorder %s172, %s186
    %p188 = scmp.eq.s32.totalorder %s31, 0
    %p189 = por %p187, %p188
    %s191 = sadd.s32 %s190, 1
    %p194 = scmp.eq.s32.totalorder %s25, 1
    %p195 = scmp.ne.s32.totalorder %s190, %s192
    %p196 = scmp.eq.s32.totalorder %s25, 0
    %p197 = por %p195, %p196
    %p198 = scmp.ne.s32.totalorder %s190, %s192
    %p199 = scmp.eq.s32.totalorder %s30, 1
    %p200 = por %p198, %p199
    %p201 = scmp.ne.s32.totalorder %s192, %s193
    %p202 = scmp.eq.s32.totalorder %s30, 0
    %p203 = por %p201, %p202
    %p204 = scmp.ne.s32.totalorder %s192, %s193
    %p205 = scmp.eq.s32.totalorder %s31, 1
    %p206 = por %p204, %p205
    %p208 = scmp.ne.s32.totalorder %s193, %s207
    %p209 = scmp.eq.s32.totalorder %s31, 0
    %p210 = por %p208, %p209
    %s212 = sadd.s32 %s211, 1
    %p215 = scmp.eq.s32.totalorder %s25, 1
    %p216 = scmp.ne.s32.totalorder %s211, %s213
    %p217 = scmp.eq.s32.totalorder %s25, 0
    %p218 = por %p216, %p217
    %p219 = scmp.ne.s32.totalorder %s211, %s213
    %p220 = scmp.eq.s32.totalorder %s30, 1
    %p221 = por %p219, %p220
    %p222 = scmp.ne.s32.totalorder %s213, %s214
    %p223 = scmp.eq.s32.totalorder %s30, 0
    %p224 = por %p222, %p223
    %p225 = scmp.ne.s32.totalorder %s213, %s214
    %p226 = scmp.eq.s32.totalorder %s31, 1
    %p227 = por %p225, %p226
    %p229 = scmp.ne.s32.totalorder %s214, %s228
    %p230 = scmp.eq.s32.totalorder %s31, 0
    %p231 = por %p229, %p230
    %s233 = sadd.s32 %s232, 1
    %p236 = scmp.eq.s32.totalorder %s25, 1
    %p237 = scmp.ne.s32.totalorder %s232, %s234
    %p238 = scmp.eq.s32.totalorder %s25, 0
    %p239 = por %p237, %p238
    %p240 = scmp.ne.s32.totalorder %s232, %s234
    %p241 = scmp.eq.s32.totalorder %s30, 1
    %p242 = por %p240, %p241
    %p243 = scmp.ne.s32.totalorder %s234, %s235
    %p244 = scmp.eq.s32.totalorder %s30, 0
    %p245 = por %p243, %p244
    %p246 = scmp.ne.s32.totalorder %s234, %s235
    %p247 = scmp.eq.s32.totalorder %s31, 1
    %p248 = por %p246, %p247
    %p250 = scmp.ne.s32.totalorder %s235, %s249
    %p251 = scmp.eq.s32.totalorder %s31, 0
    %p252 = por %p250, %p251
    %s254 = sadd.s32 %s253, 1
    %p257 = scmp.eq.s32.totalorder %s25, 1
    %p258 = scmp.ne.s32.totalorder %s253, %s255
    %p259 = scmp.eq.s32.totalorder %s25, 0
    %p260 = por %p258, %p259
    %p261 = scmp.ne.s32.totalorder %s253, %s255
    %p262 = scmp.eq.s32.totalorder %s30, 1
    %p263 = por %p261, %p262
    %p264 = scmp.ne.s32.totalorder %s255, %s256
    %p265 = scmp.eq.s32.totalorder %s30, 0
    %p266 = por %p264, %p265
    %p267 = scmp.ne.s32.totalorder %s255, %s256
    %p268 = scmp.eq.s32.totalorder %s31, 1
    %p269 = por %p267, %p268
    %p271 = scmp.ne.s32.totalorder %s256, %s270
    %p272 = scmp.eq.s32.totalorder %s31, 0
    %p273 = por %p271, %p272
    %s275 = sadd.s32 %s274, 1
    %p278 = scmp.eq.s32.totalorder %s25, 1
    %p279 = scmp.ne.s32.totalorder %s274, %s276
    %p280 = scmp.eq.s32.totalorder %s25, 0
    %p281 = por %p279, %p280
    %p282 = scmp.ne.s32.totalorder %s274, %s276
    %p283 = scmp.eq.s32.totalorder %s30, 1
    %p284 = por %p282, %p283
    %p285 = scmp.ne.s32.totalorder %s276, %s277
    %p286 = scmp.eq.s32.totalorder %s30, 0
    %p287 = por %p285, %p286
    %p288 = scmp.ne.s32.totalorder %s276, %s277
    %p289 = scmp.eq.s32.totalorder %s31, 1
    %p290 = por %p288, %p289
    %p292 = scmp.ne.s32.totalorder %s277, %s291
    %p293 = scmp.eq.s32.totalorder %s31, 0
    %p294 = por %p292, %p293
    %s296 = sadd.s32 %s295, 1
    %p299 = scmp.eq.s32.totalorder %s25, 1
    %p300 = scmp.ne.s32.totalorder %s295, %s297
    %p301 = scmp.eq.s32.totalorder %s25, 0
    %p302 = por %p300, %p301
    %p303 = scmp.ne.s32.totalorder %s295, %s297
    %p304 = scmp.eq.s32.totalorder %s30, 1
    %p305 = por %p303, %p304
    %p306 = scmp.ne.s32.totalorder %s297, %s298
    %p307 = scmp.eq.s32.totalorder %s30, 0
    %p308 = por %p306, %p307
    %p309 = scmp.ne.s32.totalorder %s297, %s298
    %p310 = scmp.eq.s32.totalorder %s31, 1
    %p311 = por %p309, %p310
    %p313 = scmp.ne.s32.totalorder %s298, %s312
    %p314 = scmp.eq.s32.totalorder %s31, 0
    %p315 = por %p313, %p314
    %s317 = sadd.s32 %s316, 1
    %p320 = scmp.eq.s32.totalorder %s25, 1
    %p321 = scmp.ne.s32.totalorder %s316, %s318
    %p322 = scmp.eq.s32.totalorder %s25, 0
    %p323 = por %p321, %p322
    %p324 = scmp.ne.s32.totalorder %s316, %s318
    %p325 = scmp.eq.s32.totalorder %s30, 1
    %p326 = por %p324, %p325
    %p327 = scmp.ne.s32.totalorder %s318, %s319
    %p328 = scmp.eq.s32.totalorder %s30, 0
    %p329 = por %p327, %p328
    %p330 = scmp.ne.s32.totalorder %s318, %s319
    %p331 = scmp.eq.s32.totalorder %s31, 1
    %p332 = por %p330, %p331
    %p334 = scmp.ne.s32.totalorder %s319, %s333
    %p335 = scmp.eq.s32.totalorder %s31, 0
    %p336 = por %p334, %p335
    %s338 = sadd.s32 %s337, 1
    %p341 = scmp.eq.s32.totalorder %s25, 1
    %p342 = scmp.ne.s32.totalorder %s337, %s339
    %p343 = scmp.eq.s32.totalorder %s25, 0
    %p344 = por %p342, %p343
    %p345 = scmp.ne.s32.totalorder %s337, %s339
    %p346 = scmp.eq.s32.totalorder %s30, 1
    %p347 = por %p345, %p346
    %p348 = scmp.ne.s32.totalorder %s339, %s340
    %p349 = scmp.eq.s32.totalorder %s30, 0
    %p350 = por %p348, %p349
    %p351 = scmp.ne.s32.totalorder %s339, %s340
    %p352 = scmp.eq.s32.totalorder %s31, 1
    %p353 = por %p351, %p352
    %p355 = scmp.ne.s32.totalorder %s340, %s354
    %p356 = scmp.eq.s32.totalorder %s31, 0
    %p357 = por %p355, %p356
    %s359 = sadd.s32 %s358, 1
    %p362 = scmp.eq.s32.totalorder %s25, 1
    %p363 = scmp.ne.s32.totalorder %s358, %s360
    %p364 = scmp.eq.s32.totalorder %s25, 0
    %p365 = por %p363, %p364
    %p366 = scmp.ne.s32.totalorder %s358, %s360
    %p367 = scmp.eq.s32.totalorder %s30, 1
    %p368 = por %p366, %p367
    %p369 = scmp.ne.s32.totalorder %s360, %s361
    %p370 = scmp.eq.s32.totalorder %s30, 0
    %p371 = por %p369, %p370
    %p372 = scmp.ne.s32.totalorder %s360, %s361
    %p373 = scmp.eq.s32.totalorder %s31, 1
    %p374 = por %p372, %p373
    %p376 = scmp.ne.s32.totalorder %s361, %s375
    %p377 = scmp.eq.s32.totalorder %s31, 0
    %p378 = por %p376, %p377
    %s380 = sadd.s32 %s379, 1
    %p383 = scmp.eq.s32.totalorder %s25, 1
    %p384 = scmp.ne.s32.totalorder %s379, %s381
    %p385 = scmp.eq.s32.totalorder %s25, 0
    %p386 = por %p384, %p385
    %p387 = scmp.ne.s32.totalorder %s379, %s381
    %p388 = scmp.eq.s32.totalorder %s30, 1
    %p389 = por %p387, %p388
    %p390 = scmp.ne.s32.totalorder %s381, %s382
    %p391 = scmp.eq.s32.totalorder %s30, 0
    %p392 = por %p390, %p391
    %p393 = scmp.ne.s32.totalorder %s381, %s382
    %p394 = scmp.eq.s32.totalorder %s31, 1
    %p395 = por %p393, %p394
    %p397 = scmp.ne.s32.totalorder %s382, %s396
    %p398 = scmp.eq.s32.totalorder %s31, 0
    %p399 = por %p397, %p398
    %s401 = sadd.s32 %s400, 1
    %p404 = scmp.eq.s32.totalorder %s25, 1
    %p405 = scmp.ne.s32.totalorder %s400, %s402
    %p406 = scmp.eq.s32.totalorder %s25, 0
    %p407 = por %p405, %p406
    %p408 = scmp.ne.s32.totalorder %s400, %s402
    %p409 = scmp.eq.s32.totalorder %s30, 1
    %p410 = por %p408, %p409
    %p411 = scmp.ne.s32.totalorder %s402, %s403
    %p412 = scmp.eq.s32.totalorder %s30, 0
    %p413 = por %p411, %p412
    %p414 = scmp.ne.s32.totalorder %s402, %s403
    %p415 = scmp.eq.s32.totalorder %s31, 1
    %p416 = por %p414, %p415
    %p418 = scmp.ne.s32.totalorder %s403, %s417
    %p419 = scmp.eq.s32.totalorder %s31, 0
    %p420 = por %p418, %p419
    %s422 = sadd.s32 %s421, 1
    %p425 = scmp.eq.s32.totalorder %s25, 1
    %p426 = scmp.ne.s32.totalorder %s421, %s423
    %p427 = scmp.eq.s32.totalorder %s25, 0
    %p428 = por %p426, %p427
    %p429 = scmp.ne.s32.totalorder %s421, %s423
    %p430 = scmp.eq.s32.totalorder %s30, 1
    %p431 = por %p429, %p430
    %p432 = scmp.ne.s32.totalorder %s423, %s424
    %p433 = scmp.eq.s32.totalorder %s30, 0
    %p434 = por %p432, %p433
    %p435 = scmp.ne.s32.totalorder %s423, %s424
    %p436 = scmp.eq.s32.totalorder %s31, 1
    %p437 = por %p435, %p436
    %p439 = scmp.ne.s32.totalorder %s424, %s438
    %p440 = scmp.eq.s32.totalorder %s31, 0
    %p441 = por %p439, %p440
    %s442 = ssub.s32 %s25, %s32
    %p443 = scmp.eq.s32.totalorder %s442, 0
    %s445 = sadd.s32 %s444, 1
    %s446 = scalar_select %p443, %s444, %s445
    %p449 = pneg %p443
    %p450 = scmp.eq.s32.totalorder %s25, 1
    %p451 = por %p449, %p450
    %p452 = scmp.ne.s32.totalorder %s444, %s447
    %p453 = scmp.eq.s32.totalorder %s25, 0
    %p454 = por %p452, %p453
    %p455 = scmp.ne.s32.totalorder %s444, %s447
    %p456 = scmp.eq.s32.totalorder %s30, 1
    %p457 = por %p455, %p456
    %p458 = scmp.ne.s32.totalorder %s447, %s448
    %p459 = scmp.eq.s32.totalorder %s30, 0
    %p460 = por %p458, %p459
    %p461 = scmp.ne.s32.totalorder %s447, %s448
    %p462 = scmp.eq.s32.totalorder %s31, 1
    %p463 = por %p461, %p462
    %p465 = scmp.ne.s32.totalorder %s448, %s464
    %p466 = scmp.eq.s32.totalorder %s31, 0
    %p467 = por %p465, %p466
    %p468 = scmp.le.s32.totalorder 1, %s25
    %p469 = scmp.lt.s32.totalorder %s25, 3
    %p470 = pnand %p468, %p469
    %p471 = pneg %p470
    // Predicated region
    $region9: #{forward_on_codes.1} parent=5 // pred_check
      _
    $region10: #{forward_on_codes.1} parent=5 // pred_check_branch
      %473 = sbr.rel (%p470) target = $region12
    $region11: #{forward_on_codes.1} parent=5 // pred_region
      %s474 = ssub.s32 %s25, 1
      // Predicated region
      $region13: #{forward_on_codes.1} parent=11 // pred_check
        %p475 = pneg %p98
      $region14: #{forward_on_codes.1} parent=11 // pred_check_branch
        %477 = sbr.rel (%p475) target = $region16
      $region15: #{forward_on_codes.1} parent=11 // pred_region
        _
      $region16: #{forward_on_codes.1} parent=11 // pred_fallthru
        _
      // Predicated region
      $region17: #{forward_on_codes.1} parent=11 // pred_check
        %p478 = pneg %p119
      $region18: #{forward_on_codes.1} parent=11 // pred_check_branch
        %480 = sbr.rel (%p478) target = $region20
      $region19: #{forward_on_codes.1} parent=11 // pred_region
        _
      $region20: #{forward_on_codes.1} parent=11 // pred_fallthru
        _
      // Predicated region
      $region21: #{forward_on_codes.1} parent=11 // pred_check
        %p481 = pneg %p140
      $region22: #{forward_on_codes.1} parent=11 // pred_check_branch
        %483 = sbr.rel (%p481) target = $region24
      $region23: #{forward_on_codes.1} parent=11 // pred_region
        _
      $region24: #{forward_on_codes.1} parent=11 // pred_fallthru
        _
      // Predicated region
      $region25: #{forward_on_codes.1} parent=11 // pred_check
        %p484 = pneg %p161
      $region26: #{forward_on_codes.1} parent=11 // pred_check_branch
        %486 = sbr.rel (%p484) target = $region28
      $region27: #{forward_on_codes.1} parent=11 // pred_region
        _
      $region28: #{forward_on_codes.1} parent=11 // pred_fallthru
        _
      // Predicated region
      $region29: #{forward_on_codes.1} parent=11 // pred_check
        %p487 = pneg %p182
      $region30: #{forward_on_codes.1} parent=11 // pred_check_branch
        %489 = sbr.rel (%p487) target = $region32
      $region31: #{forward_on_codes.1} parent=11 // pred_region
        _
      $region32: #{forward_on_codes.1} parent=11 // pred_fallthru
        _
      // Predicated region
      $region33: #{forward_on_codes.1} parent=11 // pred_check
        %p490 = pneg %p203
      $region34: #{forward_on_codes.1} parent=11 // pred_check_branch
        %492 = sbr.rel (%p490) target = $region36
      $region35: #{forward_on_codes.1} parent=11 // pred_region
        _
      $region36: #{forward_on_codes.1} parent=11 // pred_fallthru
        _
      // Predicated region
      $region37: #{forward_on_codes.1} parent=11 // pred_check
        %p493 = pneg %p224
      $region38: #{forward_on_codes.1} parent=11 // pred_check_branch
        %495 = sbr.rel (%p493) target = $region40
      $region39: #{forward_on_codes.1} parent=11 // pred_region
        _
      $region40: #{forward_on_codes.1} parent=11 // pred_fallthru
        _
      // Predicated region
      $region41: #{forward_on_codes.1} parent=11 // pred_check
        %p496 = pneg %p245
      $region42: #{forward_on_codes.1} parent=11 // pred_check_branch
        %498 = sbr.rel (%p496) target = $region44
      $region43: #{forward_on_codes.1} parent=11 // pred_region
        _
      $region44: #{forward_on_codes.1} parent=11 // pred_fallthru
        _
      // Predicated region
      $region45: #{forward_on_codes.1} parent=11 // pred_check
        %p499 = pneg %p266
      $region46: #{forward_on_codes.1} parent=11 // pred_check_branch
        %501 = sbr.rel (%p499) target = $region48
      $region47: #{forward_on_codes.1} parent=11 // pred_region
        _
      $region48: #{forward_on_codes.1} parent=11 // pred_fallthru
        _
      // Predicated region
      $region49: #{forward_on_codes.1} parent=11 // pred_check
        %p502 = pneg %p287
      $region50: #{forward_on_codes.1} parent=11 // pred_check_branch
        %504 = sbr.rel (%p502) target = $region52
      $region51: #{forward_on_codes.1} parent=11 // pred_region
        _
      $region52: #{forward_on_codes.1} parent=11 // pred_fallthru
        _
      // Predicated region
      $region53: #{forward_on_codes.1} parent=11 // pred_check
        %p505 = pneg %p308
      $region54: #{forward_on_codes.1} parent=11 // pred_check_branch
        %507 = sbr.rel (%p505) target = $region56
      $region55: #{forward_on_codes.1} parent=11 // pred_region
        _
      $region56: #{forward_on_codes.1} parent=11 // pred_fallthru
        _
      // Predicated region
      $region57: #{forward_on_codes.1} parent=11 // pred_check
        %p508 = pneg %p329
      $region58: #{forward_on_codes.1} parent=11 // pred_check_branch
        %510 = sbr.rel (%p508) target = $region60
      $region59: #{forward_on_codes.1} parent=11 // pred_region
        _
      $region60: #{forward_on_codes.1} parent=11 // pred_fallthru
        _
      // Predicated region
      $region61: #{forward_on_codes.1} parent=11 // pred_check
        %p511 = pneg %p350
      $region62: #{forward_on_codes.1} parent=11 // pred_check_branch
        %513 = sbr.rel (%p511) target = $region64
      $region63: #{forward_on_codes.1} parent=11 // pred_region
        _
      $region64: #{forward_on_codes.1} parent=11 // pred_fallthru
        _
      // Predicated region
      $region65: #{forward_on_codes.1} parent=11 // pred_check
        %p514 = pneg %p371
      $region66: #{forward_on_codes.1} parent=11 // pred_check_branch
        %516 = sbr.rel (%p514) target = $region68
      $region67: #{forward_on_codes.1} parent=11 // pred_region
        _
      $region68: #{forward_on_codes.1} parent=11 // pred_fallthru
        _
      // Predicated region
      $region69: #{forward_on_codes.1} parent=11 // pred_check
        %p517 = pneg %p392
      $region70: #{forward_on_codes.1} parent=11 // pred_check_branch
        %519 = sbr.rel (%p517) target = $region72
      $region71: #{forward_on_codes.1} parent=11 // pred_region
        _
      $region72: #{forward_on_codes.1} parent=11 // pred_fallthru
        _
      // Predicated region
      $region73: #{forward_on_codes.1} parent=11 // pred_check
        %p520 = pneg %p413
      $region74: #{forward_on_codes.1} parent=11 // pred_check_branch
        %522 = sbr.rel (%p520) target = $region76
      $region75: #{forward_on_codes.1} parent=11 // pred_region
        _
      $region76: #{forward_on_codes.1} parent=11 // pred_fallthru
        _
      // Predicated region
      $region77: #{forward_on_codes.1} parent=11 // pred_check
        %p523 = pneg %p434
      $region78: #{forward_on_codes.1} parent=11 // pred_check_branch
        %525 = sbr.rel (%p523) target = $region80
      $region79: #{forward_on_codes.1} parent=11 // pred_region
        _
      $region80: #{forward_on_codes.1} parent=11 // pred_fallthru
        _
    $region12: #{forward_on_codes.1} parent=5 // pred_fallthru
      _
    %p526 = scmp.lt.s32.totalorder %s25, 2
    // Predicated region
    $region81: #{forward_on_codes.1} parent=5 // pred_check
      %p527 = pneg %p526
    $region82: #{forward_on_codes.1} parent=5 // pred_check_branch
      %529 = sbr.rel (%p527) target = $region84
    $region83: #{forward_on_codes.1} parent=5 // pred_region
      // Predicated region
      $region85: #{forward_on_codes.1} parent=83 // pred_check
        %p530 = pneg %p45
      $region86: #{forward_on_codes.1} parent=83 // pred_check_branch
        %532 = sbr.rel (%p530) target = $region88
      $region87: #{forward_on_codes.1} parent=83 // pred_region
        %p533 = scmp.lt.s32.totalorder %s25, 1
        %s534 = scalar_select %p533, %s25, 1
        %s535 = smul.addr %s534, 4
        %s536 = smul.addr %s535, 8
        %s537 = scalar_lea.vmem %s0, %s536
      $region88: #{forward_on_codes.1} parent=83 // pred_fallthru
        _
      // Predicated region
      $region89: #{forward_on_codes.1} parent=83 // pred_check
        %p538 = pneg %p71
      $region90: #{forward_on_codes.1} parent=83 // pred_check_branch
        %540 = sbr.rel (%p538) target = $region92
      $region91: #{forward_on_codes.1} parent=83 // pred_region
        %p541 = scmp.lt.s32.totalorder %s25, 1
        %s542 = scalar_select %p541, %s25, 1
        %s543 = smul.addr %s542, 4
        %s544 = smul.addr %s543, 8
        %s545 = scalar_lea.vmem %s1, %s544
      $region92: #{forward_on_codes.1} parent=83 // pred_fallthru
        _
    $region84: #{forward_on_codes.1} parent=5 // pred_fallthru
      _
    %p546 = scmp.le.s32.totalorder 1, %s25
    %p547 = scmp.lt.s32.totalorder %s25, 3
    %p548 = pnand %p546, %p547
    %p549 = pneg %p548
    // Predicated region
    $region93: #{forward_on_codes.1} parent=5 // pred_check
      _
    $region94: #{forward_on_codes.1} parent=5 // pred_check_branch
      %551 = sbr.rel (%p548) target = $region96
    $region95: #{forward_on_codes.1} parent=5 // pred_region
      %s552 = ssub.s32 %s25, 1
      %p553 = scmp.lt.s32.totalorder %s30, 1
      %s554 = scalar_select %p553, %s30, 1
      %s555 = smul.addr %s554, 4
      %s556 = smul.addr %s555, 8
      %s557 = scalar_lea.vmem %s0, %s556
      %p558 = pneg %p51
      %p559 = pneg %p48
      %p560 = scmp.lt.s32.totalorder %s30, 1
      %s561 = scalar_select %p560, %s30, 1
      %s562 = smul.addr %s561, 4
      %s563 = smul.addr %s562, 8
      %s564 = scalar_lea.vmem %s1, %s563
      %p565 = pneg %p77
      %p566 = pneg %p74
      %p567 = pneg %p98
      %p568 = pneg %p95
      %p569 = pneg %p119
      %p570 = pneg %p116
      %p571 = pneg %p140
      %p572 = pneg %p137
      %p573 = pneg %p161
      %p574 = pneg %p158
      %p575 = pneg %p182
      %p576 = pneg %p179
      %p577 = pneg %p203
      %p578 = pneg %p200
      %p579 = pneg %p224
      %p580 = pneg %p221
      %p581 = pneg %p245
      %p582 = pneg %p242
      %p583 = pneg %p266
      %p584 = pneg %p263
      %p585 = pneg %p287
      %p586 = pneg %p284
      %p587 = pneg %p308
      %p588 = pneg %p305
      %p589 = pneg %p329
      %p590 = pneg %p326
      %p591 = pneg %p350
      %p592 = pneg %p347
      %p593 = pneg %p371
      %p594 = pneg %p368
      %p595 = pneg %p392
      %p596 = pneg %p389
      %p597 = pneg %p413
      %p598 = pneg %p410
      %p599 = pneg %p434
      %p600 = pneg %p431
      %p601 = pneg %p460
      %p602 = pneg %p457
      %p603 = scmp.lt.s32.totalorder %s30, 1
      %s604 = scalar_select %p603, %s30, 1
      %s605 = scalar_lea.vmem %s19, %s604
      %p606 = scmp.lt.s32.totalorder %s30, 1
      %s607 = scalar_select %p606, %s30, 1
      %s608 = smul.addr %s607, 4
      %s609 = smul.addr %s608, 8
      %s610 = scalar_lea.vmem %s0, %s609
      %p611 = scmp.lt.s32.totalorder %s30, 1
      %s612 = scalar_select %p611, %s30, 1
      %s613 = smul.addr %s612, 4
      %s614 = smul.addr %s613, 8
      %s615 = scalar_lea.vmem %s1, %s614
      %p616 = scmp.lt.s32.totalorder %s30, 1
      %s617 = scalar_select %p616, %s30, 1
      %s618 = scalar_lea.vmem %s19, %s617
      %v620 = vld [vmem:[%s610] sm:$0xff]
      %v621 = vld [vmem:[%s610 + $0x8] sm:$0xff]
      %v622 = vld [vmem:[%s610 + $0x10] sm:$0xff]
      %v623 = vld [vmem:[%s610 + $0x18] sm:$0x3]
      %v624 = vld [vmem:[%s2] sm:$0xff]
      %v625 = vld [vmem:[%s2 + $0x8] sm:$0xff]
      %v626 = vld [vmem:[%s2 + $0x10] sm:$0xff]
      %v627 = vld [vmem:[%s2 + $0x18] sm:$0x3]
      %v628 = vld [vmem:[%s3] sm:$0x1]
      %v629 = vld [vmem:[%s4] sm:$0x1]
      %vm630 = vcmask 261120
      %v631 = vsel %vm630, %v620, 0.0
      %632 = vadd.xlane.f32.xlu0 %v631
      %v633 = vpop.xlane.xlu0 %632
      %v634 = vsel %vm630, %v621, 0.0
      %635 = vadd.xlane.f32.xlu0 %v634
      %v636 = vpop.xlane.xlu0 %635
      %v637 = vsel %vm630, %v622, 0.0
      %638 = vadd.xlane.f32.xlu0 %v637
      %v639 = vpop.xlane.xlu0 %638
      %vm640 = vcmask 254976
      %v641 = vsel %vm640, %v623, 0.0
      %642 = vadd.xlane.f32.xlu0 %v641
      %v643 = vpop.xlane.xlu0 %642
      %v644 = vrcp.pop 32.0
      %v645 = vmul.f32 %v633, %v644
      %v646 = vmul.f32 %v636, %v644
      %v647 = vmul.f32 %v639, %v644
      %v648 = vmul.f32 %v643, %v644
      %v649 = vsub.f32 %v620, %v645
      %v650 = vsub.f32 %v621, %v646
      %v651 = vsub.f32 %v622, %v647
      %v652 = vsub.f32 %v623, %v648
      %v653 = vmul.f32 %v649, %v649
      %v654 = vmul.f32 %v650, %v650
      %v655 = vmul.f32 %v651, %v651
      %v656 = vmul.f32 %v652, %v652
      %v657 = vsel %vm630, %v653, 0.0
      %658 = vadd.xlane.f32.xlu0 %v657
      %v659 = vpop.xlane.xlu0 %658
      %v660 = vsel %vm630, %v654, 0.0
      %661 = vadd.xlane.f32.xlu0 %v660
      %v662 = vpop.xlane.xlu0 %661
      %v663 = vsel %vm630, %v655, 0.0
      %664 = vadd.xlane.f32.xlu0 %v663
      %v665 = vpop.xlane.xlu0 %664
      %v666 = vsel %vm640, %v656, 0.0
      %667 = vadd.xlane.f32.xlu0 %v666
      %v668 = vpop.xlane.xlu0 %667
      %v669 = vmul.f32 %v659, %v644
      %v670 = vmul.f32 %v662, %v644
      %v671 = vmul.f32 %v665, %v644
      %v672 = vmul.f32 %v668, %v644
      %v673 = vadd.f32 %v669, 1e-05
      %v674 = vadd.f32 %v670, 1e-05
      %v675 = vadd.f32 %v671, 1e-05
      %v676 = vadd.f32 %v672, 1e-05
      %v677 = vrsqrt.pop %v673
      %v678 = vrsqrt.pop %v674
      %v679 = vrsqrt.pop %v675
      %v680 = vrsqrt.pop %v676
      %v681 = vmul.f32 %v649, %v677
      %v682 = vmul.f32 %v650, %v678
      %v683 = vmul.f32 %v651, %v679
      %v684 = vmul.f32 %v652, %v680
      %v686 = vlaneseq
      %v687 = vshrl.u32 %v686, 7
      %v688 = vsub.s32 0, %v687
      %v689 = vrot.slane %v628, %v688
      %v691 = vmul.f32 %v681, %v689
      %v692 = vmul.f32 %v682, %v689
      %v693 = vmul.f32 %v683, %v689
      %v694 = vmul.f32 %v684, %v689
      %v696 = vlaneseq
      %v697 = vshrl.u32 %v696, 7
      %v698 = vsub.s32 0, %v697
      %v699 = vrot.slane %v629, %v698
      %v701 = vadd.f32 %v691, %v699
      %v702 = vadd.f32 %v692, %v699
      %v703 = vadd.f32 %v693, %v699
      %v704 = vadd.f32 %v694, %v699
      %v705 = vpack.c.bf16 %v702, %v701
      %v706 = vpack.c.bf16 %v704, %v703
      %v707 = vld [vmem:[%s5] sm:$0xf]
      %v708 = vld [vmem:[%s5 + $0x4] sm:$0xf]
      %v709 = vld [vmem:[%s5 + $0x8] sm:$0xf]
      %v710 = vld [vmem:[%s5 + $0xc] sm:$0xf]
      %v715 = vunpack.c.l.b16 %v707
      %v716 = vunpack.c.l.b16 %v708
      %v717 = vunpack.c.l.b16 %v709
      %v718 = vunpack.c.l.b16 %v710
      %v719 = vpack.c.b16 %v716, %v715
      %v720 = vpack.c.b16 %v718, %v717
      %v724 = vsel %vm630, %v705, 0
      %v727 = vsel %vm630, %v706, 0
      %729 = vmatprep.subr.bf16.mxu0 0
      %730 = vmatpush1.bf16.msra.mxu0 %v719
      %731 = vmatprep.subr.bf16.mxu0 0
      %732 = vmatpush1.bf16.msra.mxu0 %v720
      %733 = vmatprep.subr.bf16.mxu0 0
      %734 = vmatpush1.bf16.msra.mxu0 0
      %735 = vmatprep.subr.bf16.mxu0 0
      %736 = vmatpush1.bf16.msra.mxu0 0
      %737 = vmatprep.subr.bf16.mxu0 0
      %738 = vmatpush1.bf16.msra.mxu0 0
      %739 = vmatprep.subr.bf16.mxu0 0
      %740 = vmatpush1.bf16.msra.mxu0 0
      %741 = vmatprep.subr.bf16.mxu0 0
      %742 = vmatpush1.bf16.msra.mxu0 0
      %743 = vmatprep.subr.bf16.mxu0 0
      %744 = vmatpush1.bf16.msra.mxu0 0
      %745 = vmatprep.subr.bf16.mxu0 0
      %746 = vmatpush1.bf16.msra.mxu0 0
      %747 = vmatprep.subr.bf16.mxu0 0
      %748 = vmatpush1.bf16.msra.mxu0 0
      %749 = vmatprep.subr.bf16.mxu0 0
      %750 = vmatpush1.bf16.msra.mxu0 0
      %751 = vmatprep.subr.bf16.mxu0 0
      %752 = vmatpush1.bf16.msra.mxu0 0
      %753 = vmatprep.subr.bf16.mxu0 0
      %754 = vmatpush1.bf16.msra.mxu0 0
      %755 = vmatprep.subr.bf16.mxu0 0
      %756 = vmatpush1.bf16.msra.mxu0 0
      %757 = vmatprep.subr.bf16.mxu0 0
      %758 = vmatpush1.bf16.msra.mxu0 0
      %759 = vmatprep.subr.bf16.mxu0 0
      %760 = vmatpush1.bf16.msra.mxu0 0
      %761 = vmatprep.mubr.bf16.mxu0 0
      %762 = vmatmul.mubr.bf16.gmra.mrb[0].mxu0 %v724
      %v763 = vpop.f32.mrb[0].mxu0
      %v764 = vadd.f32 0.0, %v763
      %v765 = vpop.f32.mrb[0].mxu0
      %v766 = vpop.f32.mrb[0].mxu0
      %v767 = vadd.f32 0.0, %v766
      %v768 = vpop.f32.mrb[0].mxu0
      %769 = vmatprep.mubr.bf16.mxu0 0
      %770 = vmatmul.mubr.bf16.gmra.mrb[0].mxu0 %v727
      %v771 = vpop.f32.mrb[0].mxu0
      %v772 = vadd.f32 0.0, %v771
      %v773 = vpop.f32.mrb[0].mxu0
      %v774 = vpop.f32.mrb[0].mxu0
      %v775 = vadd.f32 0.0, %v774
      %v776 = vpop.f32.mrb[0].mxu0
      %777 = vdwg.mxu0
      %v778 = vpack.c.bf16 %v767, %v764
      %v779 = vpack.c.bf16 %v775, %v772
      %782 = vrot.lane.b32.xlu0 %v778, 96
      %v783 = vpop.permute.xlu0 %782
      %784 = vrot.lane.b32.xlu0 %v779, 96
      %v785 = vpop.permute.xlu0 %784
      %vm786 = vcmask 64512
      %v788 = vsel %vm786, %v778, 0
      %v791 = vsel %vm786, %v779, 0
      %v794 = vsel %vm786, %v783, 0
      %v797 = vsel %vm786, %v785, 0
      %799 = vmatprep.subr.bf16.mxu0 0
      %800 = vmatpush1.bf16.xpose.msra.mxu0 %v794
      %801 = vmatprep.subr.bf16.mxu0 0
      %802 = vmatpush1.bf16.xpose.msra.mxu0 %v797
      %803 = vmatprep.subr.bf16.mxu0 0
      %804 = vmatpush1.bf16.xpose.msra.mxu0 0
      %805 = vmatprep.subr.bf16.mxu0 0
      %806 = vmatpush1.bf16.xpose.msra.mxu0 0
      %807 = vmatprep.subr.bf16.mxu0 0
      %808 = vmatpush1.bf16.xpose.msra.mxu0 0
      %809 = vmatprep.subr.bf16.mxu0 0
      %810 = vmatpush1.bf16.xpose.msra.mxu0 0
      %811 = vmatprep.subr.bf16.mxu0 0
      %812 = vmatpush1.bf16.xpose.msra.mxu0 0
      %813 = vmatprep.subr.bf16.mxu0 0
      %814 = vmatpush1.bf16.xpose.msra.mxu0 0
      %815 = vmatprep.subr.bf16.mxu0 0
      %816 = vmatpush1.bf16.xpose.msra.mxu0 0
      %817 = vmatprep.subr.bf16.mxu0 0
      %818 = vmatpush1.bf16.xpose.msra.mxu0 0
      %819 = vmatprep.subr.bf16.mxu0 0
      %820 = vmatpush1.bf16.xpose.msra.mxu0 0
      %821 = vmatprep.subr.bf16.mxu0 0
      %822 = vmatpush1.bf16.xpose.msra.mxu0 0
      %823 = vmatprep.subr.bf16.mxu0 0
      %824 = vmatpush1.bf16.xpose.msra.mxu0 0
      %825 = vmatprep.subr.bf16.mxu0 0
      %826 = vmatpush1.bf16.xpose.msra.mxu0 0
      %827 = vmatprep.subr.bf16.mxu0 0
      %828 = vmatpush1.bf16.xpose.msra.mxu0 0
      %829 = vmatprep.subr.bf16.mxu0 0
      %830 = vmatpush1.bf16.xpose.msra.mxu0 0
      %831 = vmatprep.mubr.bf16.mxu0 0
      %832 = vmatmul.mubr.bf16.gmra.mrb[0].mxu0 %v788
      %v833 = vpop.f32.mrb[0].mxu0
      %v834 = vadd.f32 %v624, %v833
      %v835 = vpop.f32.mrb[0].mxu0
      %v836 = vpop.f32.mrb[0].mxu0
      %v837 = vadd.f32 %v625, %v836
      %v838 = vpop.f32.mrb[0].mxu0
      %839 = vmatprep.mubr.bf16.mxu0 0
      %840 = vmatmul.mubr.bf16.gmra.mrb[0].mxu0 %v791
      %v841 = vpop.f32.mrb[0].mxu0
      %v842 = vadd.f32 %v626, %v841
      %v843 = vpop.f32.mrb[0].mxu0
      %v844 = vpop.f32.mrb[0].mxu0
      %v845 = vadd.f32 %v627, %v844
      %v846 = vpop.f32.mrb[0].mxu0
      %847 = vdwg.mxu0
      %v848 = vld [vmem:[%s7] sm:$0xf]
      %vm849 = vcmask 1043456
      %v851 = vsel %vm849, %v848, 0
      %853 = vmatprep.subr.bf16.mxu0 0
      %854 = vmatpush1.bf16.msra.mxu0 %v851
      %855 = vmatprep.subr.bf16.mxu0 0
      %856 = vmatpush1.bf16.msra.mxu0 0
      %857 = vmatprep.subr.bf16.mxu0 0
      %858 = vmatpush1.bf16.msra.mxu0 0
      %859 = vmatprep.subr.bf16.mxu0 0
      %860 = vmatpush1.bf16.msra.mxu0 0
      %861 = vmatprep.subr.bf16.mxu0 0
      %862 = vmatpush1.bf16.msra.mxu0 0
      %863 = vmatprep.subr.bf16.mxu0 0
      %864 = vmatpush1.bf16.msra.mxu0 0
      %865 = vmatprep.subr.bf16.mxu0 0
      %866 = vmatpush1.bf16.msra.mxu0 0
      %867 = vmatprep.subr.bf16.mxu0 0
      %868 = vmatpush1.bf16.msra.mxu0 0
      %869 = vmatprep.subr.bf16.mxu0 0
      %870 = vmatpush1.bf16.msra.mxu0 0
      %871 = vmatprep.subr.bf16.mxu0 0
      %872 = vmatpush1.bf16.msra.mxu0 0
      %873 = vmatprep.subr.bf16.mxu0 0
      %874 = vmatpush1.bf16.msra.mxu0 0
      %875 = vmatprep.subr.bf16.mxu0 0
      %876 = vmatpush1.bf16.msra.mxu0 0
      %877 = vmatprep.subr.bf16.mxu0 0
      %878 = vmatpush1.bf16.msra.mxu0 0
      %879 = vmatprep.subr.bf16.mxu0 0
      %880 = vmatpush1.bf16.msra.mxu0 0
      %881 = vmatprep.subr.bf16.mxu0 0
      %882 = vmatpush1.bf16.msra.mxu0 0
      %883 = vmatprep.subr.bf16.mxu0 0
      %884 = vmatpush1.bf16.msra.mxu0 0
      %885 = vmatprep.mubr.bf16.mxu0 0
      %886 = vmatmul.mubr.bf16.gmra.mrb[0].mxu0 %v788
      %v887 = vpop.f32.mrb[0].mxu0
      %v888 = vadd.f32 0.0, %v887
      %v889 = vpop.f32.mrb[0].mxu0
      %v890 = vpop.f32.mrb[0].mxu0
      %v891 = vadd.f32 0.0, %v890
      %v892 = vpop.f32.mrb[0].mxu0
      %893 = vmatprep.mubr.bf16.mxu0 0
      %894 = vmatmul.mubr.bf16.gmra.mrb[0].mxu0 %v791
      %v895 = vpop.f32.mrb[0].mxu0
      %v896 = vadd.f32 0.0, %v895
      %v897 = vpop.f32.mrb[0].mxu0
      %v898 = vpop.f32.mrb[0].mxu0
      %v899 = vadd.f32 0.0, %v898
      %v900 = vpop.f32.mrb[0].mxu0
      %901 = vdwg.mxu0
      %vm902 = vcmask 211968
      %v903 = vsel %vm902, %v834, -inf
      %904 = vmax.xlane.f32.xlu0 %v903
      %v905 = vpop.xlane.xlu0 %904
      %v906 = vsel %vm902, %v837, -inf
      %907 = vmax.xlane.f32.xlu0 %v906
      %v908 = vpop.xlane.xlu0 %907
      %v909 = vsel %vm902, %v842, -inf
      %910 = vmax.xlane.f32.xlu0 %v909
      %v911 = vpop.xlane.xlu0 %910
      %vm912 = vcmask 205824
      %v913 = vsel %vm912, %v845, -inf
      %914 = vmax.xlane.f32.xlu0 %v913
      %v915 = vpop.xlane.xlu0 %914
      %vm916 = vcmask 31744
      %v917 = vsel %vm916, %v888, -inf
      %918 = vmax.xlane.f32.xlu0 %v917
      %v919 = vpop.xlane.xlu0 %918
      %v920 = vsel %vm916, %v891, -inf
      %921 = vmax.xlane.f32.xlu0 %v920
      %v922 = vpop.xlane.xlu0 %921
      %v923 = vsel %vm916, %v896, -inf
      %924 = vmax.xlane.f32.xlu0 %v923
      %v925 = vpop.xlane.xlu0 %924
      %vm926 = vcmask 25600
      %v927 = vsel %vm926, %v899, -inf
      %928 = vmax.xlane.f32.xlu0 %v927
      %v929 = vpop.xlane.xlu0 %928
      %v930 = vmax.f32 %v905, %v919
      %v931 = vmax.f32 %v908, %v922
      %v932 = vmax.f32 %v911, %v925
      %v933 = vmax.f32 %v915, %v929
      %v934 = vsub.f32 %v834, %v930
      %v935 = vsub.f32 %v837, %v931
      %v936 = vsub.f32 %v842, %v932
      %v937 = vsub.f32 %v845, %v933
      %v938 = vmul.f32 %v934, 1.442695
      %v939 = vpow.pop %v938
      %v940 = vmul.f32 %v935, 1.442695
      %v941 = vpow.pop %v940
      %v942 = vmul.f32 %v936, 1.442695
      %v943 = vpow.pop %v942
      %v944 = vmul.f32 %v937, 1.442695
      %v945 = vpow.pop %v944
      %v946 = vsub.f32 %v888, %v930
      %v947 = vsub.f32 %v891, %v931
      %v948 = vsub.f32 %v896, %v932
      %v949 = vsub.f32 %v899, %v933
      %v950 = vmul.f32 %v946, 1.442695
      %v951 = vpow.pop %v950
      %v952 = vmul.f32 %v947, 1.442695
      %v953 = vpow.pop %v952
      %v954 = vmul.f32 %v948, 1.442695
      %v955 = vpow.pop %v954
      %v956 = vmul.f32 %v949, 1.442695
      %v957 = vpow.pop %v956
      %v958 = vsel %vm902, %v939, 0.0
      %959 = vadd.xlane.f32.xlu0 %v958
      %v960 = vpop.xlane.xlu0 %959
      %v961 = vsel %vm902, %v941, 0.0
      %962 = vadd.xlane.f32.xlu0 %v961
      %v963 = vpop.xlane.xlu0 %962
      %v964 = vsel %vm902, %v943, 0.0
      %965 = vadd.xlane.f32.xlu0 %v964
      %v966 = vpop.xlane.xlu0 %965
      %v967 = vsel %vm912, %v945, 0.0
      %968 = vadd.xlane.f32.xlu0 %v967
      %v969 = vpop.xlane.xlu0 %968
      %v970 = vsel %vm916, %v951, 0.0
      %971 = vadd.xlane.f32.xlu0 %v970
      %v972 = vpop.xlane.xlu0 %971
      %v973 = vsel %vm916, %v953, 0.0
      %974 = vadd.xlane.f32.xlu0 %v973
      %v975 = vpop.xlane.xlu0 %974
      %v976 = vsel %vm916, %v955, 0.0
      %977 = vadd.xlane.f32.xlu0 %v976
      %v978 = vpop.xlane.xlu0 %977
      %v979 = vsel %vm926, %v957, 0.0
      %980 = vadd.xlane.f32.xlu0 %v979
      %v981 = vpop.xlane.xlu0 %980
      %v982 = vadd.f32 %v960, %v972
      %v983 = vadd.f32 %v963, %v975
      %v984 = vadd.f32 %v966, %v978
      %v985 = vadd.f32 %v969, %v981
      %v986 = vrcp.pop %v982
      %v987 = vrcp.pop %v983
      %v988 = vrcp.pop %v984
      %v989 = vrcp.pop %v985
      %v990 = vpack.c.bf16 %v941, %v939
      %v991 = vpack.c.bf16 %v945, %v943
      %v992 = vpack.c.bf16 %v953, %v951
      %v993 = vpack.c.bf16 %v957, %v955
      %v994 = vld [vmem:[%s8] sm:$0x3]
      %v996 = vsel %vm916, %v992, 0
      %v999 = vsel %vm916, %v993, 0
      %vm1001 = vcmask 1041408
      %v1003 = vsel %vm1001, %v994, 0
      %1005 = vmatprep.subr.bf16.mxu0 0
      %1006 = vmatpush1.bf16.msra.mxu0 %v1003
      %1007 = vmatprep.subr.bf16.mxu0 0
      %1008 = vmatpush1.bf16.msra.mxu0 0
      %1009 = vmatprep.subr.bf16.mxu0 0
      %1010 = vmatpush1.bf16.msra.mxu0 0
      %1011 = vmatprep.subr.bf16.mxu0 0
      %1012 = vmatpush1.bf16.msra.mxu0 0
      %1013 = vmatprep.subr.bf16.mxu0 0
      %1014 = vmatpush1.bf16.msra.mxu0 0
      %1015 = vmatprep.subr.bf16.mxu0 0
      %1016 = vmatpush1.bf16.msra.mxu0 0
      %1017 = vmatprep.subr.bf16.mxu0 0
      %1018 = vmatpush1.bf16.msra.mxu0 0
      %1019 = vmatprep.subr.bf16.mxu0 0
      %1020 = vmatpush1.bf16.msra.mxu0 0
      %1021 = vmatprep.subr.bf16.mxu0 0
      %1022 = vmatpush1.bf16.msra.mxu0 0
      %1023 = vmatprep.subr.bf16.mxu0 0
      %1024 = vmatpush1.bf16.msra.mxu0 0
      %1025 = vmatprep.subr.bf16.mxu0 0
      %1026 = vmatpush1.bf16.msra.mxu0 0
      %1027 = vmatprep.subr.bf16.mxu0 0
      %1028 = vmatpush1.bf16.msra.mxu0 0
      %1029 = vmatprep.subr.bf16.mxu0 0
      %1030 = vmatpush1.bf16.msra.mxu0 0
      %1031 = vmatprep.subr.bf16.mxu0 0
      %1032 = vmatpush1.bf16.msra.mxu0 0
      %1033 = vmatprep.subr.bf16.mxu0 0
      %1034 = vmatpush1.bf16.msra.mxu0 0
      %1035 = vmatprep.subr.bf16.mxu0 0
      %1036 = vmatpush1.bf16.msra.mxu0 0
      %1037 = vmatprep.mubr.bf16.mxu0 0
      %1038 = vmatmul.mubr.bf16.gmra.mrb[0].mxu0 %v996
      %v1039 = vpop.f32.mrb[0].mxu0
      %v1040 = vadd.f32 0.0, %v1039
      %v1041 = vpop.f32.mrb[0].mxu0
      %v1042 = vpop.f32.mrb[0].mxu0
      %v1043 = vadd.f32 0.0, %v1042
      %v1044 = vpop.f32.mrb[0].mxu0
      %1045 = vmatprep.mubr.bf16.mxu0 0
      %1046 = vmatmul.mubr.bf16.gmra.mrb[0].mxu0 %v999
      %v1047 = vpop.f32.mrb[0].mxu0
      %v1048 = vadd.f32 0.0, %v1047
      %v1049 = vpop.f32.mrb[0].mxu0
      %v1050 = vpop.f32.mrb[0].mxu0
      %v1051 = vadd.f32 0.0, %v1050
      %v1052 = vpop.f32.mrb[0].mxu0
      %1053 = vdwg.mxu0
      %1054 = vrot.lane.b32.xlu0 %v778, 64
      %v1055 = vpop.permute.xlu0 %1054
      %1056 = vrot.lane.b32.xlu0 %v779, 64
      %v1057 = vpop.permute.xlu0 %1056
      %v1060 = vsel %vm902, %v990, 0
      %v1063 = vsel %vm902, %v991, 0
      %vm1065 = vcmask 1044480
      %v1067 = vsel %vm1065, %v1057, 0
      %1069 = vmatprep.subr.bf16.mxu0 0
      %1070 = vmatpush1.bf16.msra.mxu0 %v1055
      %1071 = vmatprep.subr.bf16.mxu0 0
      %1072 = vmatpush1.bf16.msra.mxu0 %v1067
      %1073 = vmatprep.subr.bf16.mxu0 0
      %1074 = vmatpush1.bf16.msra.mxu0 0
      %1075 = vmatprep.subr.bf16.mxu0 0
      %1076 = vmatpush1.bf16.msra.mxu0 0
      %1077 = vmatprep.subr.bf16.mxu0 0
      %1078 = vmatpush1.bf16.msra.mxu0 0
      %1079 = vmatprep.subr.bf16.mxu0 0
      %1080 = vmatpush1.bf16.msra.mxu0 0
      %1081 = vmatprep.subr.bf16.mxu0 0
      %1082 = vmatpush1.bf16.msra.mxu0 0
      %1083 = vmatprep.subr.bf16.mxu0 0
      %1084 = vmatpush1.bf16.msra.mxu0 0
      %1085 = vmatprep.subr.bf16.mxu0 0
      %1086 = vmatpush1.bf16.msra.mxu0 0
      %1087 = vmatprep.subr.bf16.mxu0 0
      %1088 = vmatpush1.bf16.msra.mxu0 0
      %1089 = vmatprep.subr.bf16.mxu0 0
      %1090 = vmatpush1.bf16.msra.mxu0 0
      %1091 = vmatprep.subr.bf16.mxu0 0
      %1092 = vmatpush1.bf16.msra.mxu0 0
      %1093 = vmatprep.subr.bf16.mxu0 0
      %1094 = vmatpush1.bf16.msra.mxu0 0
      %1095 = vmatprep.subr.bf16.mxu0 0
      %1096 = vmatpush1.bf16.msra.mxu0 0
      %1097 = vmatprep.subr.bf16.mxu0 0
      %1098 = vmatpush1.bf16.msra.mxu0 0
      %1099 = vmatprep.subr.bf16.mxu0 0
      %1100 = vmatpush1.bf16.msra.mxu0 0
      %1101 = vmatprep.mubr.bf16.mxu0 0
      %1102 = vmatmul.mubr.bf16.gmra.mrb[0].mxu0 %v1060
      %v1103 = vpop.f32.mrb[0].mxu0
      %v1104 = vadd.f32 %v1040, %v1103
      %v1105 = vpop.f32.mrb[0].mxu0
      %v1106 = vpop.f32.mrb[0].mxu0
      %v1107 = vadd.f32 %v1043, %v1106
      %v1108 = vpop.f32.mrb[0].mxu0
      %1109 = vmatprep.mubr.bf16.mxu0 0
      %1110 = vmatmul.mubr.bf16.gmra.mrb[0].mxu0 %v1063
      %v1111 = vpop.f32.mrb[0].mxu0
      %v1112 = vadd.f32 %v1048, %v1111
      %v1113 = vpop.f32.mrb[0].mxu0
      %v1114 = vpop.f32.mrb[0].mxu0
      %v1115 = vadd.f32 %v1051, %v1114
      %v1116 = vpop.f32.mrb[0].mxu0
      %1117 = vdwg.mxu0
      %v1118 = vmul.f32 %v1104, %v986
      %v1119 = vmul.f32 %v1107, %v987
      %v1120 = vmul.f32 %v1112, %v988
      %v1121 = vmul.f32 %v1115, %v989
      %1122 = vrot.lane.b32.xlu0 %v778, 120
      %v1123 = vpop.permute.xlu0 %1122
      %1124 = vrot.lane.b32.xlu0 %v779, 120
      %v1125 = vpop.permute.xlu0 %1124
      %1126 = vrot.lane.b32.xlu0 %v778, 88
      %v1127 = vpop.permute.xlu0 %1126
      %1128 = vrot.lane.b32.xlu0 %v779, 88
      %v1129 = vpop.permute.xlu0 %1128
      %v1131 = vsel %vm786, %v1123, 0
      %v1134 = vsel %vm786, %v1125, 0
      %v1137 = vsel %vm786, %v1127, 0
      %v1140 = vsel %vm786, %v1129, 0
      %1142 = vmatprep.subr.bf16.mxu0 0
      %1143 = vmatpush1.bf16.xpose.msra.mxu0 %v1137
      %1144 = vmatprep.subr.bf16.mxu0 0
      %1145 = vmatpush1.bf16.xpose.msra.mxu0 %v1140
      %1146 = vmatprep.subr.bf16.mxu0 0
      %1147 = vmatpush1.bf16.xpose.msra.mxu0 0
      %1148 = vmatprep.subr.bf16.mxu0 0
      %1149 = vmatpush1.bf16.xpose.msra.mxu0 0
      %1150 = vmatprep.subr.bf16.mxu0 0
      %1151 = vmatpush1.bf16.xpose.msra.mxu0 0
      %1152 = vmatprep.subr.bf16.mxu0 0
      %1153 = vmatpush1.bf16.xpose.msra.mxu0 0
      %1154 = vmatprep.subr.bf16.mxu0 0
      %1155 = vmatpush1.bf16.xpose.msra.mxu0 0
      %1156 = vmatprep.subr.bf16.mxu0 0
      %1157 = vmatpush1.bf16.xpose.msra.mxu0 0
      %1158 = vmatprep.subr.bf16.mxu0 0
      %1159 = vmatpush1.bf16.xpose.msra.mxu0 0
      %1160 = vmatprep.subr.bf16.mxu0 0
      %1161 = vmatpush1.bf16.xpose.msra.mxu0 0
      %1162 = vmatprep.subr.bf16.mxu0 0
      %1163 = vmatpush1.bf16.xpose.msra.mxu0 0
      %1164 = vmatprep.subr.bf16.mxu0 0
      %1165 = vmatpush1.bf16.xpose.msra.mxu0 0
      %1166 = vmatprep.subr.bf16.mxu0 0
      %1167 = vmatpush1.bf16.xpose.msra.mxu0 0
      %1168 = vmatprep.subr.bf16.mxu0 0
      %1169 = vmatpush1.bf16.xpose.msra.mxu0 0
      %1170 = vmatprep.subr.bf16.mxu0 0
      %1171 = vmatpush1.bf16.xpose.msra.mxu0 0
      %1172 = vmatprep.subr.bf16.mxu0 0
      %1173 = vmatpush1.bf16.xpose.msra.mxu0 0
      %1174 = vmatprep.mubr.bf16.mxu0 0
      %1175 = vmatmul.mubr.bf16.gmra.mrb[0].mxu0 %v1131
      %v1176 = vpop.f32.mrb[0].mxu0
      %v1177 = vadd.f32 %v624, %v1176
      %v1178 = vpop.f32.mrb[0].mxu0
      %v1179 = vpop.f32.mrb[0].mxu0
      %v1180 = vadd.f32 %v625, %v1179
      %v1181 = vpop.f32.mrb[0].mxu0
      %1182 = vmatprep.mubr.bf16.mxu0 0
      %1183 = vmatmul.mubr.bf16.gmra.mrb[0].mxu0 %v1134
      %v1184 = vpop.f32.mrb[0].mxu0
      %v1185 = vadd.f32 %v626, %v1184
      %v1186 = vpop.f32.mrb[0].mxu0
      %v1187 = vpop.f32.mrb[0].mxu0
      %v1188 = vadd.f32 %v627, %v1187
      %v1189 = vpop.f32.mrb[0].mxu0
      %1190 = vdwg.mxu0
      %s1191 = scalar_lea.vmem %s7, 4
      %v1192 = vld [vmem:[%s1191] sm:$0xf]
      %v1194 = vsel %vm849, %v1192, 0
      %1196 = vmatprep.subr.bf16.mxu0 0
      %1197 = vmatpush1.bf16.msra.mxu0 %v1194
      %1198 = vmatprep.subr.bf16.mxu0 0
      %1199 = vmatpush1.bf16.msra.mxu0 0
      %1200 = vmatprep.subr.bf16.mxu0 0
      %1201 = vmatpush1.bf16.msra.mxu0 0
      %1202 = vmatprep.subr.bf16.mxu0 0
      %1203 = vmatpush1.bf16.msra.mxu0 0
      %1204 = vmatprep.subr.bf16.mxu0 0
      %1205 = vmatpush1.bf16.msra.mxu0 0
      %1206 = vmatprep.subr.bf16.mxu0 0
      %1207 = vmatpush1.bf16.msra.mxu0 0
      %1208 = vmatprep.subr.bf16.mxu0 0
      %1209 = vmatpush1.bf16.msra.mxu0 0
      %1210 = vmatprep.subr.bf16.mxu0 0
      %1211 = vmatpush1.bf16.msra.mxu0 0
      %1212 = vmatprep.subr.bf16.mxu0 0
      %1213 = vmatpush1.bf16.msra.mxu0 0
      %1214 = vmatprep.subr.bf16.mxu0 0
      %1215 = vmatpush1.bf16.msra.mxu0 0
      %1216 = vmatprep.subr.bf16.mxu0 0
      %1217 = vmatpush1.bf16.msra.mxu0 0
      %1218 = vmatprep.subr.bf16.mxu0 0
      %1219 = vmatpush1.bf16.msra.mxu0 0
      %1220 = vmatprep.subr.bf16.mxu0 0
      %1221 = vmatpush1.bf16.msra.mxu0 0
      %1222 = vmatprep.subr.bf16.mxu0 0
      %1223 = vmatpush1.bf16.msra.mxu0 0
      %1224 = vmatprep.subr.bf16.mxu0 0
      %1225 = vmatpush1.bf16.msra.mxu0 0
      %1226 = vmatprep.subr.bf16.mxu0 0
      %1227 = vmatpush1.bf16.msra.mxu0 0
      %1228 = vmatprep.mubr.bf16.mxu0 0
      %1229 = vmatmul.mubr.bf16.gmra.mrb[0].mxu0 %v1131
      %v1230 = vpop.f32.mrb[0].mxu0
      %v1231 = vadd.f32 0.0, %v1230
      %v1232 = vpop.f32.mrb[0].mxu0
      %v1233 = vpop.f32.mrb[0].mxu0
      %v1234 = vadd.f32 0.0, %v1233
      %v1235 = vpop.f32.mrb[0].mxu0
      %1236 = vmatprep.mubr.bf16.mxu0 0
      %1237 = vmatmul.mubr.bf16.gmra.mrb[0].mxu0 %v1134
      %v1238 = vpop.f32.mrb[0].mxu0
      %v1239 = vadd.f32 0.0, %v1238
      %v1240 = vpop.f32.mrb[0].mxu0
      %v1241 = vpop.f32.mrb[0].mxu0
      %v1242 = vadd.f32 0.0, %v1241
      %v1243 = vpop.f32.mrb[0].mxu0
      %1244 = vdwg.mxu0
      %v1245 = vsel %vm902, %v1177, -inf
      %1246 = vmax.xlane.f32.xlu0 %v1245
      %v1247 = vpop.xlane.xlu0 %1246
      %v1248 = vsel %vm902, %v1180, -inf
      %1249 = vmax.xlane.f32.xlu0 %v1248
      %v1250 = vpop.xlane.xlu0 %1249
      %v1251 = vsel %vm902, %v1185, -inf
      %1252 = vmax.xlane.f32.xlu0 %v1251
      %v1253 = vpop.xlane.xlu0 %1252
      %v1254 = vsel %vm912, %v1188, -inf
      %1255 = vmax.xlane.f32.xlu0 %v1254
      %v1256 = vpop.xlane.xlu0 %1255
      %v1257 = vsel %vm916, %v1231, -inf
      %1258 = vmax.xlane.f32.xlu0 %v1257
      %v1259 = vpop.xlane.xlu0 %1258
      %v1260 = vsel %vm916, %v1234, -inf
      %1261 = vmax.xlane.f32.xlu0 %v1260
      %v1262 = vpop.xlane.xlu0 %1261
      %v1263 = vsel %vm916, %v1239, -inf
      %1264 = vmax.xlane.f32.xlu0 %v1263
      %v1265 = vpop.xlane.xlu0 %1264
      %v1266 = vsel %vm926, %v1242, -inf
      %1267 = vmax.xlane.f32.xlu0 %v1266
      %v1268 = vpop.xlane.xlu0 %1267
      %v1269 = vmax.f32 %v1247, %v1259
      %v1270 = vmax.f32 %v1250, %v1262
      %v1271 = vmax.f32 %v1253, %v1265
      %v1272 = vmax.f32 %v1256, %v1268
      %v1273 = vsub.f32 %v1177, %v1269
      %v1274 = vsub.f32 %v1180, %v1270
      %v1275 = vsub.f32 %v1185, %v1271
      %v1276 = vsub.f32 %v1188, %v1272
      %v1277 = vmul.f32 %v1273, 1.442695
      %v1278 = vpow.pop %v1277
      %v1279 = vmul.f32 %v1274, 1.442695
      %v1280 = vpow.pop %v1279
      %v1281 = vmul.f32 %v1275, 1.442695
      %v1282 = vpow.pop %v1281
      %v1283 = vmul.f32 %v1276, 1.442695
      %v1284 = vpow.pop %v1283
      %v1285 = vsub.f32 %v1231, %v1269
      %v1286 = vsub.f32 %v1234, %v1270
      %v1287 = vsub.f32 %v1239, %v1271
      %v1288 = vsub.f32 %v1242, %v1272
      %v1289 = vmul.f32 %v1285, 1.442695
      %v1290 = vpow.pop %v1289
      %v1291 = vmul.f32 %v1286, 1.442695
      %v1292 = vpow.pop %v1291
      %v1293 = vmul.f32 %v1287, 1.442695
      %v1294 = vpow.pop %v1293
      %v1295 = vmul.f32 %v1288, 1.442695
      %v1296 = vpow.pop %v1295
      %v1297 = vsel %vm902, %v1278, 0.0
      %1298 = vadd.xlane.f32.xlu0 %v1297
      %v1299 = vpop.xlane.xlu0 %1298
      %v1300 = vsel %vm902, %v1280, 0.0
      %1301 = vadd.xlane.f32.xlu0 %v1300
      %v1302 = vpop.xlane.xlu0 %1301
      %v1303 = vsel %vm902, %v1282, 0.0
      %1304 = vadd.xlane.f32.xlu0 %v1303
      %v1305 = vpop.xlane.xlu0 %1304
      %v1306 = vsel %vm912, %v1284, 0.0
      %1307 = vadd.xlane.f32.xlu0 %v1306
      %v1308 = vpop.xlane.xlu0 %1307
      %v1309 = vsel %vm916, %v1290, 0.0
      %1310 = vadd.xlane.f32.xlu0 %v1309
      %v1311 = vpop.xlane.xlu0 %1310
      %v1312 = vsel %vm916, %v1292, 0.0
      %1313 = vadd.xlane.f32.xlu0 %v1312
      %v1314 = vpop.xlane.xlu0 %1313
      %v1315 = vsel %vm916, %v1294, 0.0
      %1316 = vadd.xlane.f32.xlu0 %v1315
      %v1317 = vpop.xlane.xlu0 %1316
      %v1318 = vsel %vm926, %v1296, 0.0
      %1319 = vadd.xlane.f32.xlu0 %v1318
      %v1320 = vpop.xlane.xlu0 %1319
      %v1321 = vadd.f32 %v1299, %v1311
      %v1322 = vadd.f32 %v1302, %v1314
      %v1323 = vadd.f32 %v1305, %v1317
      %v1324 = vadd.f32 %v1308, %v1320
      %v1325 = vrcp.pop %v1321
      %v1326 = vrcp.pop %v1322
      %v1327 = vrcp.pop %v1323
      %v1328 = vrcp.pop %v1324
      %v1329 = vpack.c.bf16 %v1280, %v1278
      %v1330 = vpack.c.bf16 %v1284, %v1282
      %v1331 = vpack.c.bf16 %v1292, %v1290
      %v1332 = vpack.c.bf16 %v1296, %v1294
      %s1333 = scalar_lea.vmem %s8, 2
      %v1334 = vld [vmem:[%s1333] sm:$0x3]
      %v1336 = vsel %vm916, %v1331, 0
      %v1339 = vsel %vm916, %v1332, 0
      %v1342 = vsel %vm1001, %v1334, 0
      %1344 = vmatprep.subr.bf16.mxu0 0
      %1345 = vmatpush1.bf16.msra.mxu0 %v1342
      %1346 = vmatprep.subr.bf16.mxu0 0
      %1347 = vmatpush1.bf16.msra.mxu0 0
      %1348 = vmatprep.subr.bf16.mxu0 0
      %1349 = vmatpush1.bf16.msra.mxu0 0
      %1350 = vmatprep.subr.bf16.mxu0 0
      %1351 = vmatpush1.bf16.msra.mxu0 0
      %1352 = vmatprep.subr.bf16.mxu0 0
      %1353 = vmatpush1.bf16.msra.mxu0 0
      %1354 = vmatprep.subr.bf16.mxu0 0
      %1355 = vmatpush1.bf16.msra.mxu0 0
      %1356 = vmatprep.subr.bf16.mxu0 0
      %1357 = vmatpush1.bf16.msra.mxu0 0
      %1358 = vmatprep.subr.bf16.mxu0 0
      %1359 = vmatpush1.bf16.msra.mxu0 0
      %1360 = vmatprep.subr.bf16.mxu0 0
      %1361 = vmatpush1.bf16.msra.mxu0 0
      %1362 = vmatprep.subr.bf16.mxu0 0
      %1363 = vmatpush1.bf16.msra.mxu0 0
      %1364 = vmatprep.subr.bf16.mxu0 0
      %1365 = vmatpush1.bf16.msra.mxu0 0
      %1366 = vmatprep.subr.bf16.mxu0 0
      %1367 = vmatpush1.bf16.msra.mxu0 0
      %1368 = vmatprep.subr.bf16.mxu0 0
      %1369 = vmatpush1.bf16.msra.mxu0 0
      %1370 = vmatprep.subr.bf16.mxu0 0
      %1371 = vmatpush1.bf16.msra.mxu0 0
      %1372 = vmatprep.subr.bf16.mxu0 0
      %1373 = vmatpush1.bf16.msra.mxu0 0
      %1374 = vmatprep.subr.bf16.mxu0 0
      %1375 = vmatpush1.bf16.msra.mxu0 0
      %1376 = vmatprep.mubr.bf16.mxu0 0
      %1377 = vmatmul.mubr.bf16.gmra.mrb[0].mxu0 %v1336
      %v1378 = vpop.f32.mrb[0].mxu0
      %v1379 = vadd.f32 0.0, %v1378
      %v1380 = vpop.f32.mrb[0].mxu0
      %v1381 = vpop.f32.mrb[0].mxu0
      %v1382 = vadd.f32 0.0, %v1381
      %v1383 = vpop.f32.mrb[0].mxu0
      %1384 = vmatprep.mubr.bf16.mxu0 0
      %1385 = vmatmul.mubr.bf16.gmra.mrb[0].mxu0 %v1339
      %v1386 = vpop.f32.mrb[0].mxu0
      %v1387 = vadd.f32 0.0, %v1386
      %v1388 = vpop.f32.mrb[0].mxu0
      %v1389 = vpop.f32.mrb[0].mxu0
      %v1390 = vadd.f32 0.0, %v1389
      %v1391 = vpop.f32.mrb[0].mxu0
      %1392 = vdwg.mxu0
      %1393 = vrot.lane.b32.xlu0 %v778, 56
      %v1394 = vpop.permute.xlu0 %1393
      %1395 = vrot.lane.b32.xlu0 %v779, 56
      %v1396 = vpop.permute.xlu0 %1395
      %v1399 = vsel %vm902, %v1329, 0
      %v1402 = vsel %vm902, %v1330, 0
      %v1405 = vsel %vm1065, %v1396, 0
      %1407 = vmatprep.subr.bf16.mxu0 0
      %1408 = vmatpush1.bf16.msra.mxu0 %v1394
      %1409 = vmatprep.subr.bf16.mxu0 0
      %1410 = vmatpush1.bf16.msra.mxu0 %v1405
      %1411 = vmatprep.subr.bf16.mxu0 0
      %1412 = vmatpush1.bf16.msra.mxu0 0
      %1413 = vmatprep.subr.bf16.mxu0 0
      %1414 = vmatpush1.bf16.msra.mxu0 0
      %1415 = vmatprep.subr.bf16.mxu0 0
      %1416 = vmatpush1.bf16.msra.mxu0 0
      %1417 = vmatprep.subr.bf16.mxu0 0
      %1418 = vmatpush1.bf16.msra.mxu0 0
      %1419 = vmatprep.subr.bf16.mxu0 0
      %1420 = vmatpush1.bf16.msra.mxu0 0
      %1421 = vmatprep.subr.bf16.mxu0 0
      %1422 = vmatpush1.bf16.msra.mxu0 0
      %1423 = vmatprep.subr.bf16.mxu0 0
      %1424 = vmatpush1.bf16.msra.mxu0 0
      %1425 = vmatprep.subr.bf16.mxu0 0
      %1426 = vmatpush1.bf16.msra.mxu0 0
      %1427 = vmatprep.subr.bf16.mxu0 0
      %1428 = vmatpush1.bf16.msra.mxu0 0
      %1429 = vmatprep.subr.bf16.mxu0 0
      %1430 = vmatpush1.bf16.msra.mxu0 0
      %1431 = vmatprep.subr.bf16.mxu0 0
      %1432 = vmatpush1.bf16.msra.mxu0 0
      %1433 = vmatprep.subr.bf16.mxu0 0
      %1434 = vmatpush1.bf16.msra.mxu0 0
      %1435 = vmatprep.subr.bf16.mxu0 0
      %1436 = vmatpush1.bf16.msra.mxu0 0
      %1437 = vmatprep.subr.bf16.mxu0 0
      %1438 = vmatpush1.bf16.msra.mxu0 0
      %1439 = vmatprep.mubr.bf16.mxu0 0
      %1440 = vmatmul.mubr.bf16.gmra.mrb[0].mxu0 %v1399
      %v1441 = vpop.f32.mrb[0].mxu0
      %v1442 = vadd.f32 %v1379, %v1441
      %v1443 = vpop.f32.mrb[0].mxu0
      %v1444 = vpop.f32.mrb[0].mxu0
      %v1445 = vadd.f32 %v1382, %v1444
      %v1446 = vpop.f32.mrb[0].mxu0
      %1447 = vmatprep.mubr.bf16.mxu0 0
      %1448 = vmatmul.mubr.bf16.gmra.mrb[0].mxu0 %v1402
      %v1449 = vpop.f32.mrb[0].mxu0
      %v1450 = vadd.f32 %v1387, %v1449
      %v1451 = vpop.f32.mrb[0].mxu0
      %v1452 = vpop.f32.mrb[0].mxu0
      %v1453 = vadd.f32 %v1390, %v1452
      %v1454 = vpop.f32.mrb[0].mxu0
      %1455 = vdwg.mxu0
      %v1456 = vmul.f32 %v1442, %v1325
      %v1457 = vmul.f32 %v1445, %v1326
      %v1458 = vmul.f32 %v1450, %v1327
      %v1459 = vmul.f32 %v1453, %v1328
      %1460 = vrot.lane.b32.xlu0 %v778, 112
      %v1461 = vpop.permute.xlu0 %1460
      %1462 = vrot.lane.b32.xlu0 %v779, 112
      %v1463 = vpop.permute.xlu0 %1462
      %1464 = vrot.lane.b32.xlu0 %v778, 80
      %v1465 = vpop.permute.xlu0 %1464
      %1466 = vrot.lane.b32.xlu0 %v779, 80
      %v1467 = vpop.permute.xlu0 %1466
      %v1469 = vsel %vm786, %v1461, 0
      %v1472 = vsel %vm786, %v1463, 0
      %v1475 = vsel %vm786, %v1465, 0
      %v1478 = vsel %vm786, %v1467, 0
      %1480 = vmatprep.subr.bf16.mxu0 0
      %1481 = vmatpush1.bf16.xpose.msra.mxu0 %v1475
      %1482 = vmatprep.subr.bf16.mxu0 0
      %1483 = vmatpush1.bf16.xpose.msra.mxu0 %v1478
      %1484 = vmatprep.subr.bf16.mxu0 0
      %1485 = vmatpush1.bf16.xpose.msra.mxu0 0
      %1486 = vmatprep.subr.bf16.mxu0 0
      %1487 = vmatpush1.bf16.xpose.msra.mxu0 0
      %1488 = vmatprep.subr.bf16.mxu0 0
      %1489 = vmatpush1.bf16.xpose.msra.mxu0 0
      %1490 = vmatprep.subr.bf16.mxu0 0
      %1491 = vmatpush1.bf16.xpose.msra.mxu0 0
      %1492 = vmatprep.subr.bf16.mxu0 0
      %1493 = vmatpush1.bf16.xpose.msra.mxu0 0
      %1494 = vmatprep.subr.bf16.mxu0 0
      %1495 = vmatpush1.bf16.xpose.msra.mxu0 0
      %1496 = vmatprep.subr.bf16.mxu0 0
      %1497 = vmatpush1.bf16.xpose.msra.mxu0 0
      %1498 = vmatprep.subr.bf16.mxu0 0
      %1499 = vmatpush1.bf16.xpose.msra.mxu0 0
      %1500 = vmatprep.subr.bf16.mxu0 0
      %1501 = vmatpush1.bf16.xpose.msra.mxu0 0
      %1502 = vmatprep.subr.bf16.mxu0 0
      %1503 = vmatpush1.bf16.xpose.msra.mxu0 0
      %1504 = vmatprep.subr.bf16.mxu0 0
      %1505 = vmatpush1.bf16.xpose.msra.mxu0 0
      %1506 = vmatprep.subr.bf16.mxu0 0
      %1507 = vmatpush1.bf16.xpose.msra.mxu0 0
      %1508 = vmatprep.subr.bf16.mxu0 0
      %1509 = vmatpush1.bf16.xpose.msra.mxu0 0
      %1510 = vmatprep.subr.bf16.mxu0 0
      %1511 = vmatpush1.bf16.xpose.msra.mxu0 0
      %1512 = vmatprep.mubr.bf16.mxu0 0
      %1513 = vmatmul.mubr.bf16.gmra.mrb[0].mxu0 %v1469
      %v1514 = vpop.f32.mrb[0].mxu0
      %v1515 = vadd.f32 %v624, %v1514
      %v1516 = vpop.f32.mrb[0].mxu0
      %v1517 = vpop.f32.mrb[0].mxu0
      %v1518 = vadd.f32 %v625, %v1517
      %v1519 = vpop.f32.mrb[0].mxu0
      %1520 = vmatprep.mubr.bf16.mxu0 0
      %1521 = vmatmul.mubr.bf16.gmra.mrb[0].mxu0 %v1472
      %v1522 = vpop.f32.mrb[0].mxu0
      %v1523 = vadd.f32 %v626, %v1522
      %v1524 = vpop.f32.mrb[0].mxu0
      %v1525 = vpop.f32.mrb[0].mxu0
      %v1526 = vadd.f32 %v627, %v1525
      %v1527 = vpop.f32.mrb[0].mxu0
      %1528 = vdwg.mxu0
      %s1529 = scalar_lea.vmem %s7, 8
      %v1530 = vld [vmem:[%s1529] sm:$0xf]
      %v1532 = vsel %vm849, %v1530, 0
      %1534 = vmatprep.subr.bf16.mxu0 0
      %1535 = vmatpush1.bf16.msra.mxu0 %v1532
      %1536 = vmatprep.subr.bf16.mxu0 0
      %1537 = vmatpush1.bf16.msra.mxu0 0
      %1538 = vmatprep.subr.bf16.mxu0 0
      %1539 = vmatpush1.bf16.msra.mxu0 0
      %1540 = vmatprep.subr.bf16.mxu0 0
      %1541 = vmatpush1.bf16.msra.mxu0 0
      %1542 = vmatprep.subr.bf16.mxu0 0
      %1543 = vmatpush1.bf16.msra.mxu0 0
      %1544 = vmatprep.subr.bf16.mxu0 0
      %1545 = vmatpush1.bf16.msra.mxu0 0
      %1546 = vmatprep.subr.bf16.mxu0 0
      %1547 = vmatpush1.bf16.msra.mxu0 0
      %1548 = vmatprep.subr.bf16.mxu0 0
      %1549 = vmatpush1.bf16.msra.mxu0 0
      %1550 = vmatprep.subr.bf16.mxu0 0
      %1551 = vmatpush1.bf16.msra.mxu0 0
      %1552 = vmatprep.subr.bf16.mxu0 0
      %1553 = vmatpush1.bf16.msra.mxu0 0
      %1554 = vmatprep.subr.bf16.mxu0 0
      %1555 = vmatpush1.bf16.msra.mxu0 0
      %1556 = vmatprep.subr.bf16.mxu0 0
      %1557 = vmatpush1.bf16.msra.mxu0 0
      %1558 = vmatprep.subr.bf16.mxu0 0
      %1559 = vmatpush1.bf16.msra.mxu0 0
      %1560 = vmatprep.subr.bf16.mxu0 0
      %1561 = vmatpush1.bf16.msra.mxu0 0
      %1562 = vmatprep.subr.bf16.mxu0 0
      %1563 = vmatpush1.bf16.msra.mxu0 0
      %1564 = vmatprep.subr.bf16.mxu0 0
      %1565 = vmatpush1.bf16.msra.mxu0 0
      %1566 = vmatprep.mubr.bf16.mxu0 0
      %1567 = vmatmul.mubr.bf16.gmra.mrb[0].mxu0 %v1469
      %v1568 = vpop.f32.mrb[0].mxu0
      %v1569 = vadd.f32 0.0, %v1568
      %v1570 = vpop.f32.mrb[0].mxu0
      %v1571 = vpop.f32.mrb[0].mxu0
      %v1572 = vadd.f32 0.0, %v1571
      %v1573 = vpop.f32.mrb[0].mxu0
      %1574 = vmatprep.mubr.bf16.mxu0 0
      %1575 = vmatmul.mubr.bf16.gmra.mrb[0].mxu0 %v1472
      %v1576 = vpop.f32.mrb[0].mxu0
      %v1577 = vadd.f32 0.0, %v1576
      %v1578 = vpop.f32.mrb[0].mxu0
      %v1579 = vpop.f32.mrb[0].mxu0
      %v1580 = vadd.f32 0.0, %v1579
      %v1581 = vpop.f32.mrb[0].mxu0
      %1582 = vdwg.mxu0
      %v1583 = vsel %vm902, %v1515, -inf
      %1584 = vmax.xlane.f32.xlu0 %v1583
      %v1585 = vpop.xlane.xlu0 %1584
      %v1586 = vsel %vm902, %v1518, -inf
      %1587 = vmax.xlane.f32.xlu0 %v1586
      %v1588 = vpop.xlane.xlu0 %1587
      %v1589 = vsel %vm902, %v1523, -inf
      %1590 = vmax.xlane.f32.xlu0 %v1589
      %v1591 = vpop.xlane.xlu0 %1590
      %v1592 = vsel %vm912, %v1526, -inf
      %1593 = vmax.xlane.f32.xlu0 %v1592
      %v1594 = vpop.xlane.xlu0 %1593
      %v1595 = vsel %vm916, %v1569, -inf
      %1596 = vmax.xlane.f32.xlu0 %v1595
      %v1597 = vpop.xlane.xlu0 %1596
      %v1598 = vsel %vm916, %v1572, -inf
      %1599 = vmax.xlane.f32.xlu0 %v1598
      %v1600 = vpop.xlane.xlu0 %1599
      %v1601 = vsel %vm916, %v1577, -inf
      %1602 = vmax.xlane.f32.xlu0 %v1601
      %v1603 = vpop.xlane.xlu0 %1602
      %v1604 = vsel %vm926, %v1580, -inf
      %1605 = vmax.xlane.f32.xlu0 %v1604
      %v1606 = vpop.xlane.xlu0 %1605
      %v1607 = vmax.f32 %v1585, %v1597
      %v1608 = vmax.f32 %v1588, %v1600
      %v1609 = vmax.f32 %v1591, %v1603
      %v1610 = vmax.f32 %v1594, %v1606
      %v1611 = vsub.f32 %v1515, %v1607
      %v1612 = vsub.f32 %v1518, %v1608
      %v1613 = vsub.f32 %v1523, %v1609
      %v1614 = vsub.f32 %v1526, %v1610
      %v1615 = vmul.f32 %v1611, 1.442695
      %v1616 = vpow.pop %v1615
      %v1617 = vmul.f32 %v1612, 1.442695
      %v1618 = vpow.pop %v1617
      %v1619 = vmul.f32 %v1613, 1.442695
      %v1620 = vpow.pop %v1619
      %v1621 = vmul.f32 %v1614, 1.442695
      %v1622 = vpow.pop %v1621
      %v1623 = vsub.f32 %v1569, %v1607
      %v1624 = vsub.f32 %v1572, %v1608
      %v1625 = vsub.f32 %v1577, %v1609
      %v1626 = vsub.f32 %v1580, %v1610
      %v1627 = vmul.f32 %v1623, 1.442695
      %v1628 = vpow.pop %v1627
      %v1629 = vmul.f32 %v1624, 1.442695
      %v1630 = vpow.pop %v1629
      %v1631 = vmul.f32 %v1625, 1.442695
      %v1632 = vpow.pop %v1631
      %v1633 = vmul.f32 %v1626, 1.442695
      %v1634 = vpow.pop %v1633
      %v1635 = vsel %vm902, %v1616, 0.0
      %1636 = vadd.xlane.f32.xlu0 %v1635
      %v1637 = vpop.xlane.xlu0 %1636
      %v1638 = vsel %vm902, %v1618, 0.0
      %1639 = vadd.xlane.f32.xlu0 %v1638
      %v1640 = vpop.xlane.xlu0 %1639
      %v1641 = vsel %vm902, %v1620, 0.0
      %1642 = vadd.xlane.f32.xlu0 %v1641
      %v1643 = vpop.xlane.xlu0 %1642
      %v1644 = vsel %vm912, %v1622, 0.0
      %1645 = vadd.xlane.f32.xlu0 %v1644
      %v1646 = vpop.xlane.xlu0 %1645
      %v1647 = vsel %vm916, %v1628, 0.0
      %1648 = vadd.xlane.f32.xlu0 %v1647
      %v1649 = vpop.xlane.xlu0 %1648
      %v1650 = vsel %vm916, %v1630, 0.0
      %1651 = vadd.xlane.f32.xlu0 %v1650
      %v1652 = vpop.xlane.xlu0 %1651
      %v1653 = vsel %vm916, %v1632, 0.0
      %1654 = vadd.xlane.f32.xlu0 %v1653
      %v1655 = vpop.xlane.xlu0 %1654
      %v1656 = vsel %vm926, %v1634, 0.0
      %1657 = vadd.xlane.f32.xlu0 %v1656
      %v1658 = vpop.xlane.xlu0 %1657
      %v1659 = vadd.f32 %v1637, %v1649
      %v1660 = vadd.f32 %v1640, %v1652
      %v1661 = vadd.f32 %v1643, %v1655
      %v1662 = vadd.f32 %v1646, %v1658
      %v1663 = vrcp.pop %v1659
      %v1664 = vrcp.pop %v1660
      %v1665 = vrcp.pop %v1661
      %v1666 = vrcp.pop %v1662
      %v1667 = vpack.c.bf16 %v1618, %v1616
      %v1668 = vpack.c.bf16 %v1622, %v1620
      %v1669 = vpack.c.bf16 %v1630, %v1628
      %v1670 = vpack.c.bf16 %v1634, %v1632
      %s1671 = scalar_lea.vmem %s8, 4
      %v1672 = vld [vmem:[%s1671] sm:$0x3]
      %v1674 = vsel %vm916, %v1669, 0
      %v1677 = vsel %vm916, %v1670, 0
      %v1680 = vsel %vm1001, %v1672, 0
      %1682 = vmatprep.subr.bf16.mxu0 0
      %1683 = vmatpush1.bf16.msra.mxu0 %v1680
      %1684 = vmatprep.subr.bf16.mxu0 0
      %1685 = vmatpush1.bf16.msra.mxu0 0
      %1686 = vmatprep.subr.bf16.mxu0 0
      %1687 = vmatpush1.bf16.msra.mxu0 0
      %1688 = vmatprep.subr.bf16.mxu0 0
      %1689 = vmatpush1.bf16.msra.mxu0 0
      %1690 = vmatprep.subr.bf16.mxu0 0
      %1691 = vmatpush1.bf16.msra.mxu0 0
      %1692 = vmatprep.subr.bf16.mxu0 0
      %1693 = vmatpush1.bf16.msra.mxu0 0
      %1694 = vmatprep.subr.bf16.mxu0 0
      %1695 = vmatpush1.bf16.msra.mxu0 0
      %1696 = vmatprep.subr.bf16.mxu0 0
      %1697 = vmatpush1.bf16.msra.mxu0 0
      %1698 = vmatprep.subr.bf16.mxu0 0
      %1699 = vmatpush1.bf16.msra.mxu0 0
      %1700 = vmatprep.subr.bf16.mxu0 0
      %1701 = vmatpush1.bf16.msra.mxu0 0
      %1702 = vmatprep.subr.bf16.mxu0 0
      %1703 = vmatpush1.bf16.msra.mxu0 0
      %1704 = vmatprep.subr.bf16.mxu0 0
      %1705 = vmatpush1.bf16.msra.mxu0 0
      %1706 = vmatprep.subr.bf16.mxu0 0
      %1707 = vmatpush1.bf16.msra.mxu0 0
      %1708 = vmatprep.subr.bf16.mxu0 0
      %1709 = vmatpush1.bf16.msra.mxu0 0
      %1710 = vmatprep.subr.bf16.mxu0 0
      %1711 = vmatpush1.bf16.msra.mxu0 0
      %1712 = vmatprep.subr.bf16.mxu0 0
      %1713 = vmatpush1.bf16.msra.mxu0 0
      %1714 = vmatprep.mubr.bf16.mxu0 0
      %1715 = vmatmul.mubr.bf16.gmra.mrb[0].mxu0 %v1674
      %v1716 = vpop.f32.mrb[0].mxu0
      %v1717 = vadd.f32 0.0, %v1716
      %v1718 = vpop.f32.mrb[0].mxu0
      %v1719 = vpop.f32.mrb[0].mxu0
      %v1720 = vadd.f32 0.0, %v1719
      %v1721 = vpop.f32.mrb[0].mxu0
      %1722 = vmatprep.mubr.bf16.mxu0 0
      %1723 = vmatmul.mubr.bf16.gmra.mrb[0].mxu0 %v1677
      %v1724 = vpop.f32.mrb[0].mxu0
      %v1725 = vadd.f32 0.0, %v1724
      %v1726 = vpop.f32.mrb[0].mxu0
      %v1727 = vpop.f32.mrb[0].mxu0
      %v1728 = vadd.f32 0.0, %v1727
      %v1729 = vpop.f32.mrb[0].mxu0
      %1730 = vdwg.mxu0
      %1731 = vrot.lane.b32.xlu0 %v778, 48
      %v1732 = vpop.permute.xlu0 %1731
      %1733 = vrot.lane.b32.xlu0 %v779, 48
      %v1734 = vpop.permute.xlu0 %1733
      %v1737 = vsel %vm902, %v1667, 0
      %v1740 = vsel %vm902, %v1668, 0
      %v1743 = vsel %vm1065, %v1734, 0
      %1745 = vmatprep.subr.bf16.mxu0 0
      %1746 = vmatpush1.bf16.msra.mxu0 %v1732
      %1747 = vmatprep.subr.bf16.mxu0 0
      %1748 = vmatpush1.bf16.msra.mxu0 %v1743
      %1749 = vmatprep.subr.bf16.mxu0 0
      %1750 = vmatpush1.bf16.msra.mxu0 0
      %1751 = vmatprep.subr.bf16.mxu0 0
      %1752 = vmatpush1.bf16.msra.mxu0 0
      %1753 = vmatprep.subr.bf16.mxu0 0
      %1754 = vmatpush1.bf16.msra.mxu0 0
      %1755 = vmatprep.subr.bf16.mxu0 0
      %1756 = vmatpush1.bf16.msra.mxu0 0
      %1757 = vmatprep.subr.bf16.mxu0 0
      %1758 = vmatpush1.bf16.msra.mxu0 0
      %1759 = vmatprep.subr.bf16.mxu0 0
      %1760 = vmatpush1.bf16.msra.mxu0 0
      %1761 = vmatprep.subr.bf16.mxu0 0
      %1762 = vmatpush1.bf16.msra.mxu0 0
      %1763 = vmatprep.subr.bf16.mxu0 0
      %1764 = vmatpush1.bf16.msra.mxu0 0
      %1765 = vmatprep.subr.bf16.mxu0 0
      %1766 = vmatpush1.bf16.msra.mxu0 0
      %1767 = vmatprep.subr.bf16.mxu0 0
      %1768 = vmatpush1.bf16.msra.mxu0 0
      %1769 = vmatprep.subr.bf16.mxu0 0
      %1770 = vmatpush1.bf16.msra.mxu0 0
      %1771 = vmatprep.subr.bf16.mxu0 0
      %1772 = vmatpush1.bf16.msra.mxu0 0
      %1773 = vmatprep.subr.bf16.mxu0 0
      %1774 = vmatpush1.bf16.msra.mxu0 0
      %1775 = vmatprep.subr.bf16.mxu0 0
      %1776 = vmatpush1.bf16.msra.mxu0 0
      %1777 = vmatprep.mubr.bf16.mxu0 0
      %1778 = vmatmul.mubr.bf16.gmra.mrb[0].mxu0 %v1737
      %v1779 = vpop.f32.mrb[0].mxu0
      %v1780 = vadd.f32 %v1717, %v1779
      %v1781 = vpop.f32.mrb[0].mxu0
      %v1782 = vpop.f32.mrb[0].mxu0
      %v1783 = vadd.f32 %v1720, %v1782
      %v1784 = vpop.f32.mrb[0].mxu0
      %1785 = vmatprep.mubr.bf16.mxu0 0
      %1786 = vmatmul.mubr.bf16.gmra.mrb[0].mxu0 %v1740
      %v1787 = vpop.f32.mrb[0].mxu0
      %v1788 = vadd.f32 %v1725, %v1787
      %v1789 = vpop.f32.mrb[0].mxu0
      %v1790 = vpop.f32.mrb[0].mxu0
      %v1791 = vadd.f32 %v1728, %v1790
      %v1792 = vpop.f32.mrb[0].mxu0
      %1793 = vdwg.mxu0
      %v1794 = vmul.f32 %v1780, %v1663
      %v1795 = vmul.f32 %v1783, %v1664
      %v1796 = vmul.f32 %v1788, %v1665
      %v1797 = vmul.f32 %v1791, %v1666
      %1798 = vrot.lane.b32.xlu0 %v778, 104
      %v1799 = vpop.permute.xlu0 %1798
      %1800 = vrot.lane.b32.xlu0 %v779, 104
      %v1801 = vpop.permute.xlu0 %1800
      %1802 = vrot.lane.b32.xlu0 %v778, 72
      %v1803 = vpop.permute.xlu0 %1802
      %1804 = vrot.lane.b32.xlu0 %v779, 72
      %v1805 = vpop.permute.xlu0 %1804
      %v1807 = vsel %vm786, %v1799, 0
      %v1810 = vsel %vm786, %v1801, 0
      %v1813 = vsel %vm786, %v1803, 0
      %v1816 = vsel %vm786, %v1805, 0
      %1818 = vmatprep.subr.bf16.mxu0 0
      %1819 = vmatpush1.bf16.xpose.msra.mxu0 %v1813
      %1820 = vmatprep.subr.bf16.mxu0 0
      %1821 = vmatpush1.bf16.xpose.msra.mxu0 %v1816
      %1822 = vmatprep.subr.bf16.mxu0 0
      %1823 = vmatpush1.bf16.xpose.msra.mxu0 0
      %1824 = vmatprep.subr.bf16.mxu0 0
      %1825 = vmatpush1.bf16.xpose.msra.mxu0 0
      %1826 = vmatprep.subr.bf16.mxu0 0
      %1827 = vmatpush1.bf16.xpose.msra.mxu0 0
      %1828 = vmatprep.subr.bf16.mxu0 0
      %1829 = vmatpush1.bf16.xpose.msra.mxu0 0
      %1830 = vmatprep.subr.bf16.mxu0 0
      %1831 = vmatpush1.bf16.xpose.msra.mxu0 0
      %1832 = vmatprep.subr.bf16.mxu0 0
      %1833 = vmatpush1.bf16.xpose.msra.mxu0 0
      %1834 = vmatprep.subr.bf16.mxu0 0
      %1835 = vmatpush1.bf16.xpose.msra.mxu0 0
      %1836 = vmatprep.subr.bf16.mxu0 0
      %1837 = vmatpush1.bf16.xpose.msra.mxu0 0
      %1838 = vmatprep.subr.bf16.mxu0 0
      %1839 = vmatpush1.bf16.xpose.msra.mxu0 0
      %1840 = vmatprep.subr.bf16.mxu0 0
      %1841 = vmatpush1.bf16.xpose.msra.mxu0 0
      %1842 = vmatprep.subr.bf16.mxu0 0
      %1843 = vmatpush1.bf16.xpose.msra.mxu0 0
      %1844 = vmatprep.subr.bf16.mxu0 0
      %1845 = vmatpush1.bf16.xpose.msra.mxu0 0
      %1846 = vmatprep.subr.bf16.mxu0 0
      %1847 = vmatpush1.bf16.xpose.msra.mxu0 0
      %1848 = vmatprep.subr.bf16.mxu0 0
      %1849 = vmatpush1.bf16.xpose.msra.mxu0 0
      %1850 = vmatprep.mubr.bf16.mxu0 0
      %1851 = vmatmul.mubr.bf16.gmra.mrb[0].mxu0 %v1807
      %v1852 = vpop.f32.mrb[0].mxu0
      %v1853 = vadd.f32 %v624, %v1852
      %v1854 = vpop.f32.mrb[0].mxu0
      %v1855 = vpop.f32.mrb[0].mxu0
      %v1856 = vadd.f32 %v625, %v1855
      %v1857 = vpop.f32.mrb[0].mxu0
      %1858 = vmatprep.mubr.bf16.mxu0 0
      %1859 = vmatmul.mubr.bf16.gmra.mrb[0].mxu0 %v1810
      %v1860 = vpop.f32.mrb[0].mxu0
      %v1861 = vadd.f32 %v626, %v1860
      %v1862 = vpop.f32.mrb[0].mxu0
      %v1863 = vpop.f32.mrb[0].mxu0
      %v1864 = vadd.f32 %v627, %v1863
      %v1865 = vpop.f32.mrb[0].mxu0
      %1866 = vdwg.mxu0
      %s1867 = scalar_lea.vmem %s7, 12
      %v1868 = vld [vmem:[%s1867] sm:$0xf]
      %v1870 = vsel %vm849, %v1868, 0
      %1872 = vmatprep.subr.bf16.mxu0 0
      %1873 = vmatpush1.bf16.msra.mxu0 %v1870
      %1874 = vmatprep.subr.bf16.mxu0 0
      %1875 = vmatpush1.bf16.msra.mxu0 0
      %1876 = vmatprep.subr.bf16.mxu0 0
      %1877 = vmatpush1.bf16.msra.mxu0 0
      %1878 = vmatprep.subr.bf16.mxu0 0
      %1879 = vmatpush1.bf16.msra.mxu0 0
      %1880 = vmatprep.subr.bf16.mxu0 0
      %1881 = vmatpush1.bf16.msra.mxu0 0
      %1882 = vmatprep.subr.bf16.mxu0 0
      %1883 = vmatpush1.bf16.msra.mxu0 0
      %1884 = vmatprep.subr.bf16.mxu0 0
      %1885 = vmatpush1.bf16.msra.mxu0 0
      %1886 = vmatprep.subr.bf16.mxu0 0
      %1887 = vmatpush1.bf16.msra.mxu0 0
      %1888 = vmatprep.subr.bf16.mxu0 0
      %1889 = vmatpush1.bf16.msra.mxu0 0
      %1890 = vmatprep.subr.bf16.mxu0 0
      %1891 = vmatpush1.bf16.msra.mxu0 0
      %1892 = vmatprep.subr.bf16.mxu0 0
      %1893 = vmatpush1.bf16.msra.mxu0 0
      %1894 = vmatprep.subr.bf16.mxu0 0
      %1895 = vmatpush1.bf16.msra.mxu0 0
      %1896 = vmatprep.subr.bf16.mxu0 0
      %1897 = vmatpush1.bf16.msra.mxu0 0
      %1898 = vmatprep.subr.bf16.mxu0 0
      %1899 = vmatpush1.bf16.msra.mxu0 0
      %1900 = vmatprep.subr.bf16.mxu0 0
      %1901 = vmatpush1.bf16.msra.mxu0 0
      %1902 = vmatprep.subr.bf16.mxu0 0
      %1903 = vmatpush1.bf16.msra.mxu0 0
      %1904 = vmatprep.mubr.bf16.mxu0 0
      %1905 = vmatmul.mubr.bf16.gmra.mrb[0].mxu0 %v1807
      %v1906 = vpop.f32.mrb[0].mxu0
      %v1907 = vadd.f32 0.0, %v1906
      %v1908 = vpop.f32.mrb[0].mxu0
      %v1909 = vpop.f32.mrb[0].mxu0
      %v1910 = vadd.f32 0.0, %v1909
      %v1911 = vpop.f32.mrb[0].mxu0
      %1912 = vmatprep.mubr.bf16.mxu0 0
      %1913 = vmatmul.mubr.bf16.gmra.mrb[0].mxu0 %v1810
      %v1914 = vpop.f32.mrb[0].mxu0
      %v1915 = vadd.f32 0.0, %v1914
      %v1916 = vpop.f32.mrb[0].mxu0
      %v1917 = vpop.f32.mrb[0].mxu0
      %v1918 = vadd.f32 0.0, %v1917
      %v1919 = vpop.f32.mrb[0].mxu0
      %1920 = vdwg.mxu0
      %v1921 = vsel %vm902, %v1853, -inf
      %1922 = vmax.xlane.f32.xlu0 %v1921
      %v1923 = vpop.xlane.xlu0 %1922
      %v1924 = vsel %vm902, %v1856, -inf
      %1925 = vmax.xlane.f32.xlu0 %v1924
      %v1926 = vpop.xlane.xlu0 %1925
      %v1927 = vsel %vm902, %v1861, -inf
      %1928 = vmax.xlane.f32.xlu0 %v1927
      %v1929 = vpop.xlane.xlu0 %1928
      %v1930 = vsel %vm912, %v1864, -inf
      %1931 = vmax.xlane.f32.xlu0 %v1930
      %v1932 = vpop.xlane.xlu0 %1931
      %v1933 = vsel %vm916, %v1907, -inf
      %1934 = vmax.xlane.f32.xlu0 %v1933
      %v1935 = vpop.xlane.xlu0 %1934
      %v1936 = vsel %vm916, %v1910, -inf
      %1937 = vmax.xlane.f32.xlu0 %v1936
      %v1938 = vpop.xlane.xlu0 %1937
      %v1939 = vsel %vm916, %v1915, -inf
      %1940 = vmax.xlane.f32.xlu0 %v1939
      %v1941 = vpop.xlane.xlu0 %1940
      %v1942 = vsel %vm926, %v1918, -inf
      %1943 = vmax.xlane.f32.xlu0 %v1942
      %v1944 = vpop.xlane.xlu0 %1943
      %v1945 = vmax.f32 %v1923, %v1935
      %v1946 = vmax.f32 %v1926, %v1938
      %v1947 = vmax.f32 %v1929, %v1941
      %v1948 = vmax.f32 %v1932, %v1944
      %v1949 = vsub.f32 %v1853, %v1945
      %v1950 = vsub.f32 %v1856, %v1946
      %v1951 = vsub.f32 %v1861, %v1947
      %v1952 = vsub.f32 %v1864, %v1948
      %v1953 = vmul.f32 %v1949, 1.442695
      %v1954 = vpow.pop %v1953
      %v1955 = vmul.f32 %v1950, 1.442695
      %v1956 = vpow.pop %v1955
      %v1957 = vmul.f32 %v1951, 1.442695
      %v1958 = vpow.pop %v1957
      %v1959 = vmul.f32 %v1952, 1.442695
      %v1960 = vpow.pop %v1959
      %v1961 = vsub.f32 %v1907, %v1945
      %v1962 = vsub.f32 %v1910, %v1946
      %v1963 = vsub.f32 %v1915, %v1947
      %v1964 = vsub.f32 %v1918, %v1948
      %v1965 = vmul.f32 %v1961, 1.442695
      %v1966 = vpow.pop %v1965
      %v1967 = vmul.f32 %v1962, 1.442695
      %v1968 = vpow.pop %v1967
      %v1969 = vmul.f32 %v1963, 1.442695
      %v1970 = vpow.pop %v1969
      %v1971 = vmul.f32 %v1964, 1.442695
      %v1972 = vpow.pop %v1971
      %v1973 = vsel %vm902, %v1954, 0.0
      %1974 = vadd.xlane.f32.xlu0 %v1973
      %v1975 = vpop.xlane.xlu0 %1974
      %v1976 = vsel %vm902, %v1956, 0.0
      %1977 = vadd.xlane.f32.xlu0 %v1976
      %v1978 = vpop.xlane.xlu0 %1977
      %v1979 = vsel %vm902, %v1958, 0.0
      %1980 = vadd.xlane.f32.xlu0 %v1979
      %v1981 = vpop.xlane.xlu0 %1980
      %v1982 = vsel %vm912, %v1960, 0.0
      %1983 = vadd.xlane.f32.xlu0 %v1982
      %v1984 = vpop.xlane.xlu0 %1983
      %v1985 = vsel %vm916, %v1966, 0.0
      %1986 = vadd.xlane.f32.xlu0 %v1985
      %v1987 = vpop.xlane.xlu0 %1986
      %v1988 = vsel %vm916, %v1968, 0.0
      %1989 = vadd.xlane.f32.xlu0 %v1988
      %v1990 = vpop.xlane.xlu0 %1989
      %v1991 = vsel %vm916, %v1970, 0.0
      %1992 = vadd.xlane.f32.xlu0 %v1991
      %v1993 = vpop.xlane.xlu0 %1992
      %v1994 = vsel %vm926, %v1972, 0.0
      %1995 = vadd.xlane.f32.xlu0 %v1994
      %v1996 = vpop.xlane.xlu0 %1995
      %v1997 = vadd.f32 %v1975, %v1987
      %v1998 = vadd.f32 %v1978, %v1990
      %v1999 = vadd.f32 %v1981, %v1993
      %v2000 = vadd.f32 %v1984, %v1996
      %v2001 = vrcp.pop %v1997
      %v2002 = vrcp.pop %v1998
      %v2003 = vrcp.pop %v1999
      %v2004 = vrcp.pop %v2000
      %v2005 = vpack.c.bf16 %v1956, %v1954
      %v2006 = vpack.c.bf16 %v1960, %v1958
      %v2007 = vpack.c.bf16 %v1968, %v1966
      %v2008 = vpack.c.bf16 %v1972, %v1970
      %s2009 = scalar_lea.vmem %s8, 6
      %v2010 = vld [vmem:[%s2009] sm:$0x3]
      %v2012 = vsel %vm916, %v2007, 0
      %v2015 = vsel %vm916, %v2008, 0
      %v2018 = vsel %vm1001, %v2010, 0
      %2020 = vmatprep.subr.bf16.mxu0 0
      %2021 = vmatpush1.bf16.msra.mxu0 %v2018
      %2022 = vmatprep.subr.bf16.mxu0 0
      %2023 = vmatpush1.bf16.msra.mxu0 0
      %2024 = vmatprep.subr.bf16.mxu0 0
      %2025 = vmatpush1.bf16.msra.mxu0 0
      %2026 = vmatprep.subr.bf16.mxu0 0
      %2027 = vmatpush1.bf16.msra.mxu0 0
      %2028 = vmatprep.subr.bf16.mxu0 0
      %2029 = vmatpush1.bf16.msra.mxu0 0
      %2030 = vmatprep.subr.bf16.mxu0 0
      %2031 = vmatpush1.bf16.msra.mxu0 0
      %2032 = vmatprep.subr.bf16.mxu0 0
      %2033 = vmatpush1.bf16.msra.mxu0 0
      %2034 = vmatprep.subr.bf16.mxu0 0
      %2035 = vmatpush1.bf16.msra.mxu0 0
      %2036 = vmatprep.subr.bf16.mxu0 0
      %2037 = vmatpush1.bf16.msra.mxu0 0
      %2038 = vmatprep.subr.bf16.mxu0 0
      %2039 = vmatpush1.bf16.msra.mxu0 0
      %2040 = vmatprep.subr.bf16.mxu0 0
      %2041 = vmatpush1.bf16.msra.mxu0 0
      %2042 = vmatprep.subr.bf16.mxu0 0
      %2043 = vmatpush1.bf16.msra.mxu0 0
      %2044 = vmatprep.subr.bf16.mxu0 0
      %2045 = vmatpush1.bf16.msra.mxu0 0
      %2046 = vmatprep.subr.bf16.mxu0 0
      %2047 = vmatpush1.bf16.msra.mxu0 0
      %2048 = vmatprep.subr.bf16.mxu0 0
      %2049 = vmatpush1.bf16.msra.mxu0 0
      %2050 = vmatprep.subr.bf16.mxu0 0
      %2051 = vmatpush1.bf16.msra.mxu0 0
      %2052 = vmatprep.mubr.bf16.mxu0 0
      %2053 = vmatmul.mubr.bf16.gmra.mrb[0].mxu0 %v2012
      %v2054 = vpop.f32.mrb[0].mxu0
      %v2055 = vadd.f32 0.0, %v2054
      %v2056 = vpop.f32.mrb[0].mxu0
      %v2057 = vpop.f32.mrb[0].mxu0
      %v2058 = vadd.f32 0.0, %v2057
      %v2059 = vpop.f32.mrb[0].mxu0
      %2060 = vmatprep.mubr.bf16.mxu0 0
      %2061 = vmatmul.mubr.bf16.gmra.mrb[0].mxu0 %v2015
      %v2062 = vpop.f32.mrb[0].mxu0
      %v2063 = vadd.f32 0.0, %v2062
      %v2064 = vpop.f32.mrb[0].mxu0
      %v2065 = vpop.f32.mrb[0].mxu0
      %v2066 = vadd.f32 0.0, %v2065
      %v2067 = vpop.f32.mrb[0].mxu0
      %2068 = vdwg.mxu0
      %2069 = vrot.lane.b32.xlu0 %v778, 40
      %v2070 = vpop.permute.xlu0 %2069
      %2071 = vrot.lane.b32.xlu0 %v779, 40
      %v2072 = vpop.permute.xlu0 %2071
      %v2075 = vsel %vm902, %v2005, 0
      %v2078 = vsel %vm902, %v2006, 0
      %v2081 = vsel %vm1065, %v2072, 0
      %2083 = vmatprep.subr.bf16.mxu0 0
      %2084 = vmatpush1.bf16.msra.mxu0 %v2070
      %2085 = vmatprep.subr.bf16.mxu0 0
      %2086 = vmatpush1.bf16.msra.mxu0 %v2081
      %2087 = vmatprep.subr.bf16.mxu0 0
      %2088 = vmatpush1.bf16.msra.mxu0 0
      %2089 = vmatprep.subr.bf16.mxu0 0
      %2090 = vmatpush1.bf16.msra.mxu0 0
      %2091 = vmatprep.subr.bf16.mxu0 0
      %2092 = vmatpush1.bf16.msra.mxu0 0
      %2093 = vmatprep.subr.bf16.mxu0 0
      %2094 = vmatpush1.bf16.msra.mxu0 0
      %2095 = vmatprep.subr.bf16.mxu0 0
      %2096 = vmatpush1.bf16.msra.mxu0 0
      %2097 = vmatprep.subr.bf16.mxu0 0
      %2098 = vmatpush1.bf16.msra.mxu0 0
      %2099 = vmatprep.subr.bf16.mxu0 0
      %2100 = vmatpush1.bf16.msra.mxu0 0
      %2101 = vmatprep.subr.bf16.mxu0 0
      %2102 = vmatpush1.bf16.msra.mxu0 0
      %2103 = vmatprep.subr.bf16.mxu0 0
      %2104 = vmatpush1.bf16.msra.mxu0 0
      %2105 = vmatprep.subr.bf16.mxu0 0
      %2106 = vmatpush1.bf16.msra.mxu0 0
      %2107 = vmatprep.subr.bf16.mxu0 0
      %2108 = vmatpush1.bf16.msra.mxu0 0
      %2109 = vmatprep.subr.bf16.mxu0 0
      %2110 = vmatpush1.bf16.msra.mxu0 0
      %2111 = vmatprep.subr.bf16.mxu0 0
      %2112 = vmatpush1.bf16.msra.mxu0 0
      %2113 = vmatprep.subr.bf16.mxu0 0
      %2114 = vmatpush1.bf16.msra.mxu0 0
      %2115 = vmatprep.mubr.bf16.mxu0 0
      %2116 = vmatmul.mubr.bf16.gmra.mrb[0].mxu0 %v2075
      %v2117 = vpop.f32.mrb[0].mxu0
      %v2118 = vadd.f32 %v2055, %v2117
      %v2119 = vpop.f32.mrb[0].mxu0
      %v2120 = vpop.f32.mrb[0].mxu0
      %v2121 = vadd.f32 %v2058, %v2120
      %v2122 = vpop.f32.mrb[0].mxu0
      %2123 = vmatprep.mubr.bf16.mxu0 0
      %2124 = vmatmul.mubr.bf16.gmra.mrb[0].mxu0 %v2078
      %v2125 = vpop.f32.mrb[0].mxu0
      %v2126 = vadd.f32 %v2063, %v2125
      %v2127 = vpop.f32.mrb[0].mxu0
      %v2128 = vpop.f32.mrb[0].mxu0
      %v2129 = vadd.f32 %v2066, %v2128
      %v2130 = vpop.f32.mrb[0].mxu0
      %2131 = vdwg.mxu0
      %v2132 = vmul.f32 %v2118, %v2001
      %v2133 = vmul.f32 %v2121, %v2002
      %v2134 = vmul.f32 %v2126, %v2003
      %v2135 = vmul.f32 %v2129, %v2004
      %2140 = vrot.lane.b32.xlu0 %v1456, 8
      %v2141 = vpop.permute.xlu0 %2140
      %2142 = vrot.lane.b32.xlu0 %v1457, 8
      %v2143 = vpop.permute.xlu0 %2142
      %2144 = vrot.lane.b32.xlu0 %v1458, 8
      %v2145 = vpop.permute.xlu0 %2144
      %2146 = vrot.lane.b32.xlu0 %v1459, 8
      %v2147 = vpop.permute.xlu0 %2146
      %2156 = vrot.lane.b32.xlu0 %v1794, 16
      %v2157 = vpop.permute.xlu0 %2156
      %2158 = vrot.lane.b32.xlu0 %v1795, 16
      %v2159 = vpop.permute.xlu0 %2158
      %2160 = vrot.lane.b32.xlu0 %v1796, 16
      %v2161 = vpop.permute.xlu0 %2160
      %2162 = vrot.lane.b32.xlu0 %v1797, 16
      %v2163 = vpop.permute.xlu0 %2162
      %2172 = vrot.lane.b32.xlu0 %v2132, 24
      %v2173 = vpop.permute.xlu0 %2172
      %2174 = vrot.lane.b32.xlu0 %v2133, 24
      %v2175 = vpop.permute.xlu0 %2174
      %2176 = vrot.lane.b32.xlu0 %v2134, 24
      %v2177 = vpop.permute.xlu0 %2176
      %2178 = vrot.lane.b32.xlu0 %v2135, 24
      %v2179 = vpop.permute.xlu0 %2178
      %v2184 = vsel %vm786, %v1118, %v2141
      %v2185 = vsel %vm786, %v1119, %v2143
      %v2186 = vsel %vm786, %v1120, %v2145
      %v2187 = vsel %vm786, %v1121, %v2147
      %vm2188 = vcmask 130048
      %v2189 = vsel %vm2188, %v2184, %v2157
      %v2190 = vsel %vm2188, %v2185, %v2159
      %v2191 = vsel %vm2188, %v2186, %v2161
      %v2192 = vsel %vm2188, %v2187, %v2163
      %vm2193 = vcmask 195584
      %v2194 = vsel %vm2193, %v2189, %v2173
      %v2195 = vsel %vm2193, %v2190, %v2175
      %v2196 = vsel %vm2193, %v2191, %v2177
      %v2197 = vsel %vm2193, %v2192, %v2179
      %v2198 = vpack.c.bf16 %v2195, %v2194
      %v2199 = vpack.c.bf16 %v2197, %v2196
      %v2200 = vld [vmem:[%s6] sm:$0xf]
      %v2201 = vld [vmem:[%s6 + $0x4] sm:$0xf]
      %v2202 = vld [vmem:[%s6 + $0x8] sm:$0xf]
      %v2203 = vld [vmem:[%s6 + $0xc] sm:$0xf]
      %v2208 = vunpack.c.l.b16 %v2200
      %v2209 = vunpack.c.l.b16 %v2201
      %v2210 = vunpack.c.l.b16 %v2202
      %v2211 = vunpack.c.l.b16 %v2203
      %v2212 = vpack.c.b16 %v2209, %v2208
      %v2213 = vpack.c.b16 %v2211, %v2210
      %v2217 = vsel %vm630, %v2198, 0
      %v2220 = vsel %vm630, %v2199, 0
      %2222 = vmatprep.subr.bf16.mxu0 0
      %2223 = vmatpush1.bf16.msra.mxu0 %v2212
      %2224 = vmatprep.subr.bf16.mxu0 0
      %2225 = vmatpush1.bf16.msra.mxu0 %v2213
      %2226 = vmatprep.subr.bf16.mxu0 0
      %2227 = vmatpush1.bf16.msra.mxu0 0
      %2228 = vmatprep.subr.bf16.mxu0 0
      %2229 = vmatpush1.bf16.msra.mxu0 0
      %2230 = vmatprep.subr.bf16.mxu0 0
      %2231 = vmatpush1.bf16.msra.mxu0 0
      %2232 = vmatprep.subr.bf16.mxu0 0
      %2233 = vmatpush1.bf16.msra.mxu0 0
      %2234 = vmatprep.subr.bf16.mxu0 0
      %2235 = vmatpush1.bf16.msra.mxu0 0
      %2236 = vmatprep.subr.bf16.mxu0 0
      %2237 = vmatpush1.bf16.msra.mxu0 0
      %2238 = vmatprep.subr.bf16.mxu0 0
      %2239 = vmatpush1.bf16.msra.mxu0 0
      %2240 = vmatprep.subr.bf16.mxu0 0
      %2241 = vmatpush1.bf16.msra.mxu0 0
      %2242 = vmatprep.subr.bf16.mxu0 0
      %2243 = vmatpush1.bf16.msra.mxu0 0
      %2244 = vmatprep.subr.bf16.mxu0 0
      %2245 = vmatpush1.bf16.msra.mxu0 0
      %2246 = vmatprep.subr.bf16.mxu0 0
      %2247 = vmatpush1.bf16.msra.mxu0 0
      %2248 = vmatprep.subr.bf16.mxu0 0
      %2249 = vmatpush1.bf16.msra.mxu0 0
      %2250 = vmatprep.subr.bf16.mxu0 0
      %2251 = vmatpush1.bf16.msra.mxu0 0
      %2252 = vmatprep.subr.bf16.mxu0 0
      %2253 = vmatpush1.bf16.msra.mxu0 0
      %2254 = vmatprep.mubr.bf16.mxu0 0
      %2255 = vmatmul.mubr.bf16.gmra.mrb[0].mxu0 %v2217
      %v2256 = vpop.f32.mrb[0].mxu0
      %v2257 = vadd.f32 0.0, %v2256
      %v2258 = vpop.f32.mrb[0].mxu0
      %v2259 = vpop.f32.mrb[0].mxu0
      %v2260 = vadd.f32 0.0, %v2259
      %v2261 = vpop.f32.mrb[0].mxu0
      %2262 = vmatprep.mubr.bf16.mxu0 0
      %2263 = vmatmul.mubr.bf16.gmra.mrb[0].mxu0 %v2220
      %v2264 = vpop.f32.mrb[0].mxu0
      %v2265 = vadd.f32 0.0, %v2264
      %v2266 = vpop.f32.mrb[0].mxu0
      %v2267 = vpop.f32.mrb[0].mxu0
      %v2268 = vadd.f32 0.0, %v2267
      %v2269 = vpop.f32.mrb[0].mxu0
      %2270 = vdwg.mxu0
      %v2271 = vadd.f32 %v620, %v2257
      %v2272 = vadd.f32 %v621, %v2260
      %v2273 = vadd.f32 %v622, %v2265
      %v2274 = vadd.f32 %v623, %v2268
      %v2275 = vld [vmem:[%s9] sm:$0x1]
      %v2276 = vld [vmem:[%s10] sm:$0x1]
      %v2277 = vsel %vm630, %v2271, 0.0
      %2278 = vadd.xlane.f32.xlu0 %v2277
      %v2279 = vpop.xlane.xlu0 %2278
      %v2280 = vsel %vm630, %v2272, 0.0
      %2281 = vadd.xlane.f32.xlu0 %v2280
      %v2282 = vpop.xlane.xlu0 %2281
      %v2283 = vsel %vm630, %v2273, 0.0
      %2284 = vadd.xlane.f32.xlu0 %v2283
      %v2285 = vpop.xlane.xlu0 %2284
      %v2286 = vsel %vm640, %v2274, 0.0
      %2287 = vadd.xlane.f32.xlu0 %v2286
      %v2288 = vpop.xlane.xlu0 %2287
      %v2289 = vmul.f32 %v2279, %v644
      %v2290 = vmul.f32 %v2282, %v644
      %v2291 = vmul.f32 %v2285, %v644
      %v2292 = vmul.f32 %v2288, %v644
      %v2293 = vsub.f32 %v2271, %v2289
      %v2294 = vsub.f32 %v2272, %v2290
      %v2295 = vsub.f32 %v2273, %v2291
      %v2296 = vsub.f32 %v2274, %v2292
      %v2297 = vmul.f32 %v2293, %v2293
      %v2298 = vmul.f32 %v2294, %v2294
      %v2299 = vmul.f32 %v2295, %v2295
      %v2300 = vmul.f32 %v2296, %v2296
      %v2301 = vsel %vm630, %v2297, 0.0
      %2302 = vadd.xlane.f32.xlu0 %v2301
      %v2303 = vpop.xlane.xlu0 %2302
      %v2304 = vsel %vm630, %v2298, 0.0
      %2305 = vadd.xlane.f32.xlu0 %v2304
      %v2306 = vpop.xlane.xlu0 %2305
      %v2307 = vsel %vm630, %v2299, 0.0
      %2308 = vadd.xlane.f32.xlu0 %v2307
      %v2309 = vpop.xlane.xlu0 %2308
      %v2310 = vsel %vm640, %v2300, 0.0
      %2311 = vadd.xlane.f32.xlu0 %v2310
      %v2312 = vpop.xlane.xlu0 %2311
      %v2313 = vmul.f32 %v2303, %v644
      %v2314 = vmul.f32 %v2306, %v644
      %v2315 = vmul.f32 %v2309, %v644
      %v2316 = vmul.f32 %v2312, %v644
      %v2317 = vadd.f32 %v2313, 1e-05
      %v2318 = vadd.f32 %v2314, 1e-05
      %v2319 = vadd.f32 %v2315, 1e-05
      %v2320 = vadd.f32 %v2316, 1e-05
      %v2321 = vrsqrt.pop %v2317
      %v2322 = vrsqrt.pop %v2318
      %v2323 = vrsqrt.pop %v2319
      %v2324 = vrsqrt.pop %v2320
      %v2325 = vmul.f32 %v2293, %v2321
      %v2326 = vmul.f32 %v2294, %v2322
      %v2327 = vmul.f32 %v2295, %v2323
      %v2328 = vmul.f32 %v2296, %v2324
      %v2330 = vlaneseq
      %v2331 = vshrl.u32 %v2330, 7
      %v2332 = vsub.s32 0, %v2331
      %v2333 = vrot.slane %v2275, %v2332
      %v2335 = vmul.f32 %v2325, %v2333
      %v2336 = vmul.f32 %v2326, %v2333
      %v2337 = vmul.f32 %v2327, %v2333
      %v2338 = vmul.f32 %v2328, %v2333
      %v2340 = vlaneseq
      %v2341 = vshrl.u32 %v2340, 7
      %v2342 = vsub.s32 0, %v2341
      %v2343 = vrot.slane %v2276, %v2342
      %v2345 = vadd.f32 %v2335, %v2343
      %v2346 = vadd.f32 %v2336, %v2343
      %v2347 = vadd.f32 %v2337, %v2343
      %v2348 = vadd.f32 %v2338, %v2343
      %v2349 = vpack.c.bf16 %v2346, %v2345
      %v2350 = vpack.c.bf16 %v2348, %v2347
      %v2351 = vld [vmem:[%s11] sm:$0xff]
      %v2352 = vld [vmem:[%s11 + $0x8] sm:$0xff]
      %v2353 = vld [vmem:[%s11 + $0x10] sm:$0xff]
      %v2354 = vld [vmem:[%s11 + $0x18] sm:$0xff]
      %v2355 = vld [vmem:[%s12] sm:$0x3]
      %v2357 = vlaneseq
      %v2358 = vshrl.u32 %v2357, 7
      %v2359 = vsub.s32 0, %v2358
      %v2360 = vrot.slane %v2355, %v2359
      %v2361 = vlaneseq
      %v2362 = vshrl.u32 %v2361, 7
      %v2363 = vsub.s32 1, %v2362
      %v2364 = vrot.slane %v2355, %v2363
      %v2371 = vunpack.c.l.b16 %v2351
      %v2372 = vunpack.c.h.b16 %v2351
      %v2373 = vunpack.c.l.b16 %v2352
      %v2374 = vunpack.c.h.b16 %v2352
      %v2375 = vunpack.c.l.b16 %v2353
      %v2376 = vunpack.c.h.b16 %v2353
      %v2377 = vunpack.c.l.b16 %v2354
      %v2378 = vunpack.c.h.b16 %v2354
      %v2379 = vpack.c.b16 %v2373, %v2371
      %v2380 = vpack.c.b16 %v2374, %v2372
      %v2381 = vpack.c.b16 %v2377, %v2375
      %v2382 = vpack.c.b16 %v2378, %v2376
      %v2388 = vsel %vm630, %v2349, 0
      %v2391 = vsel %vm630, %v2350, 0
      %2393 = vmatprep.subr.bf16.mxu0 %v2380
      %2394 = vmatpush1.bf16.msra.mxu0 %v2379
      %2395 = vmatprep.subr.bf16.mxu0 %v2382
      %2396 = vmatpush1.bf16.msra.mxu0 %v2381
      %2397 = vmatprep.subr.bf16.mxu0 0
      %2398 = vmatpush1.bf16.msra.mxu0 0
      %2399 = vmatprep.subr.bf16.mxu0 0
      %2400 = vmatpush1.bf16.msra.mxu0 0
      %2401 = vmatprep.subr.bf16.mxu0 0
      %2402 = vmatpush1.bf16.msra.mxu0 0
      %2403 = vmatprep.subr.bf16.mxu0 0
      %2404 = vmatpush1.bf16.msra.mxu0 0
      %2405 = vmatprep.subr.bf16.mxu0 0
      %2406 = vmatpush1.bf16.msra.mxu0 0
      %2407 = vmatprep.subr.bf16.mxu0 0
      %2408 = vmatpush1.bf16.msra.mxu0 0
      %2409 = vmatprep.subr.bf16.mxu0 0
      %2410 = vmatpush1.bf16.msra.mxu0 0
      %2411 = vmatprep.subr.bf16.mxu0 0
      %2412 = vmatpush1.bf16.msra.mxu0 0
      %2413 = vmatprep.subr.bf16.mxu0 0
      %2414 = vmatpush1.bf16.msra.mxu0 0
      %2415 = vmatprep.subr.bf16.mxu0 0
      %2416 = vmatpush1.bf16.msra.mxu0 0
      %2417 = vmatprep.subr.bf16.mxu0 0
      %2418 = vmatpush1.bf16.msra.mxu0 0
      %2419 = vmatprep.subr.bf16.mxu0 0
      %2420 = vmatpush1.bf16.msra.mxu0 0
      %2421 = vmatprep.subr.bf16.mxu0 0
      %2422 = vmatpush1.bf16.msra.mxu0 0
      %2423 = vmatprep.subr.bf16.mxu0 0
      %2424 = vmatpush1.bf16.msra.mxu0 0
      %2425 = vmatprep.mubr.bf16.mxu0 0
      %2426 = vmatmul.mubr.bf16.gmra.mrb[0].mxu0 %v2388
      %v2427 = vpop.f32.mrb[0].mxu0
      %v2428 = vadd.f32 %v2360, %v2427
      %v2429 = vpop.f32.mrb[0].mxu0
      %v2430 = vadd.f32 %v2364, %v2429
      %v2431 = vpop.f32.mrb[0].mxu0
      %v2432 = vadd.f32 %v2360, %v2431
      %v2433 = vpop.f32.mrb[0].mxu0
      %v2434 = vadd.f32 %v2364, %v2433
      %2435 = vmatprep.mubr.bf16.mxu0 0
      %2436 = vmatmul.mubr.bf16.gmra.mrb[0].mxu0 %v2391
      %v2437 = vpop.f32.mrb[0].mxu0
      %v2438 = vadd.f32 %v2360, %v2437
      %v2439 = vpop.f32.mrb[0].mxu0
      %v2440 = vadd.f32 %v2364, %v2439
      %v2441 = vpop.f32.mrb[0].mxu0
      %v2442 = vadd.f32 %v2360, %v2441
      %v2443 = vpop.f32.mrb[0].mxu0
      %v2444 = vadd.f32 %v2364, %v2443
      %2445 = vdwg.mxu0
      %v2446 = vmul.f32 %v2430, 0.5
      %v2447 = vmul.f32 %v2434, 0.5
      %v2448 = vmul.f32 %v2440, 0.5
      %v2449 = vmul.f32 %v2444, 0.5
      %v2450 = vmul.f32 %v2430, 0.044715
      %v2451 = vmul.f32 %v2434, 0.044715
      %v2452 = vmul.f32 %v2440, 0.044715
      %v2453 = vmul.f32 %v2444, 0.044715
      %v2454 = vmul.f32 %v2450, %v2430
      %v2455 = vmul.f32 %v2451, %v2434
      %v2456 = vmul.f32 %v2452, %v2440
      %v2457 = vmul.f32 %v2453, %v2444
      %v2458 = vmul.f32 %v2454, %v2430
      %v2459 = vmul.f32 %v2455, %v2434
      %v2460 = vmul.f32 %v2456, %v2440
      %v2461 = vmul.f32 %v2457, %v2444
      %v2462 = vadd.f32 %v2430, %v2458
      %v2463 = vadd.f32 %v2434, %v2459
      %v2464 = vadd.f32 %v2440, %v2460
      %v2465 = vadd.f32 %v2444, %v2461
      %v2466 = vmul.f32 %v2462, 0.7978846
      %v2467 = vmul.f32 %v2463, 0.7978846
      %v2468 = vmul.f32 %v2464, 0.7978846
      %v2469 = vmul.f32 %v2465, 0.7978846
      %v2470 = vtanh.pop %v2466
      %v2471 = vtanh.pop %v2467
      %v2472 = vtanh.pop %v2468
      %v2473 = vtanh.pop %v2469
      %v2474 = vadd.f32 %v2470, 1.0
      %v2475 = vadd.f32 %v2471, 1.0
      %v2476 = vadd.f32 %v2472, 1.0
      %v2477 = vadd.f32 %v2473, 1.0
      %v2478 = vmul.f32 %v2446, %v2474
      %v2479 = vmul.f32 %v2447, %v2475
      %v2480 = vmul.f32 %v2448, %v2476
      %v2481 = vmul.f32 %v2449, %v2477
      %v2482 = vmul.f32 %v2428, %v2478
      %v2483 = vmul.f32 %v2432, %v2479
      %v2484 = vmul.f32 %v2438, %v2480
      %v2485 = vmul.f32 %v2442, %v2481
      %v2486 = vpack.c.bf16 %v2483, %v2482
      %v2487 = vpack.c.bf16 %v2485, %v2484
      %v2488 = vld [vmem:[%s13] sm:$0xf]
      %v2489 = vld [vmem:[%s13 + $0x4] sm:$0xf]
      %v2490 = vld [vmem:[%s13 + $0x8] sm:$0xf]
      %v2491 = vld [vmem:[%s13 + $0xc] sm:$0xf]
      %v2492 = vld [vmem:[%s13 + $0x10] sm:$0xf]
      %v2493 = vld [vmem:[%s13 + $0x14] sm:$0xf]
      %v2494 = vld [vmem:[%s13 + $0x18] sm:$0xf]
      %v2495 = vld [vmem:[%s13 + $0x1c] sm:$0xf]
      %v2496 = vld [vmem:[%s13 + $0x20] sm:$0xf]
      %v2497 = vld [vmem:[%s13 + $0x24] sm:$0xf]
      %v2498 = vld [vmem:[%s13 + $0x28] sm:$0xf]
      %v2499 = vld [vmem:[%s13 + $0x2c] sm:$0xf]
      %v2500 = vld [vmem:[%s13 + $0x30] sm:$0xf]
      %v2501 = vld [vmem:[%s13 + $0x34] sm:$0xf]
      %v2502 = vld [vmem:[%s13 + $0x38] sm:$0xf]
      %v2503 = vld [vmem:[%s13 + $0x3c] sm:$0xf]
      %v2504 = vld [vmem:[%s14] sm:$0x1]
      %v2506 = vlaneseq
      %v2507 = vshrl.u32 %v2506, 7
      %v2508 = vsub.s32 0, %v2507
      %v2509 = vrot.slane %v2504, %v2508
      %v2527 = vunpack.c.l.b16 %v2488
      %v2528 = vunpack.c.l.b16 %v2489
      %v2529 = vunpack.c.l.b16 %v2490
      %v2530 = vunpack.c.l.b16 %v2491
      %v2531 = vunpack.c.l.b16 %v2492
      %v2532 = vunpack.c.l.b16 %v2493
      %v2533 = vunpack.c.l.b16 %v2494
      %v2534 = vunpack.c.l.b16 %v2495
      %v2535 = vunpack.c.l.b16 %v2496
      %v2536 = vunpack.c.l.b16 %v2497
      %v2537 = vunpack.c.l.b16 %v2498
      %v2538 = vunpack.c.l.b16 %v2499
      %v2539 = vunpack.c.l.b16 %v2500
      %v2540 = vunpack.c.l.b16 %v2501
      %v2541 = vunpack.c.l.b16 %v2502
      %v2542 = vunpack.c.l.b16 %v2503
      %v2543 = vpack.c.b16 %v2528, %v2527
      %v2544 = vpack.c.b16 %v2530, %v2529
      %v2545 = vpack.c.b16 %v2532, %v2531
      %v2546 = vpack.c.b16 %v2534, %v2533
      %v2547 = vpack.c.b16 %v2536, %v2535
      %v2548 = vpack.c.b16 %v2538, %v2537
      %v2549 = vpack.c.b16 %v2540, %v2539
      %v2550 = vpack.c.b16 %v2542, %v2541
      %2559 = vmatprep.subr.bf16.mxu0 0
      %2560 = vmatpush1.bf16.msra.mxu0 %v2543
      %2561 = vmatprep.subr.bf16.mxu0 0
      %2562 = vmatpush1.bf16.msra.mxu0 %v2544
      %2563 = vmatprep.subr.bf16.mxu0 0
      %2564 = vmatpush1.bf16.msra.mxu0 %v2545
      %2565 = vmatprep.subr.bf16.mxu0 0
      %2566 = vmatpush1.bf16.msra.mxu0 %v2546
      %2567 = vmatprep.subr.bf16.mxu0 0
      %2568 = vmatpush1.bf16.msra.mxu0 %v2547
      %2569 = vmatprep.subr.bf16.mxu0 0
      %2570 = vmatpush1.bf16.msra.mxu0 %v2548
      %2571 = vmatprep.subr.bf16.mxu0 0
      %2572 = vmatpush1.bf16.msra.mxu0 %v2549
      %2573 = vmatprep.subr.bf16.mxu0 0
      %2574 = vmatpush1.bf16.msra.mxu0 %v2550
      %2575 = vmatprep.subr.bf16.mxu0 0
      %2576 = vmatpush1.bf16.msra.mxu0 0
      %2577 = vmatprep.subr.bf16.mxu0 0
      %2578 = vmatpush1.bf16.msra.mxu0 0
      %2579 = vmatprep.subr.bf16.mxu0 0
      %2580 = vmatpush1.bf16.msra.mxu0 0
      %2581 = vmatprep.subr.bf16.mxu0 0
      %2582 = vmatpush1.bf16.msra.mxu0 0
      %2583 = vmatprep.subr.bf16.mxu0 0
      %2584 = vmatpush1.bf16.msra.mxu0 0
      %2585 = vmatprep.subr.bf16.mxu0 0
      %2586 = vmatpush1.bf16.msra.mxu0 0
      %2587 = vmatprep.subr.bf16.mxu0 0
      %2588 = vmatpush1.bf16.msra.mxu0 0
      %2589 = vmatprep.subr.bf16.mxu0 0
      %2590 = vmatpush1.bf16.msra.mxu0 0
      %2591 = vmatprep.mubr.bf16.mxu0 0
      %2592 = vmatmul.mubr.bf16.gmra.mrb[0].mxu0 %v2486
      %v2593 = vpop.f32.mrb[0].mxu0
      %v2594 = vadd.f32 %v2509, %v2593
      %v2595 = vpop.f32.mrb[0].mxu0
      %v2596 = vpop.f32.mrb[0].mxu0
      %v2597 = vadd.f32 %v2509, %v2596
      %v2598 = vpop.f32.mrb[0].mxu0
      %2599 = vmatprep.mubr.bf16.mxu0 0
      %2600 = vmatmul.mubr.bf16.gmra.mrb[0].mxu0 %v2487
      %v2601 = vpop.f32.mrb[0].mxu0
      %v2602 = vadd.f32 %v2509, %v2601
      %v2603 = vpop.f32.mrb[0].mxu0
      %v2604 = vpop.f32.mrb[0].mxu0
      %v2605 = vadd.f32 %v2509, %v2604
      %v2606 = vpop.f32.mrb[0].mxu0
      %2607 = vdwg.mxu0
      %v2608 = vadd.f32 %v2271, %v2594
      %v2609 = vadd.f32 %v2272, %v2597
      %v2610 = vadd.f32 %v2273, %v2602
      %v2611 = vadd.f32 %v2274, %v2605
      %s2612 = scalar_lea.vmem %s3, 1
      %v2613 = vld [vmem:[%s2612] sm:$0x1]
      %s2614 = scalar_lea.vmem %s4, 1
      %v2615 = vld [vmem:[%s2614] sm:$0x1]
      %v2616 = vsel %vm630, %v2608, 0.0
      %2617 = vadd.xlane.f32.xlu0 %v2616
      %v2618 = vpop.xlane.xlu0 %2617
      %v2619 = vsel %vm630, %v2609, 0.0
      %2620 = vadd.xlane.f32.xlu0 %v2619
      %v2621 = vpop.xlane.xlu0 %2620
      %v2622 = vsel %vm630, %v2610, 0.0
      %2623 = vadd.xlane.f32.xlu0 %v2622
      %v2624 = vpop.xlane.xlu0 %2623
      %v2625 = vsel %vm640, %v2611, 0.0
      %2626 = vadd.xlane.f32.xlu0 %v2625
      %v2627 = vpop.xlane.xlu0 %2626
      %v2628 = vmul.f32 %v2618, %v644
      %v2629 = vmul.f32 %v2621, %v644
      %v2630 = vmul.f32 %v2624, %v644
      %v2631 = vmul.f32 %v2627, %v644
      %v2632 = vsub.f32 %v2608, %v2628
      %v2633 = vsub.f32 %v2609, %v2629
      %v2634 = vsub.f32 %v2610, %v2630
      %v2635 = vsub.f32 %v2611, %v2631
      %v2636 = vmul.f32 %v2632, %v2632
      %v2637 = vmul.f32 %v2633, %v2633
      %v2638 = vmul.f32 %v2634, %v2634
      %v2639 = vmul.f32 %v2635, %v2635
      %v2640 = vsel %vm630, %v2636, 0.0
      %2641 = vadd.xlane.f32.xlu0 %v2640
      %v2642 = vpop.xlane.xlu0 %2641
      %v2643 = vsel %vm630, %v2637, 0.0
      %2644 = vadd.xlane.f32.xlu0 %v2643
      %v2645 = vpop.xlane.xlu0 %2644
      %v2646 = vsel %vm630, %v2638, 0.0
      %2647 = vadd.xlane.f32.xlu0 %v2646
      %v2648 = vpop.xlane.xlu0 %2647
      %v2649 = vsel %vm640, %v2639, 0.0
      %2650 = vadd.xlane.f32.xlu0 %v2649
      %v2651 = vpop.xlane.xlu0 %2650
      %v2652 = vmul.f32 %v2642, %v644
      %v2653 = vmul.f32 %v2645, %v644
      %v2654 = vmul.f32 %v2648, %v644
      %v2655 = vmul.f32 %v2651, %v644
      %v2656 = vadd.f32 %v2652, 1e-05
      %v2657 = vadd.f32 %v2653, 1e-05
      %v2658 = vadd.f32 %v2654, 1e-05
      %v2659 = vadd.f32 %v2655, 1e-05
      %v2660 = vrsqrt.pop %v2656
      %v2661 = vrsqrt.pop %v2657
      %v2662 = vrsqrt.pop %v2658
      %v2663 = vrsqrt.pop %v2659
      %v2664 = vmul.f32 %v2632, %v2660
      %v2665 = vmul.f32 %v2633, %v2661
      %v2666 = vmul.f32 %v2634, %v2662
      %v2667 = vmul.f32 %v2635, %v2663
      %v2669 = vlaneseq
      %v2670 = vshrl.u32 %v2669, 7
      %v2671 = vsub.s32 0, %v2670
      %v2672 = vrot.slane %v2613, %v2671
      %v2674 = vmul.f32 %v2664, %v2672
      %v2675 = vmul.f32 %v2665, %v2672
      %v2676 = vmul.f32 %v2666, %v2672
      %v2677 = vmul.f32 %v2667, %v2672
      %v2679 = vlaneseq
      %v2680 = vshrl.u32 %v2679, 7
      %v2681 = vsub.s32 0, %v2680
      %v2682 = vrot.slane %v2615, %v2681
      %v2684 = vadd.f32 %v2674, %v2682
      %v2685 = vadd.f32 %v2675, %v2682
      %v2686 = vadd.f32 %v2676, %v2682
      %v2687 = vadd.f32 %v2677, %v2682
      %v2688 = vpack.c.bf16 %v2685, %v2684
      %v2689 = vpack.c.bf16 %v2687, %v2686
      %s2690 = scalar_lea.vmem %s5, 16
      %v2691 = vld [vmem:[%s2690] sm:$0xf]
      %v2692 = vld [vmem:[%s2690 + $0x4] sm:$0xf]
      %v2693 = vld [vmem:[%s2690 + $0x8] sm:$0xf]
      %v2694 = vld [vmem:[%s2690 + $0xc] sm:$0xf]
      %v2699 = vunpack.c.l.b16 %v2691
      %v2700 = vunpack.c.l.b16 %v2692
      %v2701 = vunpack.c.l.b16 %v2693
      %v2702 = vunpack.c.l.b16 %v2694
      %v2703 = vpack.c.b16 %v2700, %v2699
      %v2704 = vpack.c.b16 %v2702, %v2701
      %v2708 = vsel %vm630, %v2688, 0
      %v2711 = vsel %vm630, %v2689, 0
      %2713 = vmatprep.subr.bf16.mxu0 0
      %2714 = vmatpush1.bf16.msra.mxu0 %v2703
      %2715 = vmatprep.subr.bf16.mxu0 0
      %2716 = vmatpush1.bf16.msra.mxu0 %v2704
      %2717 = vmatprep.subr.bf16.mxu0 0
      %2718 = vmatpush1.bf16.msra.mxu0 0
      %2719 = vmatprep.subr.bf16.mxu0 0
      %2720 = vmatpush1.bf16.msra.mxu0 0
      %2721 = vmatprep.subr.bf16.mxu0 0
      %2722 = vmatpush1.bf16.msra.mxu0 0
      %2723 = vmatprep.subr.bf16.mxu0 0
      %2724 = vmatpush1.bf16.msra.mxu0 0
      %2725 = vmatprep.subr.bf16.mxu0 0
      %2726 = vmatpush1.bf16.msra.mxu0 0
      %2727 = vmatprep.subr.bf16.mxu0 0
      %2728 = vmatpush1.bf16.msra.mxu0 0
      %2729 = vmatprep.subr.bf16.mxu0 0
      %2730 = vmatpush1.bf16.msra.mxu0 0
      %2731 = vmatprep.subr.bf16.mxu0 0
      %2732 = vmatpush1.bf16.msra.mxu0 0
      %2733 = vmatprep.subr.bf16.mxu0 0
      %2734 = vmatpush1.bf16.msra.mxu0 0
      %2735 = vmatprep.subr.bf16.mxu0 0
      %2736 = vmatpush1.bf16.msra.mxu0 0
      %2737 = vmatprep.subr.bf16.mxu0 0
      %2738 = vmatpush1.bf16.msra.mxu0 0
      %2739 = vmatprep.subr.bf16.mxu0 0
      %2740 = vmatpush1.bf16.msra.mxu0 0
      %2741 = vmatprep.subr.bf16.mxu0 0
      %2742 = vmatpush1.bf16.msra.mxu0 0
      %2743 = vmatprep.subr.bf16.mxu0 0
      %2744 = vmatpush1.bf16.msra.mxu0 0
      %2745 = vmatprep.mubr.bf16.mxu0 0
      %2746 = vmatmul.mubr.bf16.gmra.mrb[0].mxu0 %v2708
      %v2747 = vpop.f32.mrb[0].mxu0
      %v2748 = vadd.f32 0.0, %v2747
      %v2749 = vpop.f32.mrb[0].mxu0
      %v2750 = vpop.f32.mrb[0].mxu0
      %v2751 = vadd.f32 0.0, %v2750
      %v2752 = vpop.f32.mrb[0].mxu0
      %2753 = vmatprep.mubr.bf16.mxu0 0
      %2754 = vmatmul.mubr.bf16.gmra.mrb[0].mxu0 %v2711
      %v2755 = vpop.f32.mrb[0].mxu0
      %v2756 = vadd.f32 0.0, %v2755
      %v2757 = vpop.f32.mrb[0].mxu0
      %v2758 = vpop.f32.mrb[0].mxu0
      %v2759 = vadd.f32 0.0, %v2758
      %v2760 = vpop.f32.mrb[0].mxu0
      %2761 = vdwg.mxu0
      %v2762 = vpack.c.bf16 %v2751, %v2748
      %v2763 = vpack.c.bf16 %v2759, %v2756
      %2766 = vrot.lane.b32.xlu0 %v2762, 96
      %v2767 = vpop.permute.xlu0 %2766
      %2768 = vrot.lane.b32.xlu0 %v2763, 96
      %v2769 = vpop.permute.xlu0 %2768
      %v2771 = vsel %vm786, %v2762, 0
      %v2774 = vsel %vm786, %v2763, 0
      %v2777 = vsel %vm786, %v2767, 0
      %v2780 = vsel %vm786, %v2769, 0
      %2782 = vmatprep.subr.bf16.mxu0 0
      %2783 = vmatpush1.bf16.xpose.msra.mxu0 %v2777
      %2784 = vmatprep.subr.bf16.mxu0 0
      %2785 = vmatpush1.bf16.xpose.msra.mxu0 %v2780
      %2786 = vmatprep.subr.bf16.mxu0 0
      %2787 = vmatpush1.bf16.xpose.msra.mxu0 0
      %2788 = vmatprep.subr.bf16.mxu0 0
      %2789 = vmatpush1.bf16.xpose.msra.mxu0 0
      %2790 = vmatprep.subr.bf16.mxu0 0
      %2791 = vmatpush1.bf16.xpose.msra.mxu0 0
      %2792 = vmatprep.subr.bf16.mxu0 0
      %2793 = vmatpush1.bf16.xpose.msra.mxu0 0
      %2794 = vmatprep.subr.bf16.mxu0 0
      %2795 = vmatpush1.bf16.xpose.msra.mxu0 0
      %2796 = vmatprep.subr.bf16.mxu0 0
      %2797 = vmatpush1.bf16.xpose.msra.mxu0 0
      %2798 = vmatprep.subr.bf16.mxu0 0
      %2799 = vmatpush1.bf16.xpose.msra.mxu0 0
      %2800 = vmatprep.subr.bf16.mxu0 0
      %2801 = vmatpush1.bf16.xpose.msra.mxu0 0
      %2802 = vmatprep.subr.bf16.mxu0 0
      %2803 = vmatpush1.bf16.xpose.msra.mxu0 0
      %2804 = vmatprep.subr.bf16.mxu0 0
      %2805 = vmatpush1.bf16.xpose.msra.mxu0 0
      %2806 = vmatprep.subr.bf16.mxu0 0
      %2807 = vmatpush1.bf16.xpose.msra.mxu0 0
      %2808 = vmatprep.subr.bf16.mxu0 0
      %2809 = vmatpush1.bf16.xpose.msra.mxu0 0
      %2810 = vmatprep.subr.bf16.mxu0 0
      %2811 = vmatpush1.bf16.xpose.msra.mxu0 0
      %2812 = vmatprep.subr.bf16.mxu0 0
      %2813 = vmatpush1.bf16.xpose.msra.mxu0 0
      %2814 = vmatprep.mubr.bf16.mxu0 0
      %2815 = vmatmul.mubr.bf16.gmra.mrb[0].mxu0 %v2771
      %v2816 = vpop.f32.mrb[0].mxu0
      %v2817 = vadd.f32 %v624, %v2816
      %v2818 = vpop.f32.mrb[0].mxu0
      %v2819 = vpop.f32.mrb[0].mxu0
      %v2820 = vadd.f32 %v625, %v2819
      %v2821 = vpop.f32.mrb[0].mxu0
      %2822 = vmatprep.mubr.bf16.mxu0 0
      %2823 = vmatmul.mubr.bf16.gmra.mrb[0].mxu0 %v2774
      %v2824 = vpop.f32.mrb[0].mxu0
      %v2825 = vadd.f32 %v626, %v2824
      %v2826 = vpop.f32.mrb[0].mxu0
      %v2827 = vpop.f32.mrb[0].mxu0
      %v2828 = vadd.f32 %v627, %v2827
      %v2829 = vpop.f32.mrb[0].mxu0
      %2830 = vdwg.mxu0
      %s2831 = scalar_lea.vmem %s7, 16
      %v2832 = vld [vmem:[%s2831] sm:$0xf]
      %v2834 = vsel %vm849, %v2832, 0
      %2836 = vmatprep.subr.bf16.mxu0 0
      %2837 = vmatpush1.bf16.msra.mxu0 %v2834
      %2838 = vmatprep.subr.bf16.mxu0 0
      %2839 = vmatpush1.bf16.msra.mxu0 0
      %2840 = vmatprep.subr.bf16.mxu0 0
      %2841 = vmatpush1.bf16.msra.mxu0 0
      %2842 = vmatprep.subr.bf16.mxu0 0
      %2843 = vmatpush1.bf16.msra.mxu0 0
      %2844 = vmatprep.subr.bf16.mxu0 0
      %2845 = vmatpush1.bf16.msra.mxu0 0
      %2846 = vmatprep.subr.bf16.mxu0 0
      %2847 = vmatpush1.bf16.msra.mxu0 0
      %2848 = vmatprep.subr.bf16.mxu0 0
      %2849 = vmatpush1.bf16.msra.mxu0 0
      %2850 = vmatprep.subr.bf16.mxu0 0
      %2851 = vmatpush1.bf16.msra.mxu0 0
      %2852 = vmatprep.subr.bf16.mxu0 0
      %2853 = vmatpush1.bf16.msra.mxu0 0
      %2854 = vmatprep.subr.bf16.mxu0 0
      %2855 = vmatpush1.bf16.msra.mxu0 0
      %2856 = vmatprep.subr.bf16.mxu0 0
      %2857 = vmatpush1.bf16.msra.mxu0 0
      %2858 = vmatprep.subr.bf16.mxu0 0
      %2859 = vmatpush1.bf16.msra.mxu0 0
      %2860 = vmatprep.subr.bf16.mxu0 0
      %2861 = vmatpush1.bf16.msra.mxu0 0
      %2862 = vmatprep.subr.bf16.mxu0 0
      %2863 = vmatpush1.bf16.msra.mxu0 0
      %2864 = vmatprep.subr.bf16.mxu0 0
      %2865 = vmatpush1.bf16.msra.mxu0 0
      %2866 = vmatprep.subr.bf16.mxu0 0
      %2867 = vmatpush1.bf16.msra.mxu0 0
      %2868 = vmatprep.mubr.bf16.mxu0 0
      %2869 = vmatmul.mubr.bf16.gmra.mrb[0].mxu0 %v2771
      %v2870 = vpop.f32.mrb[0].mxu0
      %v2871 = vadd.f32 0.0, %v2870
      %v2872 = vpop.f32.mrb[0].mxu0
      %v2873 = vpop.f32.mrb[0].mxu0
      %v2874 = vadd.f32 0.0, %v2873
      %v2875 = vpop.f32.mrb[0].mxu0
      %2876 = vmatprep.mubr.bf16.mxu0 0
      %2877 = vmatmul.mubr.bf16.gmra.mrb[0].mxu0 %v2774
      %v2878 = vpop.f32.mrb[0].mxu0
      %v2879 = vadd.f32 0.0, %v2878
      %v2880 = vpop.f32.mrb[0].mxu0
      %v2881 = vpop.f32.mrb[0].mxu0
      %v2882 = vadd.f32 0.0, %v2881
      %v2883 = vpop.f32.mrb[0].mxu0
      %2884 = vdwg.mxu0
      %v2885 = vsel %vm902, %v2817, -inf
      %2886 = vmax.xlane.f32.xlu0 %v2885
      %v2887 = vpop.xlane.xlu0 %2886
      %v2888 = vsel %vm902, %v2820, -inf
      %2889 = vmax.xlane.f32.xlu0 %v2888
      %v2890 = vpop.xlane.xlu0 %2889
      %v2891 = vsel %vm902, %v2825, -inf
      %2892 = vmax.xlane.f32.xlu0 %v2891
      %v2893 = vpop.xlane.xlu0 %2892
      %v2894 = vsel %vm912, %v2828, -inf
      %2895 = vmax.xlane.f32.xlu0 %v2894
      %v2896 = vpop.xlane.xlu0 %2895
      %v2897 = vsel %vm916, %v2871, -inf
      %2898 = vmax.xlane.f32.xlu0 %v2897
      %v2899 = vpop.xlane.xlu0 %2898
      %v2900 = vsel %vm916, %v2874, -inf
      %2901 = vmax.xlane.f32.xlu0 %v2900
      %v2902 = vpop.xlane.xlu0 %2901
      %v2903 = vsel %vm916, %v2879, -inf
      %2904 = vmax.xlane.f32.xlu0 %v2903
      %v2905 = vpop.xlane.xlu0 %2904
      %v2906 = vsel %vm926, %v2882, -inf
      %2907 = vmax.xlane.f32.xlu0 %v2906
      %v2908 = vpop.xlane.xlu0 %2907
      %v2909 = vmax.f32 %v2887, %v2899
      %v2910 = vmax.f32 %v2890, %v2902
      %v2911 = vmax.f32 %v2893, %v2905
      %v2912 = vmax.f32 %v2896, %v2908
      %v2913 = vsub.f32 %v2817, %v2909
      %v2914 = vsub.f32 %v2820, %v2910
      %v2915 = vsub.f32 %v2825, %v2911
      %v2916 = vsub.f32 %v2828, %v2912
      %v2917 = vmul.f32 %v2913, 1.442695
      %v2918 = vpow.pop %v2917
      %v2919 = vmul.f32 %v2914, 1.442695
      %v2920 = vpow.pop %v2919
      %v2921 = vmul.f32 %v2915, 1.442695
      %v2922 = vpow.pop %v2921
      %v2923 = vmul.f32 %v2916, 1.442695
      %v2924 = vpow.pop %v2923
      %v2925 = vsub.f32 %v2871, %v2909
      %v2926 = vsub.f32 %v2874, %v2910
      %v2927 = vsub.f32 %v2879, %v2911
      %v2928 = vsub.f32 %v2882, %v2912
      %v2929 = vmul.f32 %v2925, 1.442695
      %v2930 = vpow.pop %v2929
      %v2931 = vmul.f32 %v2926, 1.442695
      %v2932 = vpow.pop %v2931
      %v2933 = vmul.f32 %v2927, 1.442695
      %v2934 = vpow.pop %v2933
      %v2935 = vmul.f32 %v2928, 1.442695
      %v2936 = vpow.pop %v2935
      %v2937 = vsel %vm902, %v2918, 0.0
      %2938 = vadd.xlane.f32.xlu0 %v2937
      %v2939 = vpop.xlane.xlu0 %2938
      %v2940 = vsel %vm902, %v2920, 0.0
      %2941 = vadd.xlane.f32.xlu0 %v2940
      %v2942 = vpop.xlane.xlu0 %2941
      %v2943 = vsel %vm902, %v2922, 0.0
      %2944 = vadd.xlane.f32.xlu0 %v2943
      %v2945 = vpop.xlane.xlu0 %2944
      %v2946 = vsel %vm912, %v2924, 0.0
      %2947 = vadd.xlane.f32.xlu0 %v2946
      %v2948 = vpop.xlane.xlu0 %2947
      %v2949 = vsel %vm916, %v2930, 0.0
      %2950 = vadd.xlane.f32.xlu0 %v2949
      %v2951 = vpop.xlane.xlu0 %2950
      %v2952 = vsel %vm916, %v2932, 0.0
      %2953 = vadd.xlane.f32.xlu0 %v2952
      %v2954 = vpop.xlane.xlu0 %2953
      %v2955 = vsel %vm916, %v2934, 0.0
      %2956 = vadd.xlane.f32.xlu0 %v2955
      %v2957 = vpop.xlane.xlu0 %2956
      %v2958 = vsel %vm926, %v2936, 0.0
      %2959 = vadd.xlane.f32.xlu0 %v2958
      %v2960 = vpop.xlane.xlu0 %2959
      %v2961 = vadd.f32 %v2939, %v2951
      %v2962 = vadd.f32 %v2942, %v2954
      %v2963 = vadd.f32 %v2945, %v2957
      %v2964 = vadd.f32 %v2948, %v2960
      %v2965 = vrcp.pop %v2961
      %v2966 = vrcp.pop %v2962
      %v2967 = vrcp.pop %v2963
      %v2968 = vrcp.pop %v2964
      %v2969 = vpack.c.bf16 %v2920, %v2918
      %v2970 = vpack.c.bf16 %v2924, %v2922
      %v2971 = vpack.c.bf16 %v2932, %v2930
      %v2972 = vpack.c.bf16 %v2936, %v2934
      %s2973 = scalar_lea.vmem %s8, 8
      %v2974 = vld [vmem:[%s2973] sm:$0x3]
      %v2976 = vsel %vm916, %v2971, 0
      %v2979 = vsel %vm916, %v2972, 0
      %v2982 = vsel %vm1001, %v2974, 0
      %2984 = vmatprep.subr.bf16.mxu0 0
      %2985 = vmatpush1.bf16.msra.mxu0 %v2982
      %2986 = vmatprep.subr.bf16.mxu0 0
      %2987 = vmatpush1.bf16.msra.mxu0 0
      %2988 = vmatprep.subr.bf16.mxu0 0
      %2989 = vmatpush1.bf16.msra.mxu0 0
      %2990 = vmatprep.subr.bf16.mxu0 0
      %2991 = vmatpush1.bf16.msra.mxu0 0
      %2992 = vmatprep.subr.bf16.mxu0 0
      %2993 = vmatpush1.bf16.msra.mxu0 0
      %2994 = vmatprep.subr.bf16.mxu0 0
      %2995 = vmatpush1.bf16.msra.mxu0 0
      %2996 = vmatprep.subr.bf16.mxu0 0
      %2997 = vmatpush1.bf16.msra.mxu0 0
      %2998 = vmatprep.subr.bf16.mxu0 0
      %2999 = vmatpush1.bf16.msra.mxu0 0
      %3000 = vmatprep.subr.bf16.mxu0 0
      %3001 = vmatpush1.bf16.msra.mxu0 0
      %3002 = vmatprep.subr.bf16.mxu0 0
      %3003 = vmatpush1.bf16.msra.mxu0 0
      %3004 = vmatprep.subr.bf16.mxu0 0
      %3005 = vmatpush1.bf16.msra.mxu0 0
      %3006 = vmatprep.subr.bf16.mxu0 0
      %3007 = vmatpush1.bf16.msra.mxu0 0
      %3008 = vmatprep.subr.bf16.mxu0 0
      %3009 = vmatpush1.bf16.msra.mxu0 0
      %3010 = vmatprep.subr.bf16.mxu0 0
      %3011 = vmatpush1.bf16.msra.mxu0 0
      %3012 = vmatprep.subr.bf16.mxu0 0
      %3013 = vmatpush1.bf16.msra.mxu0 0
      %3014 = vmatprep.subr.bf16.mxu0 0
      %3015 = vmatpush1.bf16.msra.mxu0 0
      %3016 = vmatprep.mubr.bf16.mxu0 0
      %3017 = vmatmul.mubr.bf16.gmra.mrb[0].mxu0 %v2976
      %v3018 = vpop.f32.mrb[0].mxu0
      %v3019 = vadd.f32 0.0, %v3018
      %v3020 = vpop.f32.mrb[0].mxu0
      %v3021 = vpop.f32.mrb[0].mxu0
      %v3022 = vadd.f32 0.0, %v3021
      %v3023 = vpop.f32.mrb[0].mxu0
      %3024 = vmatprep.mubr.bf16.mxu0 0
      %3025 = vmatmul.mubr.bf16.gmra.mrb[0].mxu0 %v2979
      %v3026 = vpop.f32.mrb[0].mxu0
      %v3027 = vadd.f32 0.0, %v3026
      %v3028 = vpop.f32.mrb[0].mxu0
      %v3029 = vpop.f32.mrb[0].mxu0
      %v3030 = vadd.f32 0.0, %v3029
      %v3031 = vpop.f32.mrb[0].mxu0
      %3032 = vdwg.mxu0
      %3033 = vrot.lane.b32.xlu0 %v2762, 64
      %v3034 = vpop.permute.xlu0 %3033
      %3035 = vrot.lane.b32.xlu0 %v2763, 64
      %v3036 = vpop.permute.xlu0 %3035
      %v3039 = vsel %vm902, %v2969, 0
      %v3042 = vsel %vm902, %v2970, 0
      %v3045 = vsel %vm1065, %v3036, 0
      %3047 = vmatprep.subr.bf16.mxu0 0
      %3048 = vmatpush1.bf16.msra.mxu0 %v3034
      %3049 = vmatprep.subr.bf16.mxu0 0
      %3050 = vmatpush1.bf16.msra.mxu0 %v3045
      %3051 = vmatprep.subr.bf16.mxu0 0
      %3052 = vmatpush1.bf16.msra.mxu0 0
      %3053 = vmatprep.subr.bf16.mxu0 0
      %3054 = vmatpush1.bf16.msra.mxu0 0
      %3055 = vmatprep.subr.bf16.mxu0 0
      %3056 = vmatpush1.bf16.msra.mxu0 0
      %3057 = vmatprep.subr.bf16.mxu0 0
      %3058 = vmatpush1.bf16.msra.mxu0 0
      %3059 = vmatprep.subr.bf16.mxu0 0
      %3060 = vmatpush1.bf16.msra.mxu0 0
      %3061 = vmatprep.subr.bf16.mxu0 0
      %3062 = vmatpush1.bf16.msra.mxu0 0
      %3063 = vmatprep.subr.bf16.mxu0 0
      %3064 = vmatpush1.bf16.msra.mxu0 0
      %3065 = vmatprep.subr.bf16.mxu0 0
      %3066 = vmatpush1.bf16.msra.mxu0 0
      %3067 = vmatprep.subr.bf16.mxu0 0
      %3068 = vmatpush1.bf16.msra.mxu0 0
      %3069 = vmatprep.subr.bf16.mxu0 0
      %3070 = vmatpush1.bf16.msra.mxu0 0
      %3071 = vmatprep.subr.bf16.mxu0 0
      %3072 = vmatpush1.bf16.msra.mxu0 0
      %3073 = vmatprep.subr.bf16.mxu0 0
      %3074 = vmatpush1.bf16.msra.mxu0 0
      %3075 = vmatprep.subr.bf16.mxu0 0
      %3076 = vmatpush1.bf16.msra.mxu0 0
      %3077 = vmatprep.subr.bf16.mxu0 0
      %3078 = vmatpush1.bf16.msra.mxu0 0
      %3079 = vmatprep.mubr.bf16.mxu0 0
      %3080 = vmatmul.mubr.bf16.gmra.mrb[0].mxu0 %v3039
      %v3081 = vpop.f32.mrb[0].mxu0
      %v3082 = vadd.f32 %v3019, %v3081
      %v3083 = vpop.f32.mrb[0].mxu0
      %v3084 = vpop.f32.mrb[0].mxu0
      %v3085 = vadd.f32 %v3022, %v3084
      %v3086 = vpop.f32.mrb[0].mxu0
      %3087 = vmatprep.mubr.bf16.mxu0 0
      %3088 = vmatmul.mubr.bf16.gmra.mrb[0].mxu0 %v3042
      %v3089 = vpop.f32.mrb[0].mxu0
      %v3090 = vadd.f32 %v3027, %v3089
      %v3091 = vpop.f32.mrb[0].mxu0
      %v3092 = vpop.f32.mrb[0].mxu0
      %v3093 = vadd.f32 %v3030, %v3092
      %v3094 = vpop.f32.mrb[0].mxu0
      %3095 = vdwg.mxu0
      %v3096 = vmul.f32 %v3082, %v2965
      %v3097 = vmul.f32 %v3085, %v2966
      %v3098 = vmul.f32 %v3090, %v2967
      %v3099 = vmul.f32 %v3093, %v2968
      %3100 = vrot.lane.b32.xlu0 %v2762, 120
      %v3101 = vpop.permute.xlu0 %3100
      %3102 = vrot.lane.b32.xlu0 %v2763, 120
      %v3103 = vpop.permute.xlu0 %3102
      %3104 = vrot.lane.b32.xlu0 %v2762, 88
      %v3105 = vpop.permute.xlu0 %3104
      %3106 = vrot.lane.b32.xlu0 %v2763, 88
      %v3107 = vpop.permute.xlu0 %3106
      %v3109 = vsel %vm786, %v3101, 0
      %v3112 = vsel %vm786, %v3103, 0
      %v3115 = vsel %vm786, %v3105, 0
      %v3118 = vsel %vm786, %v3107, 0
      %3120 = vmatprep.subr.bf16.mxu0 0
      %3121 = vmatpush1.bf16.xpose.msra.mxu0 %v3115
      %3122 = vmatprep.subr.bf16.mxu0 0
      %3123 = vmatpush1.bf16.xpose.msra.mxu0 %v3118
      %3124 = vmatprep.subr.bf16.mxu0 0
      %3125 = vmatpush1.bf16.xpose.msra.mxu0 0
      %3126 = vmatprep.subr.bf16.mxu0 0
      %3127 = vmatpush1.bf16.xpose.msra.mxu0 0
      %3128 = vmatprep.subr.bf16.mxu0 0
      %3129 = vmatpush1.bf16.xpose.msra.mxu0 0
      %3130 = vmatprep.subr.bf16.mxu0 0
      %3131 = vmatpush1.bf16.xpose.msra.mxu0 0
      %3132 = vmatprep.subr.bf16.mxu0 0
      %3133 = vmatpush1.bf16.xpose.msra.mxu0 0
      %3134 = vmatprep.subr.bf16.mxu0 0
      %3135 = vmatpush1.bf16.xpose.msra.mxu0 0
      %3136 = vmatprep.subr.bf16.mxu0 0
      %3137 = vmatpush1.bf16.xpose.msra.mxu0 0
      %3138 = vmatprep.subr.bf16.mxu0 0
      %3139 = vmatpush1.bf16.xpose.msra.mxu0 0
      %3140 = vmatprep.subr.bf16.mxu0 0
      %3141 = vmatpush1.bf16.xpose.msra.mxu0 0
      %3142 = vmatprep.subr.bf16.mxu0 0
      %3143 = vmatpush1.bf16.xpose.msra.mxu0 0
      %3144 = vmatprep.subr.bf16.mxu0 0
      %3145 = vmatpush1.bf16.xpose.msra.mxu0 0
      %3146 = vmatprep.subr.bf16.mxu0 0
      %3147 = vmatpush1.bf16.xpose.msra.mxu0 0
      %3148 = vmatprep.subr.bf16.mxu0 0
      %3149 = vmatpush1.bf16.xpose.msra.mxu0 0
      %3150 = vmatprep.subr.bf16.mxu0 0
      %3151 = vmatpush1.bf16.xpose.msra.mxu0 0
      %3152 = vmatprep.mubr.bf16.mxu0 0
      %3153 = vmatmul.mubr.bf16.gmra.mrb[0].mxu0 %v3109
      %v3154 = vpop.f32.mrb[0].mxu0
      %v3155 = vadd.f32 %v624, %v3154
      %v3156 = vpop.f32.mrb[0].mxu0
      %v3157 = vpop.f32.mrb[0].mxu0
      %v3158 = vadd.f32 %v625, %v3157
      %v3159 = vpop.f32.mrb[0].mxu0
      %3160 = vmatprep.mubr.bf16.mxu0 0
      %3161 = vmatmul.mubr.bf16.gmra.mrb[0].mxu0 %v3112
      %v3162 = vpop.f32.mrb[0].mxu0
      %v3163 = vadd.f32 %v626, %v3162
      %v3164 = vpop.f32.mrb[0].mxu0
      %v3165 = vpop.f32.mrb[0].mxu0
      %v3166 = vadd.f32 %v627, %v3165
      %v3167 = vpop.f32.mrb[0].mxu0
      %3168 = vdwg.mxu0
      %s3169 = scalar_lea.vmem %s7, 20
      %v3170 = vld [vmem:[%s3169] sm:$0xf]
      %v3172 = vsel %vm849, %v3170, 0
      %3174 = vmatprep.subr.bf16.mxu0 0
      %3175 = vmatpush1.bf16.msra.mxu0 %v3172
      %3176 = vmatprep.subr.bf16.mxu0 0
      %3177 = vmatpush1.bf16.msra.mxu0 0
      %3178 = vmatprep.subr.bf16.mxu0 0
      %3179 = vmatpush1.bf16.msra.mxu0 0
      %3180 = vmatprep.subr.bf16.mxu0 0
      %3181 = vmatpush1.bf16.msra.mxu0 0
      %3182 = vmatprep.subr.bf16.mxu0 0
      %3183 = vmatpush1.bf16.msra.mxu0 0
      %3184 = vmatprep.subr.bf16.mxu0 0
      %3185 = vmatpush1.bf16.msra.mxu0 0
      %3186 = vmatprep.subr.bf16.mxu0 0
      %3187 = vmatpush1.bf16.msra.mxu0 0
      %3188 = vmatprep.subr.bf16.mxu0 0
      %3189 = vmatpush1.bf16.msra.mxu0 0
      %3190 = vmatprep.subr.bf16.mxu0 0
      %3191 = vmatpush1.bf16.msra.mxu0 0
      %3192 = vmatprep.subr.bf16.mxu0 0
      %3193 = vmatpush1.bf16.msra.mxu0 0
      %3194 = vmatprep.subr.bf16.mxu0 0
      %3195 = vmatpush1.bf16.msra.mxu0 0
      %3196 = vmatprep.subr.bf16.mxu0 0
      %3197 = vmatpush1.bf16.msra.mxu0 0
      %3198 = vmatprep.subr.bf16.mxu0 0
      %3199 = vmatpush1.bf16.msra.mxu0 0
      %3200 = vmatprep.subr.bf16.mxu0 0
      %3201 = vmatpush1.bf16.msra.mxu0 0
      %3202 = vmatprep.subr.bf16.mxu0 0
      %3203 = vmatpush1.bf16.msra.mxu0 0
      %3204 = vmatprep.subr.bf16.mxu0 0
      %3205 = vmatpush1.bf16.msra.mxu0 0
      %3206 = vmatprep.mubr.bf16.mxu0 0
      %3207 = vmatmul.mubr.bf16.gmra.mrb[0].mxu0 %v3109
      %v3208 = vpop.f32.mrb[0].mxu0
      %v3209 = vadd.f32 0.0, %v3208
      %v3210 = vpop.f32.mrb[0].mxu0
      %v3211 = vpop.f32.mrb[0].mxu0
      %v3212 = vadd.f32 0.0, %v3211
      %v3213 = vpop.f32.mrb[0].mxu0
      %3214 = vmatprep.mubr.bf16.mxu0 0
      %3215 = vmatmul.mubr.bf16.gmra.mrb[0].mxu0 %v3112
      %v3216 = vpop.f32.mrb[0].mxu0
      %v3217 = vadd.f32 0.0, %v3216
      %v3218 = vpop.f32.mrb[0].mxu0
      %v3219 = vpop.f32.mrb[0].mxu0
      %v3220 = vadd.f32 0.0, %v3219
      %v3221 = vpop.f32.mrb[0].mxu0
      %3222 = vdwg.mxu0
      %v3223 = vsel %vm902, %v3155, -inf
      %3224 = vmax.xlane.f32.xlu0 %v3223
      %v3225 = vpop.xlane.xlu0 %3224
      %v3226 = vsel %vm902, %v3158, -inf
      %3227 = vmax.xlane.f32.xlu0 %v3226
      %v3228 = vpop.xlane.xlu0 %3227
      %v3229 = vsel %vm902, %v3163, -inf
      %3230 = vmax.xlane.f32.xlu0 %v3229
      %v3231 = vpop.xlane.xlu0 %3230
      %v3232 = vsel %vm912, %v3166, -inf
      %3233 = vmax.xlane.f32.xlu0 %v3232
      %v3234 = vpop.xlane.xlu0 %3233
      %v3235 = vsel %vm916, %v3209, -inf
      %3236 = vmax.xlane.f32.xlu0 %v3235
      %v3237 = vpop.xlane.xlu0 %3236
      %v3238 = vsel %vm916, %v3212, -inf
      %3239 = vmax.xlane.f32.xlu0 %v3238
      %v3240 = vpop.xlane.xlu0 %3239
      %v3241 = vsel %vm916, %v3217, -inf
      %3242 = vmax.xlane.f32.xlu0 %v3241
      %v3243 = vpop.xlane.xlu0 %3242
      %v3244 = vsel %vm926, %v3220, -inf
      %3245 = vmax.xlane.f32.xlu0 %v3244
      %v3246 = vpop.xlane.xlu0 %3245
      %v3247 = vmax.f32 %v3225, %v3237
      %v3248 = vmax.f32 %v3228, %v3240
      %v3249 = vmax.f32 %v3231, %v3243
      %v3250 = vmax.f32 %v3234, %v3246
      %v3251 = vsub.f32 %v3155, %v3247
      %v3252 = vsub.f32 %v3158, %v3248
      %v3253 = vsub.f32 %v3163, %v3249
      %v3254 = vsub.f32 %v3166, %v3250
      %v3255 = vmul.f32 %v3251, 1.442695
      %v3256 = vpow.pop %v3255
      %v3257 = vmul.f32 %v3252, 1.442695
      %v3258 = vpow.pop %v3257
      %v3259 = vmul.f32 %v3253, 1.442695
      %v3260 = vpow.pop %v3259
      %v3261 = vmul.f32 %v3254, 1.442695
      %v3262 = vpow.pop %v3261
      %v3263 = vsub.f32 %v3209, %v3247
      %v3264 = vsub.f32 %v3212, %v3248
      %v3265 = vsub.f32 %v3217, %v3249
      %v3266 = vsub.f32 %v3220, %v3250
      %v3267 = vmul.f32 %v3263, 1.442695
      %v3268 = vpow.pop %v3267
      %v3269 = vmul.f32 %v3264, 1.442695
      %v3270 = vpow.pop %v3269
      %v3271 = vmul.f32 %v3265, 1.442695
      %v3272 = vpow.pop %v3271
      %v3273 = vmul.f32 %v3266, 1.442695
      %v3274 = vpow.pop %v3273
      %v3275 = vsel %vm902, %v3256, 0.0
      %3276 = vadd.xlane.f32.xlu0 %v3275
      %v3277 = vpop.xlane.xlu0 %3276
      %v3278 = vsel %vm902, %v3258, 0.0
      %3279 = vadd.xlane.f32.xlu0 %v3278
      %v3280 = vpop.xlane.xlu0 %3279
      %v3281 = vsel %vm902, %v3260, 0.0
      %3282 = vadd.xlane.f32.xlu0 %v3281
      %v3283 = vpop.xlane.xlu0 %3282
      %v3284 = vsel %vm912, %v3262, 0.0
      %3285 = vadd.xlane.f32.xlu0 %v3284
      %v3286 = vpop.xlane.xlu0 %3285
      %v3287 = vsel %vm916, %v3268, 0.0
      %3288 = vadd.xlane.f32.xlu0 %v3287
      %v3289 = vpop.xlane.xlu0 %3288
      %v3290 = vsel %vm916, %v3270, 0.0
      %3291 = vadd.xlane.f32.xlu0 %v3290
      %v3292 = vpop.xlane.xlu0 %3291
      %v3293 = vsel %vm916, %v3272, 0.0
      %3294 = vadd.xlane.f32.xlu0 %v3293
      %v3295 = vpop.xlane.xlu0 %3294
      %v3296 = vsel %vm926, %v3274, 0.0
      %3297 = vadd.xlane.f32.xlu0 %v3296
      %v3298 = vpop.xlane.xlu0 %3297
      %v3299 = vadd.f32 %v3277, %v3289
      %v3300 = vadd.f32 %v3280, %v3292
      %v3301 = vadd.f32 %v3283, %v3295
      %v3302 = vadd.f32 %v3286, %v3298
      %v3303 = vrcp.pop %v3299
      %v3304 = vrcp.pop %v3300
      %v3305 = vrcp.pop %v3301
      %v3306 = vrcp.pop %v3302
      %v3307 = vpack.c.bf16 %v3258, %v3256
      %v3308 = vpack.c.bf16 %v3262, %v3260
      %v3309 = vpack.c.bf16 %v3270, %v3268
      %v3310 = vpack.c.bf16 %v3274, %v3272
      %s3311 = scalar_lea.vmem %s8, 10
      %v3312 = vld [vmem:[%s3311] sm:$0x3]
      %v3314 = vsel %vm916, %v3309, 0
      %v3317 = vsel %vm916, %v3310, 0
      %v3320 = vsel %vm1001, %v3312, 0
      %3322 = vmatprep.subr.bf16.mxu0 0
      %3323 = vmatpush1.bf16.msra.mxu0 %v3320
      %3324 = vmatprep.subr.bf16.mxu0 0
      %3325 = vmatpush1.bf16.msra.mxu0 0
      %3326 = vmatprep.subr.bf16.mxu0 0
      %3327 = vmatpush1.bf16.msra.mxu0 0
      %3328 = vmatprep.subr.bf16.mxu0 0
      %3329 = vmatpush1.bf16.msra.mxu0 0
      %3330 = vmatprep.subr.bf16.mxu0 0
      %3331 = vmatpush1.bf16.msra.mxu0 0
      %3332 = vmatprep.subr.bf16.mxu0 0
      %3333 = vmatpush1.bf16.msra.mxu0 0
      %3334 = vmatprep.subr.bf16.mxu0 0
      %3335 = vmatpush1.bf16.msra.mxu0 0
      %3336 = vmatprep.subr.bf16.mxu0 0
      %3337 = vmatpush1.bf16.msra.mxu0 0
      %3338 = vmatprep.subr.bf16.mxu0 0
      %3339 = vmatpush1.bf16.msra.mxu0 0
      %3340 = vmatprep.subr.bf16.mxu0 0
      %3341 = vmatpush1.bf16.msra.mxu0 0
      %3342 = vmatprep.subr.bf16.mxu0 0
      %3343 = vmatpush1.bf16.msra.mxu0 0
      %3344 = vmatprep.subr.bf16.mxu0 0
      %3345 = vmatpush1.bf16.msra.mxu0 0
      %3346 = vmatprep.subr.bf16.mxu0 0
      %3347 = vmatpush1.bf16.msra.mxu0 0
      %3348 = vmatprep.subr.bf16.mxu0 0
      %3349 = vmatpush1.bf16.msra.mxu0 0
      %3350 = vmatprep.subr.bf16.mxu0 0
      %3351 = vmatpush1.bf16.msra.mxu0 0
      %3352 = vmatprep.subr.bf16.mxu0 0
      %3353 = vmatpush1.bf16.msra.mxu0 0
      %3354 = vmatprep.mubr.bf16.mxu0 0
      %3355 = vmatmul.mubr.bf16.gmra.mrb[0].mxu0 %v3314
      %v3356 = vpop.f32.mrb[0].mxu0
      %v3357 = vadd.f32 0.0, %v3356
      %v3358 = vpop.f32.mrb[0].mxu0
      %v3359 = vpop.f32.mrb[0].mxu0
      %v3360 = vadd.f32 0.0, %v3359
      %v3361 = vpop.f32.mrb[0].mxu0
      %3362 = vmatprep.mubr.bf16.mxu0 0
      %3363 = vmatmul.mubr.bf16.gmra.mrb[0].mxu0 %v3317
      %v3364 = vpop.f32.mrb[0].mxu0
      %v3365 = vadd.f32 0.0, %v3364
      %v3366 = vpop.f32.mrb[0].mxu0
      %v3367 = vpop.f32.mrb[0].mxu0
      %v3368 = vadd.f32 0.0, %v3367
      %v3369 = vpop.f32.mrb[0].mxu0
      %3370 = vdwg.mxu0
      %3371 = vrot.lane.b32.xlu0 %v2762, 56
      %v3372 = vpop.permute.xlu0 %3371
      %3373 = vrot.lane.b32.xlu0 %v2763, 56
      %v3374 = vpop.permute.xlu0 %3373
      %v3377 = vsel %vm902, %v3307, 0
      %v3380 = vsel %vm902, %v3308, 0
      %v3383 = vsel %vm1065, %v3374, 0
      %3385 = vmatprep.subr.bf16.mxu0 0
      %3386 = vmatpush1.bf16.msra.mxu0 %v3372
      %3387 = vmatprep.subr.bf16.mxu0 0
      %3388 = vmatpush1.bf16.msra.mxu0 %v3383
      %3389 = vmatprep.subr.bf16.mxu0 0
      %3390 = vmatpush1.bf16.msra.mxu0 0
      %3391 = vmatprep.subr.bf16.mxu0 0
      %3392 = vmatpush1.bf16.msra.mxu0 0
      %3393 = vmatprep.subr.bf16.mxu0 0
      %3394 = vmatpush1.bf16.msra.mxu0 0
      %3395 = vmatprep.subr.bf16.mxu0 0
      %3396 = vmatpush1.bf16.msra.mxu0 0
      %3397 = vmatprep.subr.bf16.mxu0 0
      %3398 = vmatpush1.bf16.msra.mxu0 0
      %3399 = vmatprep.subr.bf16.mxu0 0
      %3400 = vmatpush1.bf16.msra.mxu0 0
      %3401 = vmatprep.subr.bf16.mxu0 0
      %3402 = vmatpush1.bf16.msra.mxu0 0
      %3403 = vmatprep.subr.bf16.mxu0 0
      %3404 = vmatpush1.bf16.msra.mxu0 0
      %3405 = vmatprep.subr.bf16.mxu0 0
      %3406 = vmatpush1.bf16.msra.mxu0 0
      %3407 = vmatprep.subr.bf16.mxu0 0
      %3408 = vmatpush1.bf16.msra.mxu0 0
      %3409 = vmatprep.subr.bf16.mxu0 0
      %3410 = vmatpush1.bf16.msra.mxu0 0
      %3411 = vmatprep.subr.bf16.mxu0 0
      %3412 = vmatpush1.bf16.msra.mxu0 0
      %3413 = vmatprep.subr.bf16.mxu0 0
      %3414 = vmatpush1.bf16.msra.mxu0 0
      %3415 = vmatprep.subr.bf16.mxu0 0
      %3416 = vmatpush1.bf16.msra.mxu0 0
      %3417 = vmatprep.mubr.bf16.mxu0 0
      %3418 = vmatmul.mubr.bf16.gmra.mrb[0].mxu0 %v3377
      %v3419 = vpop.f32.mrb[0].mxu0
      %v3420 = vadd.f32 %v3357, %v3419
      %v3421 = vpop.f32.mrb[0].mxu0
      %v3422 = vpop.f32.mrb[0].mxu0
      %v3423 = vadd.f32 %v3360, %v3422
      %v3424 = vpop.f32.mrb[0].mxu0
      %3425 = vmatprep.mubr.bf16.mxu0 0
      %3426 = vmatmul.mubr.bf16.gmra.mrb[0].mxu0 %v3380
      %v3427 = vpop.f32.mrb[0].mxu0
      %v3428 = vadd.f32 %v3365, %v3427
      %v3429 = vpop.f32.mrb[0].mxu0
      %v3430 = vpop.f32.mrb[0].mxu0
      %v3431 = vadd.f32 %v3368, %v3430
      %v3432 = vpop.f32.mrb[0].mxu0
      %3433 = vdwg.mxu0
      %v3434 = vmul.f32 %v3420, %v3303
      %v3435 = vmul.f32 %v3423, %v3304
      %v3436 = vmul.f32 %v3428, %v3305
      %v3437 = vmul.f32 %v3431, %v3306
      %3438 = vrot.lane.b32.xlu0 %v2762, 112
      %v3439 = vpop.permute.xlu0 %3438
      %3440 = vrot.lane.b32.xlu0 %v2763, 112
      %v3441 = vpop.permute.xlu0 %3440
      %3442 = vrot.lane.b32.xlu0 %v2762, 80
      %v3443 = vpop.permute.xlu0 %3442
      %3444 = vrot.lane.b32.xlu0 %v2763, 80
      %v3445 = vpop.permute.xlu0 %3444
      %v3447 = vsel %vm786, %v3439, 0
      %v3450 = vsel %vm786, %v3441, 0
      %v3453 = vsel %vm786, %v3443, 0
      %v3456 = vsel %vm786, %v3445, 0
      %3458 = vmatprep.subr.bf16.mxu0 0
      %3459 = vmatpush1.bf16.xpose.msra.mxu0 %v3453
      %3460 = vmatprep.subr.bf16.mxu0 0
      %3461 = vmatpush1.bf16.xpose.msra.mxu0 %v3456
      %3462 = vmatprep.subr.bf16.mxu0 0
      %3463 = vmatpush1.bf16.xpose.msra.mxu0 0
      %3464 = vmatprep.subr.bf16.mxu0 0
      %3465 = vmatpush1.bf16.xpose.msra.mxu0 0
      %3466 = vmatprep.subr.bf16.mxu0 0
      %3467 = vmatpush1.bf16.xpose.msra.mxu0 0
      %3468 = vmatprep.subr.bf16.mxu0 0
      %3469 = vmatpush1.bf16.xpose.msra.mxu0 0
      %3470 = vmatprep.subr.bf16.mxu0 0
      %3471 = vmatpush1.bf16.xpose.msra.mxu0 0
      %3472 = vmatprep.subr.bf16.mxu0 0
      %3473 = vmatpush1.bf16.xpose.msra.mxu0 0
      %3474 = vmatprep.subr.bf16.mxu0 0
      %3475 = vmatpush1.bf16.xpose.msra.mxu0 0
      %3476 = vmatprep.subr.bf16.mxu0 0
      %3477 = vmatpush1.bf16.xpose.msra.mxu0 0
      %3478 = vmatprep.subr.bf16.mxu0 0
      %3479 = vmatpush1.bf16.xpose.msra.mxu0 0
      %3480 = vmatprep.subr.bf16.mxu0 0
      %3481 = vmatpush1.bf16.xpose.msra.mxu0 0
      %3482 = vmatprep.subr.bf16.mxu0 0
      %3483 = vmatpush1.bf16.xpose.msra.mxu0 0
      %3484 = vmatprep.subr.bf16.mxu0 0
      %3485 = vmatpush1.bf16.xpose.msra.mxu0 0
      %3486 = vmatprep.subr.bf16.mxu0 0
      %3487 = vmatpush1.bf16.xpose.msra.mxu0 0
      %3488 = vmatprep.subr.bf16.mxu0 0
      %3489 = vmatpush1.bf16.xpose.msra.mxu0 0
      %3490 = vmatprep.mubr.bf16.mxu0 0
      %3491 = vmatmul.mubr.bf16.gmra.mrb[0].mxu0 %v3447
      %v3492 = vpop.f32.mrb[0].mxu0
      %v3493 = vadd.f32 %v624, %v3492
      %v3494 = vpop.f32.mrb[0].mxu0
      %v3495 = vpop.f32.mrb[0].mxu0
      %v3496 = vadd.f32 %v625, %v3495
      %v3497 = vpop.f32.mrb[0].mxu0
      %3498 = vmatprep.mubr.bf16.mxu0 0
      %3499 = vmatmul.mubr.bf16.gmra.mrb[0].mxu0 %v3450
      %v3500 = vpop.f32.mrb[0].mxu0
      %v3501 = vadd.f32 %v626, %v3500
      %v3502 = vpop.f32.mrb[0].mxu0
      %v3503 = vpop.f32.mrb[0].mxu0
      %v3504 = vadd.f32 %v627, %v3503
      %v3505 = vpop.f32.mrb[0].mxu0
      %3506 = vdwg.mxu0
      %s3507 = scalar_lea.vmem %s7, 24
      %v3508 = vld [vmem:[%s3507] sm:$0xf]
      %v3510 = vsel %vm849, %v3508, 0
      %3512 = vmatprep.subr.bf16.mxu0 0
      %3513 = vmatpush1.bf16.msra.mxu0 %v3510
      %3514 = vmatprep.subr.bf16.mxu0 0
      %3515 = vmatpush1.bf16.msra.mxu0 0
      %3516 = vmatprep.subr.bf16.mxu0 0
      %3517 = vmatpush1.bf16.msra.mxu0 0
      %3518 = vmatprep.subr.bf16.mxu0 0
      %3519 = vmatpush1.bf16.msra.mxu0 0
      %3520 = vmatprep.subr.bf16.mxu0 0
      %3521 = vmatpush1.bf16.msra.mxu0 0
      %3522 = vmatprep.subr.bf16.mxu0 0
      %3523 = vmatpush1.bf16.msra.mxu0 0
      %3524 = vmatprep.subr.bf16.mxu0 0
      %3525 = vmatpush1.bf16.msra.mxu0 0
      %3526 = vmatprep.subr.bf16.mxu0 0
      %3527 = vmatpush1.bf16.msra.mxu0 0
      %3528 = vmatprep.subr.bf16.mxu0 0
      %3529 = vmatpush1.bf16.msra.mxu0 0
      %3530 = vmatprep.subr.bf16.mxu0 0
      %3531 = vmatpush1.bf16.msra.mxu0 0
      %3532 = vmatprep.subr.bf16.mxu0 0
      %3533 = vmatpush1.bf16.msra.mxu0 0
      %3534 = vmatprep.subr.bf16.mxu0 0
      %3535 = vmatpush1.bf16.msra.mxu0 0
      %3536 = vmatprep.subr.bf16.mxu0 0
      %3537 = vmatpush1.bf16.msra.mxu0 0
      %3538 = vmatprep.subr.bf16.mxu0 0
      %3539 = vmatpush1.bf16.msra.mxu0 0
      %3540 = vmatprep.subr.bf16.mxu0 0
      %3541 = vmatpush1.bf16.msra.mxu0 0
      %3542 = vmatprep.subr.bf16.mxu0 0
      %3543 = vmatpush1.bf16.msra.mxu0 0
      %3544 = vmatprep.mubr.bf16.mxu0 0
      %3545 = vmatmul.mubr.bf16.gmra.mrb[0].mxu0 %v3447
      %v3546 = vpop.f32.mrb[0].mxu0
      %v3547 = vadd.f32 0.0, %v3546
      %v3548 = vpop.f32.mrb[0].mxu0
      %v3549 = vpop.f32.mrb[0].mxu0
      %v3550 = vadd.f32 0.0, %v3549
      %v3551 = vpop.f32.mrb[0].mxu0
      %3552 = vmatprep.mubr.bf16.mxu0 0
      %3553 = vmatmul.mubr.bf16.gmra.mrb[0].mxu0 %v3450
      %v3554 = vpop.f32.mrb[0].mxu0
      %v3555 = vadd.f32 0.0, %v3554
      %v3556 = vpop.f32.mrb[0].mxu0
      %v3557 = vpop.f32.mrb[0].mxu0
      %v3558 = vadd.f32 0.0, %v3557
      %v3559 = vpop.f32.mrb[0].mxu0
      %3560 = vdwg.mxu0
      %v3561 = vsel %vm902, %v3493, -inf
      %3562 = vmax.xlane.f32.xlu0 %v3561
      %v3563 = vpop.xlane.xlu0 %3562
      %v3564 = vsel %vm902, %v3496, -inf
      %3565 = vmax.xlane.f32.xlu0 %v3564
      %v3566 = vpop.xlane.xlu0 %3565
      %v3567 = vsel %vm902, %v3501, -inf
      %3568 = vmax.xlane.f32.xlu0 %v3567
      %v3569 = vpop.xlane.xlu0 %3568
      %v3570 = vsel %vm912, %v3504, -inf
      %3571 = vmax.xlane.f32.xlu0 %v3570
      %v3572 = vpop.xlane.xlu0 %3571
      %v3573 = vsel %vm916, %v3547, -inf
      %3574 = vmax.xlane.f32.xlu0 %v3573
      %v3575 = vpop.xlane.xlu0 %3574
      %v3576 = vsel %vm916, %v3550, -inf
      %3577 = vmax.xlane.f32.xlu0 %v3576
      %v3578 = vpop.xlane.xlu0 %3577
      %v3579 = vsel %vm916, %v3555, -inf
      %3580 = vmax.xlane.f32.xlu0 %v3579
      %v3581 = vpop.xlane.xlu0 %3580
      %v3582 = vsel %vm926, %v3558, -inf
      %3583 = vmax.xlane.f32.xlu0 %v3582
      %v3584 = vpop.xlane.xlu0 %3583
      %v3585 = vmax.f32 %v3563, %v3575
      %v3586 = vmax.f32 %v3566, %v3578
      %v3587 = vmax.f32 %v3569, %v3581
      %v3588 = vmax.f32 %v3572, %v3584
      %v3589 = vsub.f32 %v3493, %v3585
      %v3590 = vsub.f32 %v3496, %v3586
      %v3591 = vsub.f32 %v3501, %v3587
      %v3592 = vsub.f32 %v3504, %v3588
      %v3593 = vmul.f32 %v3589, 1.442695
      %v3594 = vpow.pop %v3593
      %v3595 = vmul.f32 %v3590, 1.442695
      %v3596 = vpow.pop %v3595
      %v3597 = vmul.f32 %v3591, 1.442695
      %v3598 = vpow.pop %v3597
      %v3599 = vmul.f32 %v3592, 1.442695
      %v3600 = vpow.pop %v3599
      %v3601 = vsub.f32 %v3547, %v3585
      %v3602 = vsub.f32 %v3550, %v3586
      %v3603 = vsub.f32 %v3555, %v3587
      %v3604 = vsub.f32 %v3558, %v3588
      %v3605 = vmul.f32 %v3601, 1.442695
      %v3606 = vpow.pop %v3605
      %v3607 = vmul.f32 %v3602, 1.442695
      %v3608 = vpow.pop %v3607
      %v3609 = vmul.f32 %v3603, 1.442695
      %v3610 = vpow.pop %v3609
      %v3611 = vmul.f32 %v3604, 1.442695
      %v3612 = vpow.pop %v3611
      %v3613 = vsel %vm902, %v3594, 0.0
      %3614 = vadd.xlane.f32.xlu0 %v3613
      %v3615 = vpop.xlane.xlu0 %3614
      %v3616 = vsel %vm902, %v3596, 0.0
      %3617 = vadd.xlane.f32.xlu0 %v3616
      %v3618 = vpop.xlane.xlu0 %3617
      %v3619 = vsel %vm902, %v3598, 0.0
      %3620 = vadd.xlane.f32.xlu0 %v3619
      %v3621 = vpop.xlane.xlu0 %3620
      %v3622 = vsel %vm912, %v3600, 0.0
      %3623 = vadd.xlane.f32.xlu0 %v3622
      %v3624 = vpop.xlane.xlu0 %3623
      %v3625 = vsel %vm916, %v3606, 0.0
      %3626 = vadd.xlane.f32.xlu0 %v3625
      %v3627 = vpop.xlane.xlu0 %3626
      %v3628 = vsel %vm916, %v3608, 0.0
      %3629 = vadd.xlane.f32.xlu0 %v3628
      %v3630 = vpop.xlane.xlu0 %3629
      %v3631 = vsel %vm916, %v3610, 0.0
      %3632 = vadd.xlane.f32.xlu0 %v3631
      %v3633 = vpop.xlane.xlu0 %3632
      %v3634 = vsel %vm926, %v3612, 0.0
      %3635 = vadd.xlane.f32.xlu0 %v3634
      %v3636 = vpop.xlane.xlu0 %3635
      %v3637 = vadd.f32 %v3615, %v3627
      %v3638 = vadd.f32 %v3618, %v3630
      %v3639 = vadd.f32 %v3621, %v3633
      %v3640 = vadd.f32 %v3624, %v3636
      %v3641 = vrcp.pop %v3637
      %v3642 = vrcp.pop %v3638
      %v3643 = vrcp.pop %v3639
      %v3644 = vrcp.pop %v3640
      %v3645 = vpack.c.bf16 %v3596, %v3594
      %v3646 = vpack.c.bf16 %v3600, %v3598
      %v3647 = vpack.c.bf16 %v3608, %v3606
      %v3648 = vpack.c.bf16 %v3612, %v3610
      %s3649 = scalar_lea.vmem %s8, 12
      %v3650 = vld [vmem:[%s3649] sm:$0x3]
      %v3652 = vsel %vm916, %v3647, 0
      %v3655 = vsel %vm916, %v3648, 0
      %v3658 = vsel %vm1001, %v3650, 0
      %3660 = vmatprep.subr.bf16.mxu0 0
      %3661 = vmatpush1.bf16.msra.mxu0 %v3658
      %3662 = vmatprep.subr.bf16.mxu0 0
      %3663 = vmatpush1.bf16.msra.mxu0 0
      %3664 = vmatprep.subr.bf16.mxu0 0
      %3665 = vmatpush1.bf16.msra.mxu0 0
      %3666 = vmatprep.subr.bf16.mxu0 0
      %3667 = vmatpush1.bf16.msra.mxu0 0
      %3668 = vmatprep.subr.bf16.mxu0 0
      %3669 = vmatpush1.bf16.msra.mxu0 0
      %3670 = vmatprep.subr.bf16.mxu0 0
      %3671 = vmatpush1.bf16.msra.mxu0 0
      %3672 = vmatprep.subr.bf16.mxu0 0
      %3673 = vmatpush1.bf16.msra.mxu0 0
      %3674 = vmatprep.subr.bf16.mxu0 0
      %3675 = vmatpush1.bf16.msra.mxu0 0
      %3676 = vmatprep.subr.bf16.mxu0 0
      %3677 = vmatpush1.bf16.msra.mxu0 0
      %3678 = vmatprep.subr.bf16.mxu0 0
      %3679 = vmatpush1.bf16.msra.mxu0 0
      %3680 = vmatprep.subr.bf16.mxu0 0
      %3681 = vmatpush1.bf16.msra.mxu0 0
      %3682 = vmatprep.subr.bf16.mxu0 0
      %3683 = vmatpush1.bf16.msra.mxu0 0
      %3684 = vmatprep.subr.bf16.mxu0 0
      %3685 = vmatpush1.bf16.msra.mxu0 0
      %3686 = vmatprep.subr.bf16.mxu0 0
      %3687 = vmatpush1.bf16.msra.mxu0 0
      %3688 = vmatprep.subr.bf16.mxu0 0
      %3689 = vmatpush1.bf16.msra.mxu0 0
      %3690 = vmatprep.subr.bf16.mxu0 0
      %3691 = vmatpush1.bf16.msra.mxu0 0
      %3692 = vmatprep.mubr.bf16.mxu0 0
      %3693 = vmatmul.mubr.bf16.gmra.mrb[0].mxu0 %v3652
      %v3694 = vpop.f32.mrb[0].mxu0
      %v3695 = vadd.f32 0.0, %v3694
      %v3696 = vpop.f32.mrb[0].mxu0
      %v3697 = vpop.f32.mrb[0].mxu0
      %v3698 = vadd.f32 0.0, %v3697
      %v3699 = vpop.f32.mrb[0].mxu0
      %3700 = vmatprep.mubr.bf16.mxu0 0
      %3701 = vmatmul.mubr.bf16.gmra.mrb[0].mxu0 %v3655
      %v3702 = vpop.f32.mrb[0].mxu0
      %v3703 = vadd.f32 0.0, %v3702
      %v3704 = vpop.f32.mrb[0].mxu0
      %v3705 = vpop.f32.mrb[0].mxu0
      %v3706 = vadd.f32 0.0, %v3705
      %v3707 = vpop.f32.mrb[0].mxu0
      %3708 = vdwg.mxu0
      %3709 = vrot.lane.b32.xlu0 %v2762, 48
      %v3710 = vpop.permute.xlu0 %3709
      %3711 = vrot.lane.b32.xlu0 %v2763, 48
      %v3712 = vpop.permute.xlu0 %3711
      %v3715 = vsel %vm902, %v3645, 0
      %v3718 = vsel %vm902, %v3646, 0
      %v3721 = vsel %vm1065, %v3712, 0
      %3723 = vmatprep.subr.bf16.mxu0 0
      %3724 = vmatpush1.bf16.msra.mxu0 %v3710
      %3725 = vmatprep.subr.bf16.mxu0 0
      %3726 = vmatpush1.bf16.msra.mxu0 %v3721
      %3727 = vmatprep.subr.bf16.mxu0 0
      %3728 = vmatpush1.bf16.msra.mxu0 0
      %3729 = vmatprep.subr.bf16.mxu0 0
      %3730 = vmatpush1.bf16.msra.mxu0 0
      %3731 = vmatprep.subr.bf16.mxu0 0
      %3732 = vmatpush1.bf16.msra.mxu0 0
      %3733 = vmatprep.subr.bf16.mxu0 0
      %3734 = vmatpush1.bf16.msra.mxu0 0
      %3735 = vmatprep.subr.bf16.mxu0 0
      %3736 = vmatpush1.bf16.msra.mxu0 0
      %3737 = vmatprep.subr.bf16.mxu0 0
      %3738 = vmatpush1.bf16.msra.mxu0 0
      %3739 = vmatprep.subr.bf16.mxu0 0
      %3740 = vmatpush1.bf16.msra.mxu0 0
      %3741 = vmatprep.subr.bf16.mxu0 0
      %3742 = vmatpush1.bf16.msra.mxu0 0
      %3743 = vmatprep.subr.bf16.mxu0 0
      %3744 = vmatpush1.bf16.msra.mxu0 0
      %3745 = vmatprep.subr.bf16.mxu0 0
      %3746 = vmatpush1.bf16.msra.mxu0 0
      %3747 = vmatprep.subr.bf16.mxu0 0
      %3748 = vmatpush1.bf16.msra.mxu0 0
      %3749 = vmatprep.subr.bf16.mxu0 0
      %3750 = vmatpush1.bf16.msra.mxu0 0
      %3751 = vmatprep.subr.bf16.mxu0 0
      %3752 = vmatpush1.bf16.msra.mxu0 0
      %3753 = vmatprep.subr.bf16.mxu0 0
      %3754 = vmatpush1.bf16.msra.mxu0 0
      %3755 = vmatprep.mubr.bf16.mxu0 0
      %3756 = vmatmul.mubr.bf16.gmra.mrb[0].mxu0 %v3715
      %v3757 = vpop.f32.mrb[0].mxu0
      %v3758 = vadd.f32 %v3695, %v3757
      %v3759 = vpop.f32.mrb[0].mxu0
      %v3760 = vpop.f32.mrb[0].mxu0
      %v3761 = vadd.f32 %v3698, %v3760
      %v3762 = vpop.f32.mrb[0].mxu0
      %3763 = vmatprep.mubr.bf16.mxu0 0
      %3764 = vmatmul.mubr.bf16.gmra.mrb[0].mxu0 %v3718
      %v3765 = vpop.f32.mrb[0].mxu0
      %v3766 = vadd.f32 %v3703, %v3765
      %v3767 = vpop.f32.mrb[0].mxu0
      %v3768 = vpop.f32.mrb[0].mxu0
      %v3769 = vadd.f32 %v3706, %v3768
      %v3770 = vpop.f32.mrb[0].mxu0
      %3771 = vdwg.mxu0
      %v3772 = vmul.f32 %v3758, %v3641
      %v3773 = vmul.f32 %v3761, %v3642
      %v3774 = vmul.f32 %v3766, %v3643
      %v3775 = vmul.f32 %v3769, %v3644
      %3776 = vrot.lane.b32.xlu0 %v2762, 104
      %v3777 = vpop.permute.xlu0 %3776
      %3778 = vrot.lane.b32.xlu0 %v2763, 104
      %v3779 = vpop.permute.xlu0 %3778
      %3780 = vrot.lane.b32.xlu0 %v2762, 72
      %v3781 = vpop.permute.xlu0 %3780
      %3782 = vrot.lane.b32.xlu0 %v2763, 72
      %v3783 = vpop.permute.xlu0 %3782
      %v3785 = vsel %vm786, %v3777, 0
      %v3788 = vsel %vm786, %v3779, 0
      %v3791 = vsel %vm786, %v3781, 0
      %v3794 = vsel %vm786, %v3783, 0
      %3796 = vmatprep.subr.bf16.mxu0 0
      %3797 = vmatpush1.bf16.xpose.msra.mxu0 %v3791
      %3798 = vmatprep.subr.bf16.mxu0 0
      %3799 = vmatpush1.bf16.xpose.msra.mxu0 %v3794
      %3800 = vmatprep.subr.bf16.mxu0 0
      %3801 = vmatpush1.bf16.xpose.msra.mxu0 0
      %3802 = vmatprep.subr.bf16.mxu0 0
      %3803 = vmatpush1.bf16.xpose.msra.mxu0 0
      %3804 = vmatprep.subr.bf16.mxu0 0
      %3805 = vmatpush1.bf16.xpose.msra.mxu0 0
      %3806 = vmatprep.subr.bf16.mxu0 0
      %3807 = vmatpush1.bf16.xpose.msra.mxu0 0
      %3808 = vmatprep.subr.bf16.mxu0 0
      %3809 = vmatpush1.bf16.xpose.msra.mxu0 0
      %3810 = vmatprep.subr.bf16.mxu0 0
      %3811 = vmatpush1.bf16.xpose.msra.mxu0 0
      %3812 = vmatprep.subr.bf16.mxu0 0
      %3813 = vmatpush1.bf16.xpose.msra.mxu0 0
      %3814 = vmatprep.subr.bf16.mxu0 0
      %3815 = vmatpush1.bf16.xpose.msra.mxu0 0
      %3816 = vmatprep.subr.bf16.mxu0 0
      %3817 = vmatpush1.bf16.xpose.msra.mxu0 0
      %3818 = vmatprep.subr.bf16.mxu0 0
      %3819 = vmatpush1.bf16.xpose.msra.mxu0 0
      %3820 = vmatprep.subr.bf16.mxu0 0
      %3821 = vmatpush1.bf16.xpose.msra.mxu0 0
      %3822 = vmatprep.subr.bf16.mxu0 0
      %3823 = vmatpush1.bf16.xpose.msra.mxu0 0
      %3824 = vmatprep.subr.bf16.mxu0 0
      %3825 = vmatpush1.bf16.xpose.msra.mxu0 0
      %3826 = vmatprep.subr.bf16.mxu0 0
      %3827 = vmatpush1.bf16.xpose.msra.mxu0 0
      %3828 = vmatprep.mubr.bf16.mxu0 0
      %3829 = vmatmul.mubr.bf16.gmra.mrb[0].mxu0 %v3785
      %v3830 = vpop.f32.mrb[0].mxu0
      %v3831 = vadd.f32 %v624, %v3830
      %v3832 = vpop.f32.mrb[0].mxu0
      %v3833 = vpop.f32.mrb[0].mxu0
      %v3834 = vadd.f32 %v625, %v3833
      %v3835 = vpop.f32.mrb[0].mxu0
      %3836 = vmatprep.mubr.bf16.mxu0 0
      %3837 = vmatmul.mubr.bf16.gmra.mrb[0].mxu0 %v3788
      %v3838 = vpop.f32.mrb[0].mxu0
      %v3839 = vadd.f32 %v626, %v3838
      %v3840 = vpop.f32.mrb[0].mxu0
      %v3841 = vpop.f32.mrb[0].mxu0
      %v3842 = vadd.f32 %v627, %v3841
      %v3843 = vpop.f32.mrb[0].mxu0
      %3844 = vdwg.mxu0
      %s3845 = scalar_lea.vmem %s7, 28
      %v3846 = vld [vmem:[%s3845] sm:$0xf]
      %v3848 = vsel %vm849, %v3846, 0
      %3850 = vmatprep.subr.bf16.mxu0 0
      %3851 = vmatpush1.bf16.msra.mxu0 %v3848
      %3852 = vmatprep.subr.bf16.mxu0 0
      %3853 = vmatpush1.bf16.msra.mxu0 0
      %3854 = vmatprep.subr.bf16.mxu0 0
      %3855 = vmatpush1.bf16.msra.mxu0 0
      %3856 = vmatprep.subr.bf16.mxu0 0
      %3857 = vmatpush1.bf16.msra.mxu0 0
      %3858 = vmatprep.subr.bf16.mxu0 0
      %3859 = vmatpush1.bf16.msra.mxu0 0
      %3860 = vmatprep.subr.bf16.mxu0 0
      %3861 = vmatpush1.bf16.msra.mxu0 0
      %3862 = vmatprep.subr.bf16.mxu0 0
      %3863 = vmatpush1.bf16.msra.mxu0 0
      %3864 = vmatprep.subr.bf16.mxu0 0
      %3865 = vmatpush1.bf16.msra.mxu0 0
      %3866 = vmatprep.subr.bf16.mxu0 0
      %3867 = vmatpush1.bf16.msra.mxu0 0
      %3868 = vmatprep.subr.bf16.mxu0 0
      %3869 = vmatpush1.bf16.msra.mxu0 0
      %3870 = vmatprep.subr.bf16.mxu0 0
      %3871 = vmatpush1.bf16.msra.mxu0 0
      %3872 = vmatprep.subr.bf16.mxu0 0
      %3873 = vmatpush1.bf16.msra.mxu0 0
      %3874 = vmatprep.subr.bf16.mxu0 0
      %3875 = vmatpush1.bf16.msra.mxu0 0
      %3876 = vmatprep.subr.bf16.mxu0 0
      %3877 = vmatpush1.bf16.msra.mxu0 0
      %3878 = vmatprep.subr.bf16.mxu0 0
      %3879 = vmatpush1.bf16.msra.mxu0 0
      %3880 = vmatprep.subr.bf16.mxu0 0
      %3881 = vmatpush1.bf16.msra.mxu0 0
      %3882 = vmatprep.mubr.bf16.mxu0 0
      %3883 = vmatmul.mubr.bf16.gmra.mrb[0].mxu0 %v3785
      %v3884 = vpop.f32.mrb[0].mxu0
      %v3885 = vadd.f32 0.0, %v3884
      %v3886 = vpop.f32.mrb[0].mxu0
      %v3887 = vpop.f32.mrb[0].mxu0
      %v3888 = vadd.f32 0.0, %v3887
      %v3889 = vpop.f32.mrb[0].mxu0
      %3890 = vmatprep.mubr.bf16.mxu0 0
      %3891 = vmatmul.mubr.bf16.gmra.mrb[0].mxu0 %v3788
      %v3892 = vpop.f32.mrb[0].mxu0
      %v3893 = vadd.f32 0.0, %v3892
      %v3894 = vpop.f32.mrb[0].mxu0
      %v3895 = vpop.f32.mrb[0].mxu0
      %v3896 = vadd.f32 0.0, %v3895
      %v3897 = vpop.f32.mrb[0].mxu0
      %3898 = vdwg.mxu0
      %v3899 = vsel %vm902, %v3831, -inf
      %3900 = vmax.xlane.f32.xlu0 %v3899
      %v3901 = vpop.xlane.xlu0 %3900
      %v3902 = vsel %vm902, %v3834, -inf
      %3903 = vmax.xlane.f32.xlu0 %v3902
      %v3904 = vpop.xlane.xlu0 %3903
      %v3905 = vsel %vm902, %v3839, -inf
      %3906 = vmax.xlane.f32.xlu0 %v3905
      %v3907 = vpop.xlane.xlu0 %3906
      %v3908 = vsel %vm912, %v3842, -inf
      %3909 = vmax.xlane.f32.xlu0 %v3908
      %v3910 = vpop.xlane.xlu0 %3909
      %v3911 = vsel %vm916, %v3885, -inf
      %3912 = vmax.xlane.f32.xlu0 %v3911
      %v3913 = vpop.xlane.xlu0 %3912
      %v3914 = vsel %vm916, %v3888, -inf
      %3915 = vmax.xlane.f32.xlu0 %v3914
      %v3916 = vpop.xlane.xlu0 %3915
      %v3917 = vsel %vm916, %v3893, -inf
      %3918 = vmax.xlane.f32.xlu0 %v3917
      %v3919 = vpop.xlane.xlu0 %3918
      %v3920 = vsel %vm926, %v3896, -inf
      %3921 = vmax.xlane.f32.xlu0 %v3920
      %v3922 = vpop.xlane.xlu0 %3921
      %v3923 = vmax.f32 %v3901, %v3913
      %v3924 = vmax.f32 %v3904, %v3916
      %v3925 = vmax.f32 %v3907, %v3919
      %v3926 = vmax.f32 %v3910, %v3922
      %v3927 = vsub.f32 %v3831, %v3923
      %v3928 = vsub.f32 %v3834, %v3924
      %v3929 = vsub.f32 %v3839, %v3925
      %v3930 = vsub.f32 %v3842, %v3926
      %v3931 = vmul.f32 %v3927, 1.442695
      %v3932 = vpow.pop %v3931
      %v3933 = vmul.f32 %v3928, 1.442695
      %v3934 = vpow.pop %v3933
      %v3935 = vmul.f32 %v3929, 1.442695
      %v3936 = vpow.pop %v3935
      %v3937 = vmul.f32 %v3930, 1.442695
      %v3938 = vpow.pop %v3937
      %v3939 = vsub.f32 %v3885, %v3923
      %v3940 = vsub.f32 %v3888, %v3924
      %v3941 = vsub.f32 %v3893, %v3925
      %v3942 = vsub.f32 %v3896, %v3926
      %v3943 = vmul.f32 %v3939, 1.442695
      %v3944 = vpow.pop %v3943
      %v3945 = vmul.f32 %v3940, 1.442695
      %v3946 = vpow.pop %v3945
      %v3947 = vmul.f32 %v3941, 1.442695
      %v3948 = vpow.pop %v3947
      %v3949 = vmul.f32 %v3942, 1.442695
      %v3950 = vpow.pop %v3949
      %v3951 = vsel %vm902, %v3932, 0.0
      %3952 = vadd.xlane.f32.xlu0 %v3951
      %v3953 = vpop.xlane.xlu0 %3952
      %v3954 = vsel %vm902, %v3934, 0.0
      %3955 = vadd.xlane.f32.xlu0 %v3954
      %v3956 = vpop.xlane.xlu0 %3955
      %v3957 = vsel %vm902, %v3936, 0.0
      %3958 = vadd.xlane.f32.xlu0 %v3957
      %v3959 = vpop.xlane.xlu0 %3958
      %v3960 = vsel %vm912, %v3938, 0.0
      %3961 = vadd.xlane.f32.xlu0 %v3960
      %v3962 = vpop.xlane.xlu0 %3961
      %v3963 = vsel %vm916, %v3944, 0.0
      %3964 = vadd.xlane.f32.xlu0 %v3963
      %v3965 = vpop.xlane.xlu0 %3964
      %v3966 = vsel %vm916, %v3946, 0.0
      %3967 = vadd.xlane.f32.xlu0 %v3966
      %v3968 = vpop.xlane.xlu0 %3967
      %v3969 = vsel %vm916, %v3948, 0.0
      %3970 = vadd.xlane.f32.xlu0 %v3969
      %v3971 = vpop.xlane.xlu0 %3970
      %v3972 = vsel %vm926, %v3950, 0.0
      %3973 = vadd.xlane.f32.xlu0 %v3972
      %v3974 = vpop.xlane.xlu0 %3973
      %v3975 = vadd.f32 %v3953, %v3965
      %v3976 = vadd.f32 %v3956, %v3968
      %v3977 = vadd.f32 %v3959, %v3971
      %v3978 = vadd.f32 %v3962, %v3974
      %v3979 = vrcp.pop %v3975
      %v3980 = vrcp.pop %v3976
      %v3981 = vrcp.pop %v3977
      %v3982 = vrcp.pop %v3978
      %v3983 = vpack.c.bf16 %v3934, %v3932
      %v3984 = vpack.c.bf16 %v3938, %v3936
      %v3985 = vpack.c.bf16 %v3946, %v3944
      %v3986 = vpack.c.bf16 %v3950, %v3948
      %s3987 = scalar_lea.vmem %s8, 14
      %v3988 = vld [vmem:[%s3987] sm:$0x3]
      %v3990 = vsel %vm916, %v3985, 0
      %v3993 = vsel %vm916, %v3986, 0
      %v3996 = vsel %vm1001, %v3988, 0
      %3998 = vmatprep.subr.bf16.mxu0 0
      %3999 = vmatpush1.bf16.msra.mxu0 %v3996
      %4000 = vmatprep.subr.bf16.mxu0 0
      %4001 = vmatpush1.bf16.msra.mxu0 0
      %4002 = vmatprep.subr.bf16.mxu0 0
      %4003 = vmatpush1.bf16.msra.mxu0 0
      %4004 = vmatprep.subr.bf16.mxu0 0
      %4005 = vmatpush1.bf16.msra.mxu0 0
      %4006 = vmatprep.subr.bf16.mxu0 0
      %4007 = vmatpush1.bf16.msra.mxu0 0
      %4008 = vmatprep.subr.bf16.mxu0 0
      %4009 = vmatpush1.bf16.msra.mxu0 0
      %4010 = vmatprep.subr.bf16.mxu0 0
      %4011 = vmatpush1.bf16.msra.mxu0 0
      %4012 = vmatprep.subr.bf16.mxu0 0
      %4013 = vmatpush1.bf16.msra.mxu0 0
      %4014 = vmatprep.subr.bf16.mxu0 0
      %4015 = vmatpush1.bf16.msra.mxu0 0
      %4016 = vmatprep.subr.bf16.mxu0 0
      %4017 = vmatpush1.bf16.msra.mxu0 0
      %4018 = vmatprep.subr.bf16.mxu0 0
      %4019 = vmatpush1.bf16.msra.mxu0 0
      %4020 = vmatprep.subr.bf16.mxu0 0
      %4021 = vmatpush1.bf16.msra.mxu0 0
      %4022 = vmatprep.subr.bf16.mxu0 0
      %4023 = vmatpush1.bf16.msra.mxu0 0
      %4024 = vmatprep.subr.bf16.mxu0 0
      %4025 = vmatpush1.bf16.msra.mxu0 0
      %4026 = vmatprep.subr.bf16.mxu0 0
      %4027 = vmatpush1.bf16.msra.mxu0 0
      %4028 = vmatprep.subr.bf16.mxu0 0
      %4029 = vmatpush1.bf16.msra.mxu0 0
      %4030 = vmatprep.mubr.bf16.mxu0 0
      %4031 = vmatmul.mubr.bf16.gmra.mrb[0].mxu0 %v3990
      %v4032 = vpop.f32.mrb[0].mxu0
      %v4033 = vadd.f32 0.0, %v4032
      %v4034 = vpop.f32.mrb[0].mxu0
      %v4035 = vpop.f32.mrb[0].mxu0
      %v4036 = vadd.f32 0.0, %v4035
      %v4037 = vpop.f32.mrb[0].mxu0
      %4038 = vmatprep.mubr.bf16.mxu0 0
      %4039 = vmatmul.mubr.bf16.gmra.mrb[0].mxu0 %v3993
      %v4040 = vpop.f32.mrb[0].mxu0
      %v4041 = vadd.f32 0.0, %v4040
      %v4042 = vpop.f32.mrb[0].mxu0
      %v4043 = vpop.f32.mrb[0].mxu0
      %v4044 = vadd.f32 0.0, %v4043
      %v4045 = vpop.f32.mrb[0].mxu0
      %4046 = vdwg.mxu0
      %4047 = vrot.lane.b32.xlu0 %v2762, 40
      %v4048 = vpop.permute.xlu0 %4047
      %4049 = vrot.lane.b32.xlu0 %v2763, 40
      %v4050 = vpop.permute.xlu0 %4049
      %v4053 = vsel %vm902, %v3983, 0
      %v4056 = vsel %vm902, %v3984, 0
      %v4059 = vsel %vm1065, %v4050, 0
      %4061 = vmatprep.subr.bf16.mxu0 0
      %4062 = vmatpush1.bf16.msra.mxu0 %v4048
      %4063 = vmatprep.subr.bf16.mxu0 0
      %4064 = vmatpush1.bf16.msra.mxu0 %v4059
      %4065 = vmatprep.subr.bf16.mxu0 0
      %4066 = vmatpush1.bf16.msra.mxu0 0
      %4067 = vmatprep.subr.bf16.mxu0 0
      %4068 = vmatpush1.bf16.msra.mxu0 0
      %4069 = vmatprep.subr.bf16.mxu0 0
      %4070 = vmatpush1.bf16.msra.mxu0 0
      %4071 = vmatprep.subr.bf16.mxu0 0
      %4072 = vmatpush1.bf16.msra.mxu0 0
      %4073 = vmatprep.subr.bf16.mxu0 0
      %4074 = vmatpush1.bf16.msra.mxu0 0
      %4075 = vmatprep.subr.bf16.mxu0 0
      %4076 = vmatpush1.bf16.msra.mxu0 0
      %4077 = vmatprep.subr.bf16.mxu0 0
      %4078 = vmatpush1.bf16.msra.mxu0 0
      %4079 = vmatprep.subr.bf16.mxu0 0
      %4080 = vmatpush1.bf16.msra.mxu0 0
      %4081 = vmatprep.subr.bf16.mxu0 0
      %4082 = vmatpush1.bf16.msra.mxu0 0
      %4083 = vmatprep.subr.bf16.mxu0 0
      %4084 = vmatpush1.bf16.msra.mxu0 0
      %4085 = vmatprep.subr.bf16.mxu0 0
      %4086 = vmatpush1.bf16.msra.mxu0 0
      %4087 = vmatprep.subr.bf16.mxu0 0
      %4088 = vmatpush1.bf16.msra.mxu0 0
      %4089 = vmatprep.subr.bf16.mxu0 0
      %4090 = vmatpush1.bf16.msra.mxu0 0
      %4091 = vmatprep.subr.bf16.mxu0 0
      %4092 = vmatpush1.bf16.msra.mxu0 0
      %4093 = vmatprep.mubr.bf16.mxu0 0
      %4094 = vmatmul.mubr.bf16.gmra.mrb[0].mxu0 %v4053
      %v4095 = vpop.f32.mrb[0].mxu0
      %v4096 = vadd.f32 %v4033, %v4095
      %v4097 = vpop.f32.mrb[0].mxu0
      %v4098 = vpop.f32.mrb[0].mxu0
      %v4099 = vadd.f32 %v4036, %v4098
      %v4100 = vpop.f32.mrb[0].mxu0
      %4101 = vmatprep.mubr.bf16.mxu0 0
      %4102 = vmatmul.mubr.bf16.gmra.mrb[0].mxu0 %v4056
      %v4103 = vpop.f32.mrb[0].mxu0
      %v4104 = vadd.f32 %v4041, %v4103
      %v4105 = vpop.f32.mrb[0].mxu0
      %v4106 = vpop.f32.mrb[0].mxu0
      %v4107 = vadd.f32 %v4044, %v4106
      %v4108 = vpop.f32.mrb[0].mxu0
      %4109 = vdwg.mxu0
      %v4110 = vmul.f32 %v4096, %v3979
      %v4111 = vmul.f32 %v4099, %v3980
      %v4112 = vmul.f32 %v4104, %v3981
      %v4113 = vmul.f32 %v4107, %v3982
      %4118 = vrot.lane.b32.xlu0 %v3434, 8
      %v4119 = vpop.permute.xlu0 %4118
      %4120 = vrot.lane.b32.xlu0 %v3435, 8
      %v4121 = vpop.permute.xlu0 %4120
      %4122 = vrot.lane.b32.xlu0 %v3436, 8
      %v4123 = vpop.permute.xlu0 %4122
      %4124 = vrot.lane.b32.xlu0 %v3437, 8
      %v4125 = vpop.permute.xlu0 %4124
      %4134 = vrot.lane.b32.xlu0 %v3772, 16
      %v4135 = vpop.permute.xlu0 %4134
      %4136 = vrot.lane.b32.xlu0 %v3773, 16
      %v4137 = vpop.permute.xlu0 %4136
      %4138 = vrot.lane.b32.xlu0 %v3774, 16
      %v4139 = vpop.permute.xlu0 %4138
      %4140 = vrot.lane.b32.xlu0 %v3775, 16
      %v4141 = vpop.permute.xlu0 %4140
      %4150 = vrot.lane.b32.xlu0 %v4110, 24
      %v4151 = vpop.permute.xlu0 %4150
      %4152 = vrot.lane.b32.xlu0 %v4111, 24
      %v4153 = vpop.permute.xlu0 %4152
      %4154 = vrot.lane.b32.xlu0 %v4112, 24
      %v4155 = vpop.permute.xlu0 %4154
      %4156 = vrot.lane.b32.xlu0 %v4113, 24
      %v4157 = vpop.permute.xlu0 %4156
      %v4162 = vsel %vm786, %v3096, %v4119
      %v4163 = vsel %vm786, %v3097, %v4121
      %v4164 = vsel %vm786, %v3098, %v4123
      %v4165 = vsel %vm786, %v3099, %v4125
      %v4166 = vsel %vm2188, %v4162, %v4135
      %v4167 = vsel %vm2188, %v4163, %v4137
      %v4168 = vsel %vm2188, %v4164, %v4139
      %v4169 = vsel %vm2188, %v4165, %v4141
      %v4170 = vsel %vm2193, %v4166, %v4151
      %v4171 = vsel %vm2193, %v4167, %v4153
      %v4172 = vsel %vm2193, %v4168, %v4155
      %v4173 = vsel %vm2193, %v4169, %v4157
      %v4174 = vpack.c.bf16 %v4171, %v4170
      %v4175 = vpack.c.bf16 %v4173, %v4172
      %s4176 = scalar_lea.vmem %s6, 16
      %v4177 = vld [vmem:[%s4176] sm:$0xf]
      %v4178 = vld [vmem:[%s4176 + $0x4] sm:$0xf]
      %v4179 = vld [vmem:[%s4176 + $0x8] sm:$0xf]
      %v4180 = vld [vmem:[%s4176 + $0xc] sm:$0xf]
      %v4185 = vunpack.c.l.b16 %v4177
      %v4186 = vunpack.c.l.b16 %v4178
      %v4187 = vunpack.c.l.b16 %v4179
      %v4188 = vunpack.c.l.b16 %v4180
      %v4189 = vpack.c.b16 %v4186, %v4185
      %v4190 = vpack.c.b16 %v4188, %v4187
      %v4194 = vsel %vm630, %v4174, 0
      %v4197 = vsel %vm630, %v4175, 0
      %4199 = vmatprep.subr.bf16.mxu0 0
      %4200 = vmatpush1.bf16.msra.mxu0 %v4189
      %4201 = vmatprep.subr.bf16.mxu0 0
      %4202 = vmatpush1.bf16.msra.mxu0 %v4190
      %4203 = vmatprep.subr.bf16.mxu0 0
      %4204 = vmatpush1.bf16.msra.mxu0 0
      %4205 = vmatprep.subr.bf16.mxu0 0
      %4206 = vmatpush1.bf16.msra.mxu0 0
      %4207 = vmatprep.subr.bf16.mxu0 0
      %4208 = vmatpush1.bf16.msra.mxu0 0
      %4209 = vmatprep.subr.bf16.mxu0 0
      %4210 = vmatpush1.bf16.msra.mxu0 0
      %4211 = vmatprep.subr.bf16.mxu0 0
      %4212 = vmatpush1.bf16.msra.mxu0 0
      %4213 = vmatprep.subr.bf16.mxu0 0
      %4214 = vmatpush1.bf16.msra.mxu0 0
      %4215 = vmatprep.subr.bf16.mxu0 0
      %4216 = vmatpush1.bf16.msra.mxu0 0
      %4217 = vmatprep.subr.bf16.mxu0 0
      %4218 = vmatpush1.bf16.msra.mxu0 0
      %4219 = vmatprep.subr.bf16.mxu0 0
      %4220 = vmatpush1.bf16.msra.mxu0 0
      %4221 = vmatprep.subr.bf16.mxu0 0
      %4222 = vmatpush1.bf16.msra.mxu0 0
      %4223 = vmatprep.subr.bf16.mxu0 0
      %4224 = vmatpush1.bf16.msra.mxu0 0
      %4225 = vmatprep.subr.bf16.mxu0 0
      %4226 = vmatpush1.bf16.msra.mxu0 0
      %4227 = vmatprep.subr.bf16.mxu0 0
      %4228 = vmatpush1.bf16.msra.mxu0 0
      %4229 = vmatprep.subr.bf16.mxu0 0
      %4230 = vmatpush1.bf16.msra.mxu0 0
      %4231 = vmatprep.mubr.bf16.mxu0 0
      %4232 = vmatmul.mubr.bf16.gmra.mrb[0].mxu0 %v4194
      %v4233 = vpop.f32.mrb[0].mxu0
      %v4234 = vadd.f32 0.0, %v4233
      %v4235 = vpop.f32.mrb[0].mxu0
      %v4236 = vpop.f32.mrb[0].mxu0
      %v4237 = vadd.f32 0.0, %v4236
      %v4238 = vpop.f32.mrb[0].mxu0
      %4239 = vmatprep.mubr.bf16.mxu0 0
      %4240 = vmatmul.mubr.bf16.gmra.mrb[0].mxu0 %v4197
      %v4241 = vpop.f32.mrb[0].mxu0
      %v4242 = vadd.f32 0.0, %v4241
      %v4243 = vpop.f32.mrb[0].mxu0
      %v4244 = vpop.f32.mrb[0].mxu0
      %v4245 = vadd.f32 0.0, %v4244
      %v4246 = vpop.f32.mrb[0].mxu0
      %4247 = vdwg.mxu0
      %v4248 = vadd.f32 %v2608, %v4234
      %v4249 = vadd.f32 %v2609, %v4237
      %v4250 = vadd.f32 %v2610, %v4242
      %v4251 = vadd.f32 %v2611, %v4245
      %s4252 = scalar_lea.vmem %s9, 1
      %v4253 = vld [vmem:[%s4252] sm:$0x1]
      %s4254 = scalar_lea.vmem %s10, 1
      %v4255 = vld [vmem:[%s4254] sm:$0x1]
      %v4256 = vsel %vm630, %v4248, 0.0
      %4257 = vadd.xlane.f32.xlu0 %v4256
      %v4258 = vpop.xlane.xlu0 %4257
      %v4259 = vsel %vm630, %v4249, 0.0
      %4260 = vadd.xlane.f32.xlu0 %v4259
      %v4261 = vpop.xlane.xlu0 %4260
      %v4262 = vsel %vm630, %v4250, 0.0
      %4263 = vadd.xlane.f32.xlu0 %v4262
      %v4264 = vpop.xlane.xlu0 %4263
      %v4265 = vsel %vm640, %v4251, 0.0
      %4266 = vadd.xlane.f32.xlu0 %v4265
      %v4267 = vpop.xlane.xlu0 %4266
      %v4268 = vmul.f32 %v4258, %v644
      %v4269 = vmul.f32 %v4261, %v644
      %v4270 = vmul.f32 %v4264, %v644
      %v4271 = vmul.f32 %v4267, %v644
      %v4272 = vsub.f32 %v4248, %v4268
      %v4273 = vsub.f32 %v4249, %v4269
      %v4274 = vsub.f32 %v4250, %v4270
      %v4275 = vsub.f32 %v4251, %v4271
      %v4276 = vmul.f32 %v4272, %v4272
      %v4277 = vmul.f32 %v4273, %v4273
      %v4278 = vmul.f32 %v4274, %v4274
      %v4279 = vmul.f32 %v4275, %v4275
      %v4280 = vsel %vm630, %v4276, 0.0
      %4281 = vadd.xlane.f32.xlu0 %v4280
      %v4282 = vpop.xlane.xlu0 %4281
      %v4283 = vsel %vm630, %v4277, 0.0
      %4284 = vadd.xlane.f32.xlu0 %v4283
      %v4285 = vpop.xlane.xlu0 %4284
      %v4286 = vsel %vm630, %v4278, 0.0
      %4287 = vadd.xlane.f32.xlu0 %v4286
      %v4288 = vpop.xlane.xlu0 %4287
      %v4289 = vsel %vm640, %v4279, 0.0
      %4290 = vadd.xlane.f32.xlu0 %v4289
      %v4291 = vpop.xlane.xlu0 %4290
      %v4292 = vmul.f32 %v4282, %v644
      %v4293 = vmul.f32 %v4285, %v644
      %v4294 = vmul.f32 %v4288, %v644
      %v4295 = vmul.f32 %v4291, %v644
      %v4296 = vadd.f32 %v4292, 1e-05
      %v4297 = vadd.f32 %v4293, 1e-05
      %v4298 = vadd.f32 %v4294, 1e-05
      %v4299 = vadd.f32 %v4295, 1e-05
      %v4300 = vrsqrt.pop %v4296
      %v4301 = vrsqrt.pop %v4297
      %v4302 = vrsqrt.pop %v4298
      %v4303 = vrsqrt.pop %v4299
      %v4304 = vmul.f32 %v4272, %v4300
      %v4305 = vmul.f32 %v4273, %v4301
      %v4306 = vmul.f32 %v4274, %v4302
      %v4307 = vmul.f32 %v4275, %v4303
      %v4309 = vlaneseq
      %v4310 = vshrl.u32 %v4309, 7
      %v4311 = vsub.s32 0, %v4310
      %v4312 = vrot.slane %v4253, %v4311
      %v4314 = vmul.f32 %v4304, %v4312
      %v4315 = vmul.f32 %v4305, %v4312
      %v4316 = vmul.f32 %v4306, %v4312
      %v4317 = vmul.f32 %v4307, %v4312
      %v4319 = vlaneseq
      %v4320 = vshrl.u32 %v4319, 7
      %v4321 = vsub.s32 0, %v4320
      %v4322 = vrot.slane %v4255, %v4321
      %v4324 = vadd.f32 %v4314, %v4322
      %v4325 = vadd.f32 %v4315, %v4322
      %v4326 = vadd.f32 %v4316, %v4322
      %v4327 = vadd.f32 %v4317, %v4322
      %v4328 = vpack.c.bf16 %v4325, %v4324
      %v4329 = vpack.c.bf16 %v4327, %v4326
      %s4330 = scalar_lea.vmem %s11, 32
      %v4331 = vld [vmem:[%s4330] sm:$0xff]
      %v4332 = vld [vmem:[%s4330 + $0x8] sm:$0xff]
      %v4333 = vld [vmem:[%s4330 + $0x10] sm:$0xff]
      %v4334 = vld [vmem:[%s4330 + $0x18] sm:$0xff]
      %s4335 = scalar_lea.vmem %s12, 2
      %v4336 = vld [vmem:[%s4335] sm:$0x3]
      %v4338 = vlaneseq
      %v4339 = vshrl.u32 %v4338, 7
      %v4340 = vsub.s32 0, %v4339
      %v4341 = vrot.slane %v4336, %v4340
      %v4342 = vlaneseq
      %v4343 = vshrl.u32 %v4342, 7
      %v4344 = vsub.s32 1, %v4343
      %v4345 = vrot.slane %v4336, %v4344
      %v4352 = vunpack.c.l.b16 %v4331
      %v4353 = vunpack.c.h.b16 %v4331
      %v4354 = vunpack.c.l.b16 %v4332
      %v4355 = vunpack.c.h.b16 %v4332
      %v4356 = vunpack.c.l.b16 %v4333
      %v4357 = vunpack.c.h.b16 %v4333
      %v4358 = vunpack.c.l.b16 %v4334
      %v4359 = vunpack.c.h.b16 %v4334
      %v4360 = vpack.c.b16 %v4354, %v4352
      %v4361 = vpack.c.b16 %v4355, %v4353
      %v4362 = vpack.c.b16 %v4358, %v4356
      %v4363 = vpack.c.b16 %v4359, %v4357
      %v4369 = vsel %vm630, %v4328, 0
      %v4372 = vsel %vm630, %v4329, 0
      %4374 = vmatprep.subr.bf16.mxu0 %v4361
      %4375 = vmatpush1.bf16.msra.mxu0 %v4360
      %4376 = vmatprep.subr.bf16.mxu0 %v4363
      %4377 = vmatpush1.bf16.msra.mxu0 %v4362
      %4378 = vmatprep.subr.bf16.mxu0 0
      %4379 = vmatpush1.bf16.msra.mxu0 0
      %4380 = vmatprep.subr.bf16.mxu0 0
      %4381 = vmatpush1.bf16.msra.mxu0 0
      %4382 = vmatprep.subr.bf16.mxu0 0
      %4383 = vmatpush1.bf16.msra.mxu0 0
      %4384 = vmatprep.subr.bf16.mxu0 0
      %4385 = vmatpush1.bf16.msra.mxu0 0
      %4386 = vmatprep.subr.bf16.mxu0 0
      %4387 = vmatpush1.bf16.msra.mxu0 0
      %4388 = vmatprep.subr.bf16.mxu0 0
      %4389 = vmatpush1.bf16.msra.mxu0 0
      %4390 = vmatprep.subr.bf16.mxu0 0
      %4391 = vmatpush1.bf16.msra.mxu0 0
      %4392 = vmatprep.subr.bf16.mxu0 0
      %4393 = vmatpush1.bf16.msra.mxu0 0
      %4394 = vmatprep.subr.bf16.mxu0 0
      %4395 = vmatpush1.bf16.msra.mxu0 0
      %4396 = vmatprep.subr.bf16.mxu0 0
      %4397 = vmatpush1.bf16.msra.mxu0 0
      %4398 = vmatprep.subr.bf16.mxu0 0
      %4399 = vmatpush1.bf16.msra.mxu0 0
      %4400 = vmatprep.subr.bf16.mxu0 0
      %4401 = vmatpush1.bf16.msra.mxu0 0
      %4402 = vmatprep.subr.bf16.mxu0 0
      %4403 = vmatpush1.bf16.msra.mxu0 0
      %4404 = vmatprep.subr.bf16.mxu0 0
      %4405 = vmatpush1.bf16.msra.mxu0 0
      %4406 = vmatprep.mubr.bf16.mxu0 0
      %4407 = vmatmul.mubr.bf16.gmra.mrb[0].mxu0 %v4369
      %v4408 = vpop.f32.mrb[0].mxu0
      %v4409 = vadd.f32 %v4341, %v4408
      %v4410 = vpop.f32.mrb[0].mxu0
      %v4411 = vadd.f32 %v4345, %v4410
      %v4412 = vpop.f32.mrb[0].mxu0
      %v4413 = vadd.f32 %v4341, %v4412
      %v4414 = vpop.f32.mrb[0].mxu0
      %v4415 = vadd.f32 %v4345, %v4414
      %4416 = vmatprep.mubr.bf16.mxu0 0
      %4417 = vmatmul.mubr.bf16.gmra.mrb[0].mxu0 %v4372
      %v4418 = vpop.f32.mrb[0].mxu0
      %v4419 = vadd.f32 %v4341, %v4418
      %v4420 = vpop.f32.mrb[0].mxu0
      %v4421 = vadd.f32 %v4345, %v4420
      %v4422 = vpop.f32.mrb[0].mxu0
      %v4423 = vadd.f32 %v4341, %v4422
      %v4424 = vpop.f32.mrb[0].mxu0
      %v4425 = vadd.f32 %v4345, %v4424
      %4426 = vdwg.mxu0
      %v4427 = vmul.f32 %v4411, 0.5
      %v4428 = vmul.f32 %v4415, 0.5
      %v4429 = vmul.f32 %v4421, 0.5
      %v4430 = vmul.f32 %v4425, 0.5
      %v4431 = vmul.f32 %v4411, 0.044715
      %v4432 = vmul.f32 %v4415, 0.044715
      %v4433 = vmul.f32 %v4421, 0.044715
      %v4434 = vmul.f32 %v4425, 0.044715
      %v4435 = vmul.f32 %v4431, %v4411
      %v4436 = vmul.f32 %v4432, %v4415
      %v4437 = vmul.f32 %v4433, %v4421
      %v4438 = vmul.f32 %v4434, %v4425
      %v4439 = vmul.f32 %v4435, %v4411
      %v4440 = vmul.f32 %v4436, %v4415
      %v4441 = vmul.f32 %v4437, %v4421
      %v4442 = vmul.f32 %v4438, %v4425
      %v4443 = vadd.f32 %v4411, %v4439
      %v4444 = vadd.f32 %v4415, %v4440
      %v4445 = vadd.f32 %v4421, %v4441
      %v4446 = vadd.f32 %v4425, %v4442
      %v4447 = vmul.f32 %v4443, 0.7978846
      %v4448 = vmul.f32 %v4444, 0.7978846
      %v4449 = vmul.f32 %v4445, 0.7978846
      %v4450 = vmul.f32 %v4446, 0.7978846
      %v4451 = vtanh.pop %v4447
      %v4452 = vtanh.pop %v4448
      %v4453 = vtanh.pop %v4449
      %v4454 = vtanh.pop %v4450
      %v4455 = vadd.f32 %v4451, 1.0
      %v4456 = vadd.f32 %v4452, 1.0
      %v4457 = vadd.f32 %v4453, 1.0
      %v4458 = vadd.f32 %v4454, 1.0
      %v4459 = vmul.f32 %v4427, %v4455
      %v4460 = vmul.f32 %v4428, %v4456
      %v4461 = vmul.f32 %v4429, %v4457
      %v4462 = vmul.f32 %v4430, %v4458
      %v4463 = vmul.f32 %v4409, %v4459
      %v4464 = vmul.f32 %v4413, %v4460
      %v4465 = vmul.f32 %v4419, %v4461
      %v4466 = vmul.f32 %v4423, %v4462
      %v4467 = vpack.c.bf16 %v4464, %v4463
      %v4468 = vpack.c.bf16 %v4466, %v4465
      %s4469 = scalar_lea.vmem %s13, 64
      %v4470 = vld [vmem:[%s4469] sm:$0xf]
      %v4471 = vld [vmem:[%s4469 + $0x4] sm:$0xf]
      %v4472 = vld [vmem:[%s4469 + $0x8] sm:$0xf]
      %v4473 = vld [vmem:[%s4469 + $0xc] sm:$0xf]
      %v4474 = vld [vmem:[%s4469 + $0x10] sm:$0xf]
      %v4475 = vld [vmem:[%s4469 + $0x14] sm:$0xf]
      %v4476 = vld [vmem:[%s4469 + $0x18] sm:$0xf]
      %v4477 = vld [vmem:[%s4469 + $0x1c] sm:$0xf]
      %v4478 = vld [vmem:[%s4469 + $0x20] sm:$0xf]
      %v4479 = vld [vmem:[%s4469 + $0x24] sm:$0xf]
      %v4480 = vld [vmem:[%s4469 + $0x28] sm:$0xf]
      %v4481 = vld [vmem:[%s4469 + $0x2c] sm:$0xf]
      %v4482 = vld [vmem:[%s4469 + $0x30] sm:$0xf]
      %v4483 = vld [vmem:[%s4469 + $0x34] sm:$0xf]
      %v4484 = vld [vmem:[%s4469 + $0x38] sm:$0xf]
      %v4485 = vld [vmem:[%s4469 + $0x3c] sm:$0xf]
      %s4486 = scalar_lea.vmem %s14, 1
      %v4487 = vld [vmem:[%s4486] sm:$0x1]
      %v4489 = vlaneseq
      %v4490 = vshrl.u32 %v4489, 7
      %v4491 = vsub.s32 0, %v4490
      %v4492 = vrot.slane %v4487, %v4491
      %v4510 = vunpack.c.l.b16 %v4470
      %v4511 = vunpack.c.l.b16 %v4471
      %v4512 = vunpack.c.l.b16 %v4472
      %v4513 = vunpack.c.l.b16 %v4473
      %v4514 = vunpack.c.l.b16 %v4474
      %v4515 = vunpack.c.l.b16 %v4475
      %v4516 = vunpack.c.l.b16 %v4476
      %v4517 = vunpack.c.l.b16 %v4477
      %v4518 = vunpack.c.l.b16 %v4478
      %v4519 = vunpack.c.l.b16 %v4479
      %v4520 = vunpack.c.l.b16 %v4480
      %v4521 = vunpack.c.l.b16 %v4481
      %v4522 = vunpack.c.l.b16 %v4482
      %v4523 = vunpack.c.l.b16 %v4483
      %v4524 = vunpack.c.l.b16 %v4484
      %v4525 = vunpack.c.l.b16 %v4485
      %v4526 = vpack.c.b16 %v4511, %v4510
      %v4527 = vpack.c.b16 %v4513, %v4512
      %v4528 = vpack.c.b16 %v4515, %v4514
      %v4529 = vpack.c.b16 %v4517, %v4516
      %v4530 = vpack.c.b16 %v4519, %v4518
      %v4531 = vpack.c.b16 %v4521, %v4520
      %v4532 = vpack.c.b16 %v4523, %v4522
      %v4533 = vpack.c.b16 %v4525, %v4524
      %4542 = vmatprep.subr.bf16.mxu0 0
      %4543 = vmatpush1.bf16.msra.mxu0 %v4526
      %4544 = vmatprep.subr.bf16.mxu0 0
      %4545 = vmatpush1.bf16.msra.mxu0 %v4527
      %4546 = vmatprep.subr.bf16.mxu0 0
      %4547 = vmatpush1.bf16.msra.mxu0 %v4528
      %4548 = vmatprep.subr.bf16.mxu0 0
      %4549 = vmatpush1.bf16.msra.mxu0 %v4529
      %4550 = vmatprep.subr.bf16.mxu0 0
      %4551 = vmatpush1.bf16.msra.mxu0 %v4530
      %4552 = vmatprep.subr.bf16.mxu0 0
      %4553 = vmatpush1.bf16.msra.mxu0 %v4531
      %4554 = vmatprep.subr.bf16.mxu0 0
      %4555 = vmatpush1.bf16.msra.mxu0 %v4532
      %4556 = vmatprep.subr.bf16.mxu0 0
      %4557 = vmatpush1.bf16.msra.mxu0 %v4533
      %4558 = vmatprep.subr.bf16.mxu0 0
      %4559 = vmatpush1.bf16.msra.mxu0 0
      %4560 = vmatprep.subr.bf16.mxu0 0
      %4561 = vmatpush1.bf16.msra.mxu0 0
      %4562 = vmatprep.subr.bf16.mxu0 0
      %4563 = vmatpush1.bf16.msra.mxu0 0
      %4564 = vmatprep.subr.bf16.mxu0 0
      %4565 = vmatpush1.bf16.msra.mxu0 0
      %4566 = vmatprep.subr.bf16.mxu0 0
      %4567 = vmatpush1.bf16.msra.mxu0 0
      %4568 = vmatprep.subr.bf16.mxu0 0
      %4569 = vmatpush1.bf16.msra.mxu0 0
      %4570 = vmatprep.subr.bf16.mxu0 0
      %4571 = vmatpush1.bf16.msra.mxu0 0
      %4572 = vmatprep.subr.bf16.mxu0 0
      %4573 = vmatpush1.bf16.msra.mxu0 0
      %4574 = vmatprep.mubr.bf16.mxu0 0
      %4575 = vmatmul.mubr.bf16.gmra.mrb[0].mxu0 %v4467
      %v4576 = vpop.f32.mrb[0].mxu0
      %v4577 = vadd.f32 %v4492, %v4576
      %v4578 = vpop.f32.mrb[0].mxu0
      %v4579 = vpop.f32.mrb[0].mxu0
      %v4580 = vadd.f32 %v4492, %v4579
      %v4581 = vpop.f32.mrb[0].mxu0
      %4582 = vmatprep.mubr.bf16.mxu0 0
      %4583 = vmatmul.mubr.bf16.gmra.mrb[0].mxu0 %v4468
      %v4584 = vpop.f32.mrb[0].mxu0
      %v4585 = vadd.f32 %v4492, %v4584
      %v4586 = vpop.f32.mrb[0].mxu0
      %v4587 = vpop.f32.mrb[0].mxu0
      %v4588 = vadd.f32 %v4492, %v4587
      %v4589 = vpop.f32.mrb[0].mxu0
      %4590 = vdwg.mxu0
      %v4591 = vadd.f32 %v4248, %v4577
      %v4592 = vadd.f32 %v4249, %v4580
      %v4593 = vadd.f32 %v4250, %v4585
      %v4594 = vadd.f32 %v4251, %v4588
      %v4595 = vld [vmem:[%s15] sm:$0x1]
      %v4596 = vld [vmem:[%s16] sm:$0x1]
      %v4597 = vsel %vm630, %v4591, 0.0
      %4598 = vadd.xlane.f32.xlu0 %v4597
      %v4599 = vpop.xlane.xlu0 %4598
      %v4600 = vsel %vm630, %v4592, 0.0
      %4601 = vadd.xlane.f32.xlu0 %v4600
      %v4602 = vpop.xlane.xlu0 %4601
      %v4603 = vsel %vm630, %v4593, 0.0
      %4604 = vadd.xlane.f32.xlu0 %v4603
      %v4605 = vpop.xlane.xlu0 %4604
      %v4606 = vsel %vm640, %v4594, 0.0
      %4607 = vadd.xlane.f32.xlu0 %v4606
      %v4608 = vpop.xlane.xlu0 %4607
      %v4609 = vmul.f32 %v4599, %v644
      %v4610 = vmul.f32 %v4602, %v644
      %v4611 = vmul.f32 %v4605, %v644
      %v4612 = vmul.f32 %v4608, %v644
      %v4613 = vsub.f32 %v4591, %v4609
      %v4614 = vsub.f32 %v4592, %v4610
      %v4615 = vsub.f32 %v4593, %v4611
      %v4616 = vsub.f32 %v4594, %v4612
      %v4617 = vmul.f32 %v4613, %v4613
      %v4618 = vmul.f32 %v4614, %v4614
      %v4619 = vmul.f32 %v4615, %v4615
      %v4620 = vmul.f32 %v4616, %v4616
      %v4621 = vsel %vm630, %v4617, 0.0
      %4622 = vadd.xlane.f32.xlu0 %v4621
      %v4623 = vpop.xlane.xlu0 %4622
      %v4624 = vsel %vm630, %v4618, 0.0
      %4625 = vadd.xlane.f32.xlu0 %v4624
      %v4626 = vpop.xlane.xlu0 %4625
      %v4627 = vsel %vm630, %v4619, 0.0
      %4628 = vadd.xlane.f32.xlu0 %v4627
      %v4629 = vpop.xlane.xlu0 %4628
      %v4630 = vsel %vm640, %v4620, 0.0
      %4631 = vadd.xlane.f32.xlu0 %v4630
      %v4632 = vpop.xlane.xlu0 %4631
      %v4633 = vmul.f32 %v4623, %v644
      %v4634 = vmul.f32 %v4626, %v644
      %v4635 = vmul.f32 %v4629, %v644
      %v4636 = vmul.f32 %v4632, %v644
      %v4637 = vadd.f32 %v4633, 1e-05
      %v4638 = vadd.f32 %v4634, 1e-05
      %v4639 = vadd.f32 %v4635, 1e-05
      %v4640 = vadd.f32 %v4636, 1e-05
      %v4641 = vrsqrt.pop %v4637
      %v4642 = vrsqrt.pop %v4638
      %v4643 = vrsqrt.pop %v4639
      %v4644 = vrsqrt.pop %v4640
      %v4645 = vmul.f32 %v4613, %v4641
      %v4646 = vmul.f32 %v4614, %v4642
      %v4647 = vmul.f32 %v4615, %v4643
      %v4648 = vmul.f32 %v4616, %v4644
      %v4650 = vlaneseq
      %v4651 = vshrl.u32 %v4650, 7
      %v4652 = vsub.s32 0, %v4651
      %v4653 = vrot.slane %v4595, %v4652
      %v4655 = vmul.f32 %v4645, %v4653
      %v4656 = vmul.f32 %v4646, %v4653
      %v4657 = vmul.f32 %v4647, %v4653
      %v4658 = vmul.f32 %v4648, %v4653
      %v4660 = vlaneseq
      %v4661 = vshrl.u32 %v4660, 7
      %v4662 = vsub.s32 0, %v4661
      %v4663 = vrot.slane %v4596, %v4662
      %v4665 = vadd.f32 %v4655, %v4663
      %v4666 = vadd.f32 %v4656, %v4663
      %v4667 = vadd.f32 %v4657, %v4663
      %v4668 = vadd.f32 %v4658, %v4663
      %v4669 = vpack.c.bf16 %v4666, %v4665
      %v4670 = vpack.c.bf16 %v4668, %v4667
      %v4671 = vld [vmem:[%s17] sm:$0xf]
      %v4672 = vld [vmem:[%s17 + $0x4] sm:$0xf]
      %v4673 = vld [vmem:[%s17 + $0x8] sm:$0xf]
      %v4674 = vld [vmem:[%s17 + $0xc] sm:$0xf]
      %v4675 = vld [vmem:[%s18] sm:$0x1]
      %v4677 = vlaneseq
      %v4678 = vshrl.u32 %v4677, 7
      %v4679 = vsub.s32 0, %v4678
      %v4680 = vrot.slane %v4675, %v4679
      %v4686 = vunpack.c.l.b16 %v4671
      %v4687 = vunpack.c.l.b16 %v4672
      %v4688 = vunpack.c.l.b16 %v4673
      %v4689 = vunpack.c.l.b16 %v4674
      %v4690 = vpack.c.b16 %v4687, %v4686
      %v4691 = vpack.c.b16 %v4689, %v4688
      %v4695 = vsel %vm630, %v4669, 0
      %v4698 = vsel %vm630, %v4670, 0
      %4700 = vmatprep.subr.bf16.mxu0 0
      %4701 = vmatpush1.bf16.msra.mxu0 %v4690
      %4702 = vmatprep.subr.bf16.mxu0 0
      %4703 = vmatpush1.bf16.msra.mxu0 %v4691
      %4704 = vmatprep.subr.bf16.mxu0 0
      %4705 = vmatpush1.bf16.msra.mxu0 0
      %4706 = vmatprep.subr.bf16.mxu0 0
      %4707 = vmatpush1.bf16.msra.mxu0 0
      %4708 = vmatprep.subr.bf16.mxu0 0
      %4709 = vmatpush1.bf16.msra.mxu0 0
      %4710 = vmatprep.subr.bf16.mxu0 0
      %4711 = vmatpush1.bf16.msra.mxu0 0
      %4712 = vmatprep.subr.bf16.mxu0 0
      %4713 = vmatpush1.bf16.msra.mxu0 0
      %4714 = vmatprep.subr.bf16.mxu0 0
      %4715 = vmatpush1.bf16.msra.mxu0 0
      %4716 = vmatprep.subr.bf16.mxu0 0
      %4717 = vmatpush1.bf16.msra.mxu0 0
      %4718 = vmatprep.subr.bf16.mxu0 0
      %4719 = vmatpush1.bf16.msra.mxu0 0
      %4720 = vmatprep.subr.bf16.mxu0 0
      %4721 = vmatpush1.bf16.msra.mxu0 0
      %4722 = vmatprep.subr.bf16.mxu0 0
      %4723 = vmatpush1.bf16.msra.mxu0 0
      %4724 = vmatprep.subr.bf16.mxu0 0
      %4725 = vmatpush1.bf16.msra.mxu0 0
      %4726 = vmatprep.subr.bf16.mxu0 0
      %4727 = vmatpush1.bf16.msra.mxu0 0
      %4728 = vmatprep.subr.bf16.mxu0 0
      %4729 = vmatpush1.bf16.msra.mxu0 0
      %4730 = vmatprep.subr.bf16.mxu0 0
      %4731 = vmatpush1.bf16.msra.mxu0 0
      %4732 = vmatprep.mubr.bf16.mxu0 0
      %4733 = vmatmul.mubr.bf16.gmra.mrb[0].mxu0 %v4695
      %v4734 = vpop.f32.mrb[0].mxu0
      %v4735 = vadd.f32 %v4680, %v4734
      %v4736 = vpop.f32.mrb[0].mxu0
      %v4737 = vpop.f32.mrb[0].mxu0
      %v4738 = vadd.f32 %v4680, %v4737
      %v4739 = vpop.f32.mrb[0].mxu0
      %4740 = vmatprep.mubr.bf16.mxu0 0
      %4741 = vmatmul.mubr.bf16.gmra.mrb[0].mxu0 %v4698
      %v4742 = vpop.f32.mrb[0].mxu0
      %v4743 = vadd.f32 %v4680, %v4742
      %v4744 = vpop.f32.mrb[0].mxu0
      %v4745 = vpop.f32.mrb[0].mxu0
      %v4746 = vadd.f32 %v4680, %v4745
      %v4747 = vpop.f32.mrb[0].mxu0
      %4748 = vdwg.mxu0
      %4749 = vmax.xlane.f32.xlu0 %v4735
      %v4750 = vpop.xlane.xlu0 %4749
      %4751 = vmax.xlane.f32.xlu0 %v4738
      %v4752 = vpop.xlane.xlu0 %4751
      %4753 = vmax.xlane.f32.xlu0 %v4743
      %v4754 = vpop.xlane.xlu0 %4753
      %v4755 = vsel %vm1001, %v4746, -inf
      %4756 = vmax.xlane.f32.xlu0 %v4755
      %v4757 = vpop.xlane.xlu0 %4756
      %v4758 = vsub.f32 %v4735, %v4750
      %v4759 = vsub.f32 %v4738, %v4752
      %v4760 = vsub.f32 %v4743, %v4754
      %v4761 = vsub.f32 %v4746, %v4757
      %v4762 = vmul.f32 %v4758, 1.442695
      %v4763 = vpow.pop %v4762
      %v4764 = vmul.f32 %v4759, 1.442695
      %v4765 = vpow.pop %v4764
      %v4766 = vmul.f32 %v4760, 1.442695
      %v4767 = vpow.pop %v4766
      %v4768 = vmul.f32 %v4761, 1.442695
      %v4769 = vpow.pop %v4768
      %4770 = vadd.xlane.f32.xlu0 %v4763
      %v4771 = vpop.xlane.xlu0 %4770
      %4772 = vadd.xlane.f32.xlu0 %v4765
      %v4773 = vpop.xlane.xlu0 %4772
      %4774 = vadd.xlane.f32.xlu0 %v4767
      %v4775 = vpop.xlane.xlu0 %4774
      %v4776 = vsel %vm1001, %v4769, 0.0
      %4777 = vadd.xlane.f32.xlu0 %v4776
      %v4778 = vpop.xlane.xlu0 %4777
      %v4779 = vlog2.pop %v4771
      %v4780 = vmul.f32 %v4779, 0.6931472
      %v4781 = vlog2.pop %v4773
      %v4782 = vmul.f32 %v4781, 0.6931472
      %v4783 = vlog2.pop %v4775
      %v4784 = vmul.f32 %v4783, 0.6931472
      %v4785 = vlog2.pop %v4778
      %v4786 = vmul.f32 %v4785, 0.6931472
      %v4787 = vadd.f32 %v4750, %v4780
      %v4788 = vadd.f32 %v4752, %v4782
      %v4789 = vadd.f32 %v4754, %v4784
      %v4790 = vadd.f32 %v4757, %v4786
      %v4791 = vld [vmem:[%s615] sm:$0xff]
      %v4792 = vld [vmem:[%s615 + $0x8] sm:$0xff]
      %v4793 = vld [vmem:[%s615 + $0x10] sm:$0xff]
      %v4794 = vld [vmem:[%s615 + $0x18] sm:$0x3]
      %v4795 = vlaneseq
      %v4796 = vand.u32 %v4795, 127
      %4797 = vset.pattern.permute.xlu0 0
      %4798 = vperm.xlu0 %4797, %v4791
      %v4799 = vpop.permute.xlu0 %4798
      %4800 = vset.pattern.permute.xlu0 0
      %4801 = vperm.xlu0 %4800, %v4792
      %v4802 = vpop.permute.xlu0 %4801
      %4803 = vset.pattern.permute.xlu0 0
      %4804 = vperm.xlu0 %4803, %v4793
      %v4805 = vpop.permute.xlu0 %4804
      %4806 = vset.pattern.permute.xlu0 0
      %4807 = vperm.xlu0 %4806, %v4794
      %v4808 = vpop.permute.xlu0 %4807
      %vm4809 = vcmp.eq.s32.totalorder %v4796, %v4799
      %vm4810 = vcmp.eq.s32.totalorder %v4796, %v4802
      %vm4811 = vcmp.eq.s32.totalorder %v4796, %v4805
      %vm4812 = vcmp.eq.s32.totalorder %v4796, %v4808
      %v4813 = vsel %vm4809, %v4735, 0.0
      %v4814 = vsel %vm4810, %v4738, 0.0
      %v4815 = vsel %vm4811, %v4743, 0.0
      %v4816 = vsel %vm4812, %v4746, 0.0
      %4817 = vadd.xlane.f32.xlu0 %v4813
      %v4818 = vpop.xlane.xlu0 %4817
      %4819 = vadd.xlane.f32.xlu0 %v4814
      %v4820 = vpop.xlane.xlu0 %4819
      %4821 = vadd.xlane.f32.xlu0 %v4815
      %v4822 = vpop.xlane.xlu0 %4821
      %v4823 = vsel %vm1001, %v4816, 0.0
      %4824 = vadd.xlane.f32.xlu0 %v4823
      %v4825 = vpop.xlane.xlu0 %4824
      %vm4826 = vcmp.ge.s32.totalorder %v4791, 0
      %vm4827 = vcmp.ge.s32.totalorder %v4792, 0
      %vm4828 = vcmp.ge.s32.totalorder %v4793, 0
      %vm4829 = vcmp.ge.s32.totalorder %v4794, 0
      %v4830 = vsel %vm4826, 1, 0
      %v4831 = vsel %vm4827, 1, 0
      %v4832 = vsel %vm4828, 1, 0
      %v4833 = vsel %vm4829, 1, 0
      %v4834 = vcvt.s32.f32 %v4830
      %v4835 = vcvt.s32.f32 %v4831
      %v4836 = vcvt.s32.f32 %v4832
      %v4837 = vcvt.s32.f32 %v4833
      %v4838 = vsub.f32 %v4787, %v4818
      %v4839 = vsub.f32 %v4788, %v4820
      %v4840 = vsub.f32 %v4789, %v4822
      %v4841 = vsub.f32 %v4790, %v4825
      %v4842 = vmul.f32 %v4838, %v4834
      %v4843 = vmul.f32 %v4839, %v4835
      %v4844 = vmul.f32 %v4840, %v4836
      %v4845 = vmul.f32 %v4841, %v4837
      %vm4846 = vcmask 7168
      %v4847 = vsel %vm4846, %v4842, 0.0
      %v4848 = vsel %vm4846, %v4843, 0.0
      %v4849 = vadd.f32 %v4847, %v4848
      %v4850 = vsel %vm4846, %v4844, 0.0
      %v4851 = vadd.f32 %v4849, %v4850
      %vm4852 = vcmask 1024
      %v4853 = vsel %vm4852, %v4845, 0.0
      %v4854 = vadd.f32 %v4851, %v4853
      %v4855 = vrot.slane %v4854, 4
      %v4856 = vadd.f32 %v4854, %v4855
      %v4857 = vrot.slane %v4856, 2
      %v4858 = vadd.f32 %v4856, %v4857
      %v4859 = vrot.slane %v4858, 1
      %v4860 = vadd.f32 %v4858, %v4859
      %4862 = vset.pattern.permute.xlu0 0
      %4863 = vperm.xlu0 %4862, %v4860
      %v4864 = vpop.permute.xlu0 %4863
      %4866 = vst [vmem:[%s618] sm:$0x1] %v4864
      %p4867 = scmp.lt.s32.totalorder %s30, 1
      %s4868 = scalar_select %p4867, %s30, 1
      %s4869 = scalar_lea.vmem %s19, %s4868
      // Predicated region
      $region97: #{forward_on_codes.1} parent=95 // pred_check
        %p4870 = pneg %p457
      $region98: #{forward_on_codes.1} parent=95 // pred_check_branch
        %4872 = sbr.rel (%p4870) target = $region100
      $region99: #{forward_on_codes.1} parent=95 // pred_region
        _
      $region100: #{forward_on_codes.1} parent=95 // pred_fallthru
        _
    $region96: #{forward_on_codes.1} parent=5 // pred_fallthru
      _
    %p4873 = scmp.le.s32.totalorder 2, %s25
    // Predicated region
    $region101: #{forward_on_codes.1} parent=5 // pred_check
      %p4874 = pneg %p4873
    $region102: #{forward_on_codes.1} parent=5 // pred_check_branch
      %4876 = sbr.rel (%p4874) target = $region104
    $region103: #{forward_on_codes.1} parent=5 // pred_region
      %s4877 = ssub.s32 %s25, 2
      // Predicated region
      $region105: #{forward_on_codes.1} parent=103 // pred_check
        %p4878 = pneg %p463
      $region106: #{forward_on_codes.1} parent=103 // pred_check_branch
        %4880 = sbr.rel (%p4878) target = $region108
      $region107: #{forward_on_codes.1} parent=103 // pred_region
        %p4881 = scmp.lt.s32.totalorder %s31, 1
        %s4882 = scalar_select %p4881, %s31, 1
        %s4883 = scalar_lea.vmem %s19, %s4882
      $region108: #{forward_on_codes.1} parent=103 // pred_fallthru
        _
    $region104: #{forward_on_codes.1} parent=5 // pred_fallthru
      _
  $region6: #{forward_on_codes.1} parent=0 // loop_footer
    %s29 = sadd.s32 1, %s25
  $region7: #{forward_on_codes.1} parent=0 // loop_footer_branch
    %24 = sbr.rel target = $region3
  $region8: #{forward_on_codes.1} parent=0 // loop_exit
    _

</llo_original>
